<compile_context>
chip_gen: v7x
topology: tpu7x:2x2x1
jax: 0.10.0
libtpu: 0.0.40
codegen_flags: <defaults>
</compile_context>

<pallas_src>
import functools

import jax
import jax.numpy as jnp
from jax import lax
from jax.experimental import pallas as pl
from jax.experimental.pallas import tpu as pltpu


def _erf_f32(x):
    """float32 erf via a clipped rational approximation (mul/add/div only -> always lowers).

    Clipping at |x| = 4 saturates the result at erf(4) ~= 1 - 1.6e-8, so the error stays flat
    (does not grow) for large activations.
    """
    a = jnp.clip(x, -4.0, 4.0)
    a2 = a * a
    alpha = (-2.72614225801306e-10, 2.77068142495902e-08, -2.10102402082508e-06,
             -5.69250639462346e-05, -7.34990630326855e-04, -2.95459980854025e-03,
             -1.60960333262415e-02)
    beta = (-1.45660718464996e-05, -2.13374055278905e-04, -1.68282697438203e-03,
            -7.37332916720468e-03, -1.42647390514189e-02)
    p = jnp.full_like(a2, alpha[0])
    for c in alpha[1:]:
        p = p * a2 + c
    p = p * a
    q = jnp.full_like(a2, beta[0])
    for c in beta[1:]:
        q = q * a2 + c
    return p / q


def _gelu_exact(x):
    # nn.GELU() default = exact (erf) formulation, evaluated in f32.
    return 0.5 * x * (1.0 + _erf_f32(x * 0.7071067811865476))


def _gelu_tanh(x):
    # tanh-approximate GELU: moves the transcendental onto the (otherwise idle) EUP slot and
    # cuts VALU pressure on the widest tensor in the kernel (q_tile, 4D).
    c = 0.7978845608028654  # sqrt(2/pi)
    return 0.5 * x * (1.0 + jnp.tanh(c * (x + 0.044715 * x * x * x)))


def _layernorm(x, gamma, beta, eps=1e-5):
    mu = jnp.mean(x, axis=-1, keepdims=True)
    var = jnp.mean((x - mu) ** 2, axis=-1, keepdims=True)
    return (x - mu) * lax.rsqrt(var + eps) * gamma + beta


def attention_block_kernel(src_full_ref, src_tile_ref,
                           wq_ref, wk_ref, wv_ref, wc_ref, bc_ref,
                           w1_ref, b1_ref, w2_ref, b2_ref,
                           g1_ref, be1_ref, g2_ref, be2_ref,
                           out_ref, k_sc, v_sc, oh_sc,
                           *, num_heads, head_dim, compute_dtype, approx_recip, gelu_tanh):
    cd = compute_dtype
    qi = pl.program_id(1)

    # ---- 1) K / V projection for the whole sequence, once per batch element. ----
    # Two separate matmuls written straight into scratch (no (N, 3D) intermediate and no
    # extra VMEM copies from lane-slicing a fused result).
    @pl.when(qi == 0)
    def _():
        x_full = src_full_ref[0].astype(cd)                              # (N, D)
        k_sc[...] = jnp.dot(x_full, wk_ref[...],
                            preferred_element_type=jnp.float32).astype(k_sc.dtype)
        v_sc[...] = jnp.dot(x_full, wv_ref[...],
                            preferred_element_type=jnp.float32).astype(v_sc.dtype)

    # ---- 2) Per-tile Q projection (softmax scale pre-folded into wq in the wrapper). ----
    x_tile_cd = src_tile_ref[0].astype(cd)                               # (tq, D)
    q_t = jnp.dot(x_tile_cd, wq_ref[...],
                  preferred_element_type=jnp.float32).astype(cd)         # (tq, D), pre-scaled

    k = k_sc[...]                                                        # (N, D)
    v = v_sc[...]                                                        # (N, D)

    # ---- 3) Per-head softmax(QK^T)V; head outputs written into a concat scratch buffer. ----
    # TODO(synk): for head_dim < 128 a head-major (H, N, hd) K/V layout would avoid lane-offset
    #             slices; acceptable lane padding for the small-hd case is kept here.
    for h in range(num_heads):                                           # H is small & static
        c0 = h * head_dim
        qh = q_t[:, c0:c0 + head_dim]                                    # (tq, hd)
        kh = k[:, c0:c0 + head_dim]                                      # (N, hd)
        vh = v[:, c0:c0 + head_dim]                                      # (N, hd)
        # Contract head_dim of both operands -> no materialized transpose of K.
        s = lax.dot_general(qh, kh, (((1,), (1,)), ((), ())),
                            preferred_element_type=jnp.float32)          # (tq, N), f32
        s = s - jnp.max(s, axis=-1, keepdims=True)                       # softmax over dim=-1
        p = jnp.exp(s)
        inv = pl.reciprocal(jnp.sum(p, axis=-1, keepdims=True), approx=approx_recip)
        p = p * inv
        oh = jnp.dot(p.astype(cd), vh, preferred_element_type=jnp.float32)   # (tq, hd)
        oh_sc[:, c0:c0 + head_dim] = oh.astype(oh_sc.dtype)

    # ---- 4) ONE full-K matmul for the concat_head projection (no spilled accumulator). ----
    attn = jnp.dot(oh_sc[...], wc_ref[...],
                   preferred_element_type=jnp.float32) + bc_ref[...]     # (tq, D), f32

    # ---- 5) post_attn_ln(attn_drop(out) + src)  (dropout p=0 -> identity), f32. ----
    x_res = src_tile_ref[0].astype(jnp.float32)                          # (tq, D)
    x1 = _layernorm(attn + x_res, g1_ref[...], be1_ref[...])

    # ---- 6) FFN: Linear(D, 4D) -> GELU -> Linear(4D, D).  Elementwise math stays f32. ----
    h1 = jnp.dot(x1.astype(cd), w1_ref[...],
                 preferred_element_type=jnp.float32) + b1_ref[...]
    h1 = _gelu_tanh(h1) if gelu_tanh else _gelu_exact(h1)
    ff = jnp.dot(h1.astype(cd), w2_ref[...],
                 preferred_element_type=jnp.float32) + b2_ref[...]

    # ---- 7) post_ffn_ln(ffn_drop(ffn(out)) + out). ----
    x2 = _layernorm(ff + x1, g2_ref[...], be2_ref[...])
    out_ref[0] = x2.astype(out_ref.dtype)


def _vmem_cap_bytes():
    """Per-generation VMEM cap: ~75% of physical capacity, safe fallback = 48 MiB (ok on v7x)."""
    try:
        info = pltpu.get_tpu_info()
        cap = getattr(info, "vmem_capacity_bytes", None)
        if cap:
            return int(cap) * 3 // 4
    except Exception:
        pass
    return 48 * 1024 * 1024


def _vmem_limit_bytes(N, D, q_tile, cd, src_dtype, out_dtype, single_buffer):
    cd_sz = jnp.dtype(cd).itemsize
    src_sz = jnp.dtype(src_dtype).itemsize
    out_sz = jnp.dtype(out_dtype).itemsize
    D4 = 4 * D
    wbuf = 1 if single_buffer else 2
    weights = wbuf * ((3 * D * D + D * D + D * D4 + D4 * D) * cd_sz
                      + (2 * D + D4 + 4 * D) * 4)                       # biases / LN params (f32)
    scratch = (2 * N * D + q_tile * D) * cd_sz                           # K, V, head-output concat
    src_full = (1 if single_buffer else 2) * N * D * src_sz
    src_tile = 2 * q_tile * D * src_sz
    out = 2 * q_tile * D * out_sz
    need = weights + scratch + src_full + src_tile + out
    want = need * 3 // 2 + (4 << 20)                                     # headroom for live values
    return max(32 << 20, min(want, _vmem_cap_bytes()))


def attention_forward(src, params, num_heads, *, q_tile=None,
                      compute_dtype=jnp.bfloat16, single_buffer_weights=True,
                      gelu_approx=None):
    B, N, D = src.shape
    D4 = 4 * D
    head_dim = D // num_heads
    scale = head_dim ** (-0.5)

    if q_tile is None:
        if N <= 256:
            q_tile = N
        else:
            # Prefer 256 (fills the 256-wide MXU on v6e/v7x); pass q_tile=128 explicitly for v5e.
            q_tile = next((t for t in (256, 128, 64, 32, 16, 8) if N % t == 0), N)
    assert N % q_tile == 0, "sequence length must be divisible by the query tile"
    n_q = N // q_tile

    cd = compute_dtype
    if gelu_approx is None:
        gelu_approx = (cd == jnp.bfloat16)       # exact erf on the tight f32 path
    approx_recip = (cd == jnp.bfloat16)          # EUP reciprocal only on the fast path

    # Softmax scale folded into the Q weight (removes an O(tq*N)-per-head VPU scale for free).
    wq = (params["wq"] * jnp.asarray(scale, params["wq"].dtype)).astype(cd)
    wk = params["wk"].astype(cd)
    wv = params["wv"].astype(cd)
    wc = params["wc"].astype(cd)
    w1 = params["w1"].astype(cd)
    w2 = params["w2"].astype(cd)

    kernel = functools.partial(
        attention_block_kernel,
        num_heads=num_heads, head_dim=head_dim,
        compute_dtype=cd, approx_recip=approx_recip, gelu_tanh=gelu_approx)

    # Constant weights/biases: identical block at every grid step -> single-buffer so they are
    # not pointlessly double-buffered in VMEM.
    def const_spec(shape):
        imap = lambda b, q, _n=len(shape): (0,) * _n
        if single_buffer_weights:
            return pl.BlockSpec(shape, imap, pipeline_mode=pl.Buffered(1))
        return pl.BlockSpec(shape, imap)

    # Full (N, D) src slab is only consumed at q-tile 0 (K/V projection): single-buffer it too.
    def src_full_spec():
        if single_buffer_weights:
            return pl.BlockSpec((1, N, D), lambda b, q: (b, 0, 0),
                                pipeline_mode=pl.Buffered(1))
        return pl.BlockSpec((1, N, D), lambda b, q: (b, 0, 0))

    in_specs = [
        src_full_spec(),                                    # src, full slab (K/V projection)
        pl.BlockSpec((1, q_tile, D), lambda b, q: (b, q, 0)),  # src, per-tile (residual + Q)
        const_spec((D, D)),      # wq (scale folded in)
        const_spec((D, D)),      # wk
        const_spec((D, D)),      # wv
        const_spec((D, D)),      # wc  (concat_head weight)
        const_spec((1, D)),      # bc  (concat_head bias)
        const_spec((D, D4)),     # w1  (ffn[0])
        const_spec((1, D4)),     # b1
        const_spec((D4, D)),     # w2  (ffn[3])
        const_spec((1, D)),      # b2
        const_spec((1, D)),      # post_attn_ln gamma
        const_spec((1, D)),      # post_attn_ln beta
        const_spec((1, D)),      # post_ffn_ln gamma
        const_spec((1, D)),      # post_ffn_ln beta
    ]

    vmem_limit = _vmem_limit_bytes(N, D, q_tile, cd, src.dtype, src.dtype,
                                   single_buffer_weights)

    return pl.pallas_call(
        kernel,
        out_shape=jax.ShapeDtypeStruct((B, N, D), src.dtype),
        grid=(B, n_q),
        in_specs=in_specs,
        out_specs=pl.BlockSpec((1, q_tile, D), lambda b, q: (b, q, 0)),
        scratch_shapes=[
            pltpu.VMEM((N, D), cd),        # K (full sequence)
            pltpu.VMEM((N, D), cd),        # V (full sequence)
            pltpu.VMEM((q_tile, D), cd),   # concatenated per-head attention outputs
        ],
        compiler_params=pltpu.CompilerParams(
            # Batch axis is parallel (megacore shardable); the query-tile axis carries the
            # per-batch K/V scratch so it must stay "arbitrary".
            dimension_semantics=("parallel", "arbitrary"),
            vmem_limit_bytes=vmem_limit,
        ),
    )(src, src, wq, wk, wv, wc, params["bc"], w1, params["b1"], w2, params["b2"],
      params["g1"], params["be1"], params["g2"], params["be2"])


def reference_forward(src, params, num_heads):
    """Pure-JAX reference mirroring the PyTorch forward (mask=None, dropout=0 branch)."""
    B, N, D = src.shape
    hd = D // num_heads
    scale = hd ** (-0.5)
    q = src @ params["wq"]
    k = src @ params["wk"]
    v = src @ params["wv"]
    split = lambda t: t.reshape(B, N, num_heads, hd).transpose(0, 2, 1, 3)
    q, k, v = split(q), split(k), split(v)
    s = jnp.einsum("bhid,bhjd->bhij", q, k) * scale
    p = jax.nn.softmax(s, axis=-1)
    o = jnp.einsum("bhij,bhjd->bhid", p, v)
    o = o.transpose(0, 2, 1, 3).reshape(B, N, D)
    o = o @ params["wc"] + params["bc"]
    x1 = _layernorm(o + src, params["g1"], params["be1"])
    h1 = jax.nn.gelu(x1 @ params["w1"] + params["b1"], approximate=False)
    ff = h1 @ params["w2"] + params["b2"]
    return _layernorm(ff + x1, params["g2"], params["be2"])


if __name__ == "__main__":
    B, N, D, H = 2, 8, 32, 4          # batch, seq, d_model, n_heads
    D4 = 4 * D

    key = jax.random.PRNGKey(0)
    ks = jax.random.split(key, 9)
    std = D ** (-0.5)                  # CLIP-style init from _initialize_params

    params = {
        "wq": jax.random.normal(ks[0], (D, D), jnp.float32) * std,
        "wk": jax.random.normal(ks[1], (D, D), jnp.float32) * std,
        "wv": jax.random.normal(ks[2], (D, D), jnp.float32) * std,
        "wc": jax.random.normal(ks[3], (D, D), jnp.float32) * 0.02,
        "bc": jax.random.normal(ks[4], (1, D), jnp.float32) * 0.02,
        "w1": jax.random.normal(ks[5], (D, D4), jnp.float32) * 0.02,
        "b1": jax.random.normal(ks[6], (1, D4), jnp.float32) * 0.02,
        "w2": jax.random.normal(ks[7], (D4, D), jnp.float32) * 0.02,
        "b2": jnp.zeros((1, D), jnp.float32),
        "g1": jnp.ones((1, D), jnp.float32),
        "be1": jnp.zeros((1, D), jnp.float32),
        "g2": jnp.ones((1, D), jnp.float32),
        "be2": jnp.zeros((1, D), jnp.float32),
    }

    src = jax.random.normal(ks[8], (B, N, D), jnp.float32)
    ref = reference_forward(src, params, num_heads=H)

    def run(compute_dtype, sb, gelu_approx):
        o = attention_forward(src, params, num_heads=H, compute_dtype=compute_dtype,
                              single_buffer_weights=sb, gelu_approx=gelu_approx)
        return jax.block_until_ready(o)

    # f32 path with exact-erf GELU (tight numerical check vs the reference).
    try:
        single_buf = True
        out = run(jnp.float32, single_buf, gelu_approx=False)
    except Exception:
        # Fallback if this JAX build rejects single-buffered (Buffered(1)) constant inputs.
        single_buf = False
        out = run(jnp.float32, single_buf, gelu_approx=False)

    assert out.shape == (B, N, D)
    assert jnp.allclose(out, ref, atol=2e-4, rtol=2e-4), float(jnp.max(jnp.abs(out - ref)))

    # bf16 MXU fast path (f32 accumulation; softmax/GELU/LayerNorm stay f32; tanh GELU,
    # EUP reciprocal) -> looser tolerance.
    out_bf16 = run(jnp.bfloat16, single_buf, gelu_approx=True)
    assert jnp.allclose(out_bf16, ref, atol=5e-2, rtol=5e-2), \
        float(jnp.max(jnp.abs(out_bf16 - ref)))

    print("KERNEL_OK")
</pallas_src>

<mosaic_0001>
module attributes {stable_mosaic.version = 11 : i64} {
  func.func @attention_block_kernel(%arg0: i32, %arg1: i32, %arg2: memref<1x8x32xf32, #tpu.memory_space<vmem>>, %arg3: memref<1x8x32xf32, #tpu.memory_space<vmem>>, %arg4: memref<32x32xf32, #tpu.memory_space<vmem>>, %arg5: memref<32x32xf32, #tpu.memory_space<vmem>>, %arg6: memref<32x32xf32, #tpu.memory_space<vmem>>, %arg7: memref<32x32xf32, #tpu.memory_space<vmem>>, %arg8: memref<1x32xf32, #tpu.memory_space<vmem>>, %arg9: memref<32x128xf32, #tpu.memory_space<vmem>>, %arg10: memref<1x128xf32, #tpu.memory_space<vmem>>, %arg11: memref<128x32xf32, #tpu.memory_space<vmem>>, %arg12: memref<1x32xf32, #tpu.memory_space<vmem>>, %arg13: memref<1x32xf32, #tpu.memory_space<vmem>>, %arg14: memref<1x32xf32, #tpu.memory_space<vmem>>, %arg15: memref<1x32xf32, #tpu.memory_space<vmem>>, %arg16: memref<1x32xf32, #tpu.memory_space<vmem>>, %arg17: memref<1x8x32xf32, #tpu.memory_space<vmem>>, %arg18: memref<8x32xf32, #tpu.memory_space<vmem>>, %arg19: memref<8x32xf32, #tpu.memory_space<vmem>>, %arg20: memref<8x32xf32, #tpu.memory_space<vmem>>) attributes {dimension_semantics = [#tpu.dimension_semantics<parallel>, #tpu.dimension_semantics<arbitrary>], iteration_bounds = array<i64: 2, 1>, scalar_prefetch = 0 : i64, scratch_operands = 3 : i64, tpu.core_type = #tpu.core_type<tc>, window_params = [{pipeline_mode = #tpu.pipeline_mode<synchronous>, transform_indices = @transform_0, window_bounds = array<i64: 1, 8, 32>}, {transform_indices = @transform_1, window_bounds = array<i64: 1, 8, 32>}, {pipeline_mode = #tpu.pipeline_mode<synchronous>, transform_indices = @transform_2, window_bounds = array<i64: 32, 32>}, {pipeline_mode = #tpu.pipeline_mode<synchronous>, transform_indices = @transform_3, window_bounds = array<i64: 32, 32>}, {pipeline_mode = #tpu.pipeline_mode<synchronous>, transform_indices = @transform_4, window_bounds = array<i64: 32, 32>}, {pipeline_mode = #tpu.pipeline_mode<synchronous>, transform_indices = @transform_5, window_bounds = array<i64: 32, 32>}, {pipeline_mode = #tpu.pipeline_mode<synchronous>, transform_indices = @transform_6, window_bounds = array<i64: 1, 32>}, {pipeline_mode = #tpu.pipeline_mode<synchronous>, transform_indices = @transform_7, window_bounds = array<i64: 32, 128>}, {pipeline_mode = #tpu.pipeline_mode<synchronous>, transform_indices = @transform_8, window_bounds = array<i64: 1, 128>}, {pipeline_mode = #tpu.pipeline_mode<synchronous>, transform_indices = @transform_9, window_bounds = array<i64: 128, 32>}, {pipeline_mode = #tpu.pipeline_mode<synchronous>, transform_indices = @transform_10, window_bounds = array<i64: 1, 32>}, {pipeline_mode = #tpu.pipeline_mode<synchronous>, transform_indices = @transform_11, window_bounds = array<i64: 1, 32>}, {pipeline_mode = #tpu.pipeline_mode<synchronous>, transform_indices = @transform_12, window_bounds = array<i64: 1, 32>}, {pipeline_mode = #tpu.pipeline_mode<synchronous>, transform_indices = @transform_13, window_bounds = array<i64: 1, 32>}, {pipeline_mode = #tpu.pipeline_mode<synchronous>, transform_indices = @transform_14, window_bounds = array<i64: 1, 32>}, {transform_indices = @transform_15, window_bounds = array<i64: 1, 8, 32>}]} {
    %c0_i32 = arith.constant 0 : i32
    %0 = arith.cmpi eq, %arg1, %c0_i32 : i32
    %1 = arith.extui %0 : i1 to i32
    %c0_i32_0 = arith.constant 0 : i32
    %2 = arith.cmpi ne, %1, %c0_i32_0 : i32
    scf.if %2 {
      %c0_88 = arith.constant 0 : index
      %c0_89 = arith.constant 0 : index
      %c0_90 = arith.constant 0 : index
      %190 = vector.load %arg2[%c0_88, %c0_89, %c0_90] : memref<1x8x32xf32, #tpu.memory_space<vmem>>, vector<1x8x32xf32>
      %191 = vector.shape_cast %190 : vector<1x8x32xf32> to vector<8x32xf32>
      %c0_91 = arith.constant 0 : index
      %c0_92 = arith.constant 0 : index
      %192 = vector.load %arg5[%c0_91, %c0_92] : memref<32x32xf32, #tpu.memory_space<vmem>>, vector<32x32xf32>
      %cst_93 = arith.constant dense<0.000000e+00> : vector<8x32xf32>
      %193 = tpu.matmul %191, %192, %cst_93 {dimension_numbers = #tpu.dot_dimension_numbers<[1], [0], [0], [1], [0, 0, 1, 1], [], []>} : vector<8x32xf32>, vector<32x32xf32>, vector<8x32xf32> -> vector<8x32xf32>
      %c0_94 = arith.constant 0 : index
      %c0_95 = arith.constant 0 : index
      %194 = vector.load %arg18[%c0_94, %c0_95] : memref<8x32xf32, #tpu.memory_space<vmem>>, vector<8x32xf32>
      tpu.vector_store %arg18[%c0_94, %c0_95], %193 {strides = array<i32>} : memref<8x32xf32, #tpu.memory_space<vmem>>, vector<8x32xf32>,
      %c0_96 = arith.constant 0 : index
      %c0_97 = arith.constant 0 : index
      %195 = vector.load %arg6[%c0_96, %c0_97] : memref<32x32xf32, #tpu.memory_space<vmem>>, vector<32x32xf32>
      %cst_98 = arith.constant dense<0.000000e+00> : vector<8x32xf32>
      %196 = tpu.matmul %191, %195, %cst_98 {dimension_numbers = #tpu.dot_dimension_numbers<[1], [0], [0], [1], [0, 0, 1, 1], [], []>} : vector<8x32xf32>, vector<32x32xf32>, vector<8x32xf32> -> vector<8x32xf32>
      %c0_99 = arith.constant 0 : index
      %c0_100 = arith.constant 0 : index
      %197 = vector.load %arg19[%c0_99, %c0_100] : memref<8x32xf32, #tpu.memory_space<vmem>>, vector<8x32xf32>
      tpu.vector_store %arg19[%c0_99, %c0_100], %196 {strides = array<i32>} : memref<8x32xf32, #tpu.memory_space<vmem>>, vector<8x32xf32>,
    } else {
    }
    %c0 = arith.constant 0 : index
    %c0_1 = arith.constant 0 : index
    %c0_2 = arith.constant 0 : index
    %3 = vector.load %arg3[%c0, %c0_1, %c0_2] : memref<1x8x32xf32, #tpu.memory_space<vmem>>, vector<1x8x32xf32>
    %4 = vector.shape_cast %3 : vector<1x8x32xf32> to vector<8x32xf32>
    %c0_3 = arith.constant 0 : index
    %c0_4 = arith.constant 0 : index
    %5 = vector.load %arg4[%c0_3, %c0_4] : memref<32x32xf32, #tpu.memory_space<vmem>>, vector<32x32xf32>
    %cst = arith.constant dense<0.000000e+00> : vector<8x32xf32>
    %6 = tpu.matmul %4, %5, %cst {dimension_numbers = #tpu.dot_dimension_numbers<[1], [0], [0], [1], [0, 0, 1, 1], [], []>} : vector<8x32xf32>, vector<32x32xf32>, vector<8x32xf32> -> vector<8x32xf32>
    %c0_5 = arith.constant 0 : index
    %c0_6 = arith.constant 0 : index
    %7 = vector.load %arg18[%c0_5, %c0_6] : memref<8x32xf32, #tpu.memory_space<vmem>>, vector<8x32xf32>
    %c0_7 = arith.constant 0 : index
    %c0_8 = arith.constant 0 : index
    %8 = vector.load %arg19[%c0_7, %c0_8] : memref<8x32xf32, #tpu.memory_space<vmem>>, vector<8x32xf32>
    %9 = vector.extract_strided_slice %6 {offsets = [0, 0], sizes = [8, 8], strides = [1, 1]} : vector<8x32xf32> to vector<8x8xf32>
    %10 = vector.extract_strided_slice %7 {offsets = [0, 0], sizes = [8, 8], strides = [1, 1]} : vector<8x32xf32> to vector<8x8xf32>
    %11 = vector.extract_strided_slice %8 {offsets = [0, 0], sizes = [8, 8], strides = [1, 1]} : vector<8x32xf32> to vector<8x8xf32>
    %cst_9 = arith.constant dense<0.000000e+00> : vector<8x8xf32>
    %12 = tpu.matmul %9, %10, %cst_9 {dimension_numbers = #tpu.dot_dimension_numbers<[1], [1], [0], [0], [0, 0, 1, 0], [], []>} : vector<8x8xf32>, vector<8x8xf32>, vector<8x8xf32> -> vector<8x8xf32>
    %cst_10 = arith.constant dense<0xFF800000> : vector<8xf32>
    %13 = vector.multi_reduction <maximumf>, %12, %cst_10 [1] : vector<8x8xf32> to vector<8xf32>
    %14 = vector.shape_cast %13 : vector<8xf32> to vector<8x1xf32>
    %15 = vector.broadcast %14 : vector<8x1xf32> to vector<8x8xf32>
    %16 = arith.subf %12, %15 : vector<8x8xf32>
    %17 = math.exp %16 : vector<8x8xf32>
    %cst_11 = arith.constant dense<0.000000e+00> : vector<8xf32>
    %18 = vector.multi_reduction <add>, %17, %cst_11 [1] : vector<8x8xf32> to vector<8xf32>
    %19 = vector.shape_cast %18 : vector<8xf32> to vector<8x1xf32>
    %20 = tpu.reciprocal %19 : vector<8x1xf32> -> vector<8x1xf32>
    %21 = vector.broadcast %20 : vector<8x1xf32> to vector<8x8xf32>
    %22 = arith.mulf %17, %21 : vector<8x8xf32>
    %cst_12 = arith.constant dense<0.000000e+00> : vector<8x8xf32>
    %23 = tpu.matmul %22, %11, %cst_12 {dimension_numbers = #tpu.dot_dimension_numbers<[1], [0], [0], [1], [0, 0, 1, 1], [], []>} : vector<8x8xf32>, vector<8x8xf32>, vector<8x8xf32> -> vector<8x8xf32>
    %c0_13 = arith.constant 0 : index
    %c0_14 = arith.constant 0 : index
    %24 = vector.load %arg20[%c0_13, %c0_14] : memref<8x32xf32, #tpu.memory_space<vmem>>, vector<8x8xf32>
    tpu.vector_store %arg20[%c0_13, %c0_14], %23 {strides = array<i32>} : memref<8x32xf32, #tpu.memory_space<vmem>>, vector<8x8xf32>,
    %25 = vector.extract_strided_slice %6 {offsets = [0, 8], sizes = [8, 8], strides = [1, 1]} : vector<8x32xf32> to vector<8x8xf32>
    %26 = vector.extract_strided_slice %7 {offsets = [0, 8], sizes = [8, 8], strides = [1, 1]} : vector<8x32xf32> to vector<8x8xf32>
    %27 = vector.extract_strided_slice %8 {offsets = [0, 8], sizes = [8, 8], strides = [1, 1]} : vector<8x32xf32> to vector<8x8xf32>
    %cst_15 = arith.constant dense<0.000000e+00> : vector<8x8xf32>
    %28 = tpu.matmul %25, %26, %cst_15 {dimension_numbers = #tpu.dot_dimension_numbers<[1], [1], [0], [0], [0, 0, 1, 0], [], []>} : vector<8x8xf32>, vector<8x8xf32>, vector<8x8xf32> -> vector<8x8xf32>
    %cst_16 = arith.constant dense<0xFF800000> : vector<8xf32>
    %29 = vector.multi_reduction <maximumf>, %28, %cst_16 [1] : vector<8x8xf32> to vector<8xf32>
    %30 = vector.shape_cast %29 : vector<8xf32> to vector<8x1xf32>
    %31 = vector.broadcast %30 : vector<8x1xf32> to vector<8x8xf32>
    %32 = arith.subf %28, %31 : vector<8x8xf32>
    %33 = math.exp %32 : vector<8x8xf32>
    %cst_17 = arith.constant dense<0.000000e+00> : vector<8xf32>
    %34 = vector.multi_reduction <add>, %33, %cst_17 [1] : vector<8x8xf32> to vector<8xf32>
    %35 = vector.shape_cast %34 : vector<8xf32> to vector<8x1xf32>
    %36 = tpu.reciprocal %35 : vector<8x1xf32> -> vector<8x1xf32>
    %37 = vector.broadcast %36 : vector<8x1xf32> to vector<8x8xf32>
    %38 = arith.mulf %33, %37 : vector<8x8xf32>
    %cst_18 = arith.constant dense<0.000000e+00> : vector<8x8xf32>
    %39 = tpu.matmul %38, %27, %cst_18 {dimension_numbers = #tpu.dot_dimension_numbers<[1], [0], [0], [1], [0, 0, 1, 1], [], []>} : vector<8x8xf32>, vector<8x8xf32>, vector<8x8xf32> -> vector<8x8xf32>
    %c0_19 = arith.constant 0 : index
    %c8 = arith.constant 8 : index
    %40 = vector.load %arg20[%c0_19, %c8] : memref<8x32xf32, #tpu.memory_space<vmem>>, vector<8x8xf32>
    tpu.vector_store %arg20[%c0_19, %c8], %39 {strides = array<i32>} : memref<8x32xf32, #tpu.memory_space<vmem>>, vector<8x8xf32>,
    %41 = vector.extract_strided_slice %6 {offsets = [0, 16], sizes = [8, 8], strides = [1, 1]} : vector<8x32xf32> to vector<8x8xf32>
    %42 = vector.extract_strided_slice %7 {offsets = [0, 16], sizes = [8, 8], strides = [1, 1]} : vector<8x32xf32> to vector<8x8xf32>
    %43 = vector.extract_strided_slice %8 {offsets = [0, 16], sizes = [8, 8], strides = [1, 1]} : vector<8x32xf32> to vector<8x8xf32>
    %cst_20 = arith.constant dense<0.000000e+00> : vector<8x8xf32>
    %44 = tpu.matmul %41, %42, %cst_20 {dimension_numbers = #tpu.dot_dimension_numbers<[1], [1], [0], [0], [0, 0, 1, 0], [], []>} : vector<8x8xf32>, vector<8x8xf32>, vector<8x8xf32> -> vector<8x8xf32>
    %cst_21 = arith.constant dense<0xFF800000> : vector<8xf32>
    %45 = vector.multi_reduction <maximumf>, %44, %cst_21 [1] : vector<8x8xf32> to vector<8xf32>
    %46 = vector.shape_cast %45 : vector<8xf32> to vector<8x1xf32>
    %47 = vector.broadcast %46 : vector<8x1xf32> to vector<8x8xf32>
    %48 = arith.subf %44, %47 : vector<8x8xf32>
    %49 = math.exp %48 : vector<8x8xf32>
    %cst_22 = arith.constant dense<0.000000e+00> : vector<8xf32>
    %50 = vector.multi_reduction <add>, %49, %cst_22 [1] : vector<8x8xf32> to vector<8xf32>
    %51 = vector.shape_cast %50 : vector<8xf32> to vector<8x1xf32>
    %52 = tpu.reciprocal %51 : vector<8x1xf32> -> vector<8x1xf32>
    %53 = vector.broadcast %52 : vector<8x1xf32> to vector<8x8xf32>
    %54 = arith.mulf %49, %53 : vector<8x8xf32>
    %cst_23 = arith.constant dense<0.000000e+00> : vector<8x8xf32>
    %55 = tpu.matmul %54, %43, %cst_23 {dimension_numbers = #tpu.dot_dimension_numbers<[1], [0], [0], [1], [0, 0, 1, 1], [], []>} : vector<8x8xf32>, vector<8x8xf32>, vector<8x8xf32> -> vector<8x8xf32>
    %c0_24 = arith.constant 0 : index
    %c16 = arith.constant 16 : index
    %56 = vector.load %arg20[%c0_24, %c16] : memref<8x32xf32, #tpu.memory_space<vmem>>, vector<8x8xf32>
    tpu.vector_store %arg20[%c0_24, %c16], %55 {strides = array<i32>} : memref<8x32xf32, #tpu.memory_space<vmem>>, vector<8x8xf32>,
    %57 = vector.extract_strided_slice %6 {offsets = [0, 24], sizes = [8, 8], strides = [1, 1]} : vector<8x32xf32> to vector<8x8xf32>
    %58 = vector.extract_strided_slice %7 {offsets = [0, 24], sizes = [8, 8], strides = [1, 1]} : vector<8x32xf32> to vector<8x8xf32>
    %59 = vector.extract_strided_slice %8 {offsets = [0, 24], sizes = [8, 8], strides = [1, 1]} : vector<8x32xf32> to vector<8x8xf32>
    %cst_25 = arith.constant dense<0.000000e+00> : vector<8x8xf32>
    %60 = tpu.matmul %57, %58, %cst_25 {dimension_numbers = #tpu.dot_dimension_numbers<[1], [1], [0], [0], [0, 0, 1, 0], [], []>} : vector<8x8xf32>, vector<8x8xf32>, vector<8x8xf32> -> vector<8x8xf32>
    %cst_26 = arith.constant dense<0xFF800000> : vector<8xf32>
    %61 = vector.multi_reduction <maximumf>, %60, %cst_26 [1] : vector<8x8xf32> to vector<8xf32>
    %62 = vector.shape_cast %61 : vector<8xf32> to vector<8x1xf32>
    %63 = vector.broadcast %62 : vector<8x1xf32> to vector<8x8xf32>
    %64 = arith.subf %60, %63 : vector<8x8xf32>
    %65 = math.exp %64 : vector<8x8xf32>
    %cst_27 = arith.constant dense<0.000000e+00> : vector<8xf32>
    %66 = vector.multi_reduction <add>, %65, %cst_27 [1] : vector<8x8xf32> to vector<8xf32>
    %67 = vector.shape_cast %66 : vector<8xf32> to vector<8x1xf32>
    %68 = tpu.reciprocal %67 : vector<8x1xf32> -> vector<8x1xf32>
    %69 = vector.broadcast %68 : vector<8x1xf32> to vector<8x8xf32>
    %70 = arith.mulf %65, %69 : vector<8x8xf32>
    %cst_28 = arith.constant dense<0.000000e+00> : vector<8x8xf32>
    %71 = tpu.matmul %70, %59, %cst_28 {dimension_numbers = #tpu.dot_dimension_numbers<[1], [0], [0], [1], [0, 0, 1, 1], [], []>} : vector<8x8xf32>, vector<8x8xf32>, vector<8x8xf32> -> vector<8x8xf32>
    %c0_29 = arith.constant 0 : index
    %c24 = arith.constant 24 : index
    %72 = vector.load %arg20[%c0_29, %c24] : memref<8x32xf32, #tpu.memory_space<vmem>>, vector<8x8xf32>
    tpu.vector_store %arg20[%c0_29, %c24], %71 {strides = array<i32>} : memref<8x32xf32, #tpu.memory_space<vmem>>, vector<8x8xf32>,
    %c0_30 = arith.constant 0 : index
    %c0_31 = arith.constant 0 : index
    %73 = vector.load %arg20[%c0_30, %c0_31] : memref<8x32xf32, #tpu.memory_space<vmem>>, vector<8x32xf32>
    %c0_32 = arith.constant 0 : index
    %c0_33 = arith.constant 0 : index
    %74 = vector.load %arg7[%c0_32, %c0_33] : memref<32x32xf32, #tpu.memory_space<vmem>>, vector<32x32xf32>
    %cst_34 = arith.constant dense<0.000000e+00> : vector<8x32xf32>
    %75 = tpu.matmul %73, %74, %cst_34 {dimension_numbers = #tpu.dot_dimension_numbers<[1], [0], [0], [1], [0, 0, 1, 1], [], []>} : vector<8x32xf32>, vector<32x32xf32>, vector<8x32xf32> -> vector<8x32xf32>
    %c0_35 = arith.constant 0 : index
    %c0_36 = arith.constant 0 : index
    %76 = vector.load %arg8[%c0_35, %c0_36] : memref<1x32xf32, #tpu.memory_space<vmem>>, vector<1x32xf32>
    %77 = vector.broadcast %76 : vector<1x32xf32> to vector<8x32xf32>
    %78 = arith.addf %75, %77 : vector<8x32xf32>
    %c0_37 = arith.constant 0 : index
    %c0_38 = arith.constant 0 : index
    %c0_39 = arith.constant 0 : index
    %79 = vector.load %arg3[%c0_37, %c0_38, %c0_39] : memref<1x8x32xf32, #tpu.memory_space<vmem>>, vector<1x8x32xf32>
    %80 = vector.shape_cast %79 : vector<1x8x32xf32> to vector<8x32xf32>
    %81 = arith.addf %78, %80 : vector<8x32xf32>
    %c0_40 = arith.constant 0 : index
    %c0_41 = arith.constant 0 : index
    %82 = vector.load %arg13[%c0_40, %c0_41] : memref<1x32xf32, #tpu.memory_space<vmem>>, vector<1x32xf32>
    %c0_42 = arith.constant 0 : index
    %c0_43 = arith.constant 0 : index
    %83 = vector.load %arg14[%c0_42, %c0_43] : memref<1x32xf32, #tpu.memory_space<vmem>>, vector<1x32xf32>
    %cst_44 = arith.constant dense<0.000000e+00> : vector<8xf32>
    %84 = vector.multi_reduction <add>, %81, %cst_44 [1] : vector<8x32xf32> to vector<8xf32>
    %85 = vector.shape_cast %84 : vector<8xf32> to vector<8x1xf32>
    %cst_45 = arith.constant 3.200000e+01 : f32
    %86 = vector.broadcast %cst_45 : f32 to vector<8x1xf32>
    %87 = arith.divf %85, %86 : vector<8x1xf32>
    %88 = vector.broadcast %87 : vector<8x1xf32> to vector<8x32xf32>
    %89 = arith.subf %81, %88 : vector<8x32xf32>
    %90 = arith.mulf %89, %89 : vector<8x32xf32>
    %cst_46 = arith.constant dense<0.000000e+00> : vector<8xf32>
    %91 = vector.multi_reduction <add>, %90, %cst_46 [1] : vector<8x32xf32> to vector<8xf32>
    %92 = vector.shape_cast %91 : vector<8xf32> to vector<8x1xf32>
    %cst_47 = arith.constant 3.200000e+01 : f32
    %93 = vector.broadcast %cst_47 : f32 to vector<8x1xf32>
    %94 = arith.divf %92, %93 : vector<8x1xf32>
    %95 = vector.broadcast %87 : vector<8x1xf32> to vector<8x32xf32>
    %96 = arith.subf %81, %95 : vector<8x32xf32>
    %cst_48 = arith.constant 9.99999974E-6 : f32
    %97 = vector.broadcast %cst_48 : f32 to vector<8x1xf32>
    %98 = arith.addf %94, %97 : vector<8x1xf32>
    %99 = math.rsqrt %98 : vector<8x1xf32>
    %100 = vector.broadcast %99 : vector<8x1xf32> to vector<8x32xf32>
    %101 = arith.mulf %96, %100 : vector<8x32xf32>
    %102 = vector.broadcast %82 : vector<1x32xf32> to vector<8x32xf32>
    %103 = arith.mulf %101, %102 : vector<8x32xf32>
    %104 = vector.broadcast %83 : vector<1x32xf32> to vector<8x32xf32>
    %105 = arith.addf %103, %104 : vector<8x32xf32>
    %c0_49 = arith.constant 0 : index
    %c0_50 = arith.constant 0 : index
    %106 = vector.load %arg9[%c0_49, %c0_50] : memref<32x128xf32, #tpu.memory_space<vmem>>, vector<32x128xf32>
    %cst_51 = arith.constant dense<0.000000e+00> : vector<8x128xf32>
    %107 = tpu.matmul %105, %106, %cst_51 {dimension_numbers = #tpu.dot_dimension_numbers<[1], [0], [0], [1], [0, 0, 1, 1], [], []>} : vector<8x32xf32>, vector<32x128xf32>, vector<8x128xf32> -> vector<8x128xf32>
    %c0_52 = arith.constant 0 : index
    %c0_53 = arith.constant 0 : index
    %108 = vector.load %arg10[%c0_52, %c0_53] : memref<1x128xf32, #tpu.memory_space<vmem>>, vector<1x128xf32>
    %109 = vector.broadcast %108 : vector<1x128xf32> to vector<8x128xf32>
    %110 = arith.addf %107, %109 : vector<8x128xf32>
    %cst_54 = arith.constant 5.000000e-01 : f32
    %111 = vector.broadcast %cst_54 : f32 to vector<8x128xf32>
    %112 = arith.mulf %111, %110 : vector<8x128xf32>
    %cst_55 = arith.constant 0.707106769 : f32
    %113 = vector.broadcast %cst_55 : f32 to vector<8x128xf32>
    %114 = arith.mulf %110, %113 : vector<8x128xf32>
    %cst_56 = arith.constant -4.000000e+00 : f32
    %cst_57 = arith.constant 4.000000e+00 : f32
    %115 = vector.broadcast %cst_56 : f32 to vector<8x128xf32>
    %116 = arith.maximumf %115, %114 : vector<8x128xf32>
    %117 = vector.broadcast %cst_57 : f32 to vector<8x128xf32>
    %118 = arith.minimumf %117, %116 : vector<8x128xf32>
    %119 = arith.mulf %118, %118 : vector<8x128xf32>
    %cst_58 = arith.constant -2.72614237E-10 : f32
    %120 = vector.broadcast %cst_58 : f32 to vector<8x128xf32>
    %121 = arith.mulf %120, %119 : vector<8x128xf32>
    %cst_59 = arith.constant 2.77068146E-8 : f32
    %122 = vector.broadcast %cst_59 : f32 to vector<8x128xf32>
    %123 = arith.addf %121, %122 : vector<8x128xf32>
    %124 = arith.mulf %123, %119 : vector<8x128xf32>
    %cst_60 = arith.constant -2.10102394E-6 : f32
    %125 = vector.broadcast %cst_60 : f32 to vector<8x128xf32>
    %126 = arith.addf %124, %125 : vector<8x128xf32>
    %127 = arith.mulf %126, %119 : vector<8x128xf32>
    %cst_61 = arith.constant -5.69250624E-5 : f32
    %128 = vector.broadcast %cst_61 : f32 to vector<8x128xf32>
    %129 = arith.addf %127, %128 : vector<8x128xf32>
    %130 = arith.mulf %129, %119 : vector<8x128xf32>
    %cst_62 = arith.constant -7.34990637E-4 : f32
    %131 = vector.broadcast %cst_62 : f32 to vector<8x128xf32>
    %132 = arith.addf %130, %131 : vector<8x128xf32>
    %133 = arith.mulf %132, %119 : vector<8x128xf32>
    %cst_63 = arith.constant -2.954600e-03 : f32
    %134 = vector.broadcast %cst_63 : f32 to vector<8x128xf32>
    %135 = arith.addf %133, %134 : vector<8x128xf32>
    %136 = arith.mulf %135, %119 : vector<8x128xf32>
    %cst_64 = arith.constant -0.0160960332 : f32
    %137 = vector.broadcast %cst_64 : f32 to vector<8x128xf32>
    %138 = arith.addf %136, %137 : vector<8x128xf32>
    %139 = arith.mulf %138, %118 : vector<8x128xf32>
    %cst_65 = arith.constant -1.45660715E-5 : f32
    %140 = vector.broadcast %cst_65 : f32 to vector<8x128xf32>
    %141 = arith.mulf %140, %119 : vector<8x128xf32>
    %cst_66 = arith.constant -2.13374049E-4 : f32
    %142 = vector.broadcast %cst_66 : f32 to vector<8x128xf32>
    %143 = arith.addf %141, %142 : vector<8x128xf32>
    %144 = arith.mulf %143, %119 : vector<8x128xf32>
    %cst_67 = arith.constant -0.00168282702 : f32
    %145 = vector.broadcast %cst_67 : f32 to vector<8x128xf32>
    %146 = arith.addf %144, %145 : vector<8x128xf32>
    %147 = arith.mulf %146, %119 : vector<8x128xf32>
    %cst_68 = arith.constant -0.00737332925 : f32
    %148 = vector.broadcast %cst_68 : f32 to vector<8x128xf32>
    %149 = arith.addf %147, %148 : vector<8x128xf32>
    %150 = arith.mulf %149, %119 : vector<8x128xf32>
    %cst_69 = arith.constant -0.0142647391 : f32
    %151 = vector.broadcast %cst_69 : f32 to vector<8x128xf32>
    %152 = arith.addf %150, %151 : vector<8x128xf32>
    %153 = arith.divf %139, %152 : vector<8x128xf32>
    %cst_70 = arith.constant 1.000000e+00 : f32
    %154 = vector.broadcast %cst_70 : f32 to vector<8x128xf32>
    %155 = arith.addf %154, %153 : vector<8x128xf32>
    %156 = arith.mulf %112, %155 : vector<8x128xf32>
    %c0_71 = arith.constant 0 : index
    %c0_72 = arith.constant 0 : index
    %157 = vector.load %arg11[%c0_71, %c0_72] : memref<128x32xf32, #tpu.memory_space<vmem>>, vector<128x32xf32>
    %cst_73 = arith.constant dense<0.000000e+00> : vector<8x32xf32>
    %158 = tpu.matmul %156, %157, %cst_73 {dimension_numbers = #tpu.dot_dimension_numbers<[1], [0], [0], [1], [0, 0, 1, 1], [], []>} : vector<8x128xf32>, vector<128x32xf32>, vector<8x32xf32> -> vector<8x32xf32>
    %c0_74 = arith.constant 0 : index
    %c0_75 = arith.constant 0 : index
    %159 = vector.load %arg12[%c0_74, %c0_75] : memref<1x32xf32, #tpu.memory_space<vmem>>, vector<1x32xf32>
    %160 = vector.broadcast %159 : vector<1x32xf32> to vector<8x32xf32>
    %161 = arith.addf %158, %160 : vector<8x32xf32>
    %162 = arith.addf %161, %105 : vector<8x32xf32>
    %c0_76 = arith.constant 0 : index
    %c0_77 = arith.constant 0 : index
    %163 = vector.load %arg15[%c0_76, %c0_77] : memref<1x32xf32, #tpu.memory_space<vmem>>, vector<1x32xf32>
    %c0_78 = arith.constant 0 : index
    %c0_79 = arith.constant 0 : index
    %164 = vector.load %arg16[%c0_78, %c0_79] : memref<1x32xf32, #tpu.memory_space<vmem>>, vector<1x32xf32>
    %cst_80 = arith.constant dense<0.000000e+00> : vector<8xf32>
    %165 = vector.multi_reduction <add>, %162, %cst_80 [1] : vector<8x32xf32> to vector<8xf32>
    %166 = vector.shape_cast %165 : vector<8xf32> to vector<8x1xf32>
    %cst_81 = arith.constant 3.200000e+01 : f32
    %167 = vector.broadcast %cst_81 : f32 to vector<8x1xf32>
    %168 = arith.divf %166, %167 : vector<8x1xf32>
    %169 = vector.broadcast %168 : vector<8x1xf32> to vector<8x32xf32>
    %170 = arith.subf %162, %169 : vector<8x32xf32>
    %171 = arith.mulf %170, %170 : vector<8x32xf32>
    %cst_82 = arith.constant dense<0.000000e+00> : vector<8xf32>
    %172 = vector.multi_reduction <add>, %171, %cst_82 [1] : vector<8x32xf32> to vector<8xf32>
    %173 = vector.shape_cast %172 : vector<8xf32> to vector<8x1xf32>
    %cst_83 = arith.constant 3.200000e+01 : f32
    %174 = vector.broadcast %cst_83 : f32 to vector<8x1xf32>
    %175 = arith.divf %173, %174 : vector<8x1xf32>
    %176 = vector.broadcast %168 : vector<8x1xf32> to vector<8x32xf32>
    %177 = arith.subf %162, %176 : vector<8x32xf32>
    %cst_84 = arith.constant 9.99999974E-6 : f32
    %178 = vector.broadcast %cst_84 : f32 to vector<8x1xf32>
    %179 = arith.addf %175, %178 : vector<8x1xf32>
    %180 = math.rsqrt %179 : vector<8x1xf32>
    %181 = vector.broadcast %180 : vector<8x1xf32> to vector<8x32xf32>
    %182 = arith.mulf %177, %181 : vector<8x32xf32>
    %183 = vector.broadcast %163 : vector<1x32xf32> to vector<8x32xf32>
    %184 = arith.mulf %182, %183 : vector<8x32xf32>
    %185 = vector.broadcast %164 : vector<1x32xf32> to vector<8x32xf32>
    %186 = arith.addf %184, %185 : vector<8x32xf32>
    %c0_85 = arith.constant 0 : index
    %c0_86 = arith.constant 0 : index
    %c0_87 = arith.constant 0 : index
    %187 = vector.load %arg17[%c0_85, %c0_86, %c0_87] : memref<1x8x32xf32, #tpu.memory_space<vmem>>, vector<1x8x32xf32>
    %188 = vector.shape_cast %187 : vector<1x8x32xf32> to vector<8x32xf32>
    %189 = vector.shape_cast %186 : vector<8x32xf32> to vector<1x8x32xf32>
    tpu.vector_store %arg17[%c0_85, %c0_86, %c0_87], %189 {strides = array<i32>} : memref<1x8x32xf32, #tpu.memory_space<vmem>>, vector<1x8x32xf32>,
    return
  }
  func.func @transform_0(%arg0: i32, %arg1: i32) -> (i32, i32, i32) {
    %c0_i32 = arith.constant 0 : i32
    %c0_i32_0 = arith.constant 0 : i32
    %c0_i32_1 = arith.constant 0 : i32
    return %arg0, %c0_i32, %c0_i32_0 : i32, i32, i32
  }
  func.func @transform_1(%arg0: i32, %arg1: i32) -> (i32, i32, i32) {
    %c0_i32 = arith.constant 0 : i32
    %c0_i32_0 = arith.constant 0 : i32
    return %arg0, %arg1, %c0_i32 : i32, i32, i32
  }
  func.func @transform_2(%arg0: i32, %arg1: i32) -> (i32, i32) {
    %c0_i32 = arith.constant 0 : i32
    %c0_i32_0 = arith.constant 0 : i32
    %c0_i32_1 = arith.constant 0 : i32
    return %c0_i32, %c0_i32_0 : i32, i32
  }
  func.func @transform_3(%arg0: i32, %arg1: i32) -> (i32, i32) {
    %c0_i32 = arith.constant 0 : i32
    %c0_i32_0 = arith.constant 0 : i32
    %c0_i32_1 = arith.constant 0 : i32
    return %c0_i32, %c0_i32_0 : i32, i32
  }
  func.func @transform_4(%arg0: i32, %arg1: i32) -> (i32, i32) {
    %c0_i32 = arith.constant 0 : i32
    %c0_i32_0 = arith.constant 0 : i32
    %c0_i32_1 = arith.constant 0 : i32
    return %c0_i32, %c0_i32_0 : i32, i32
  }
  func.func @transform_5(%arg0: i32, %arg1: i32) -> (i32, i32) {
    %c0_i32 = arith.constant 0 : i32
    %c0_i32_0 = arith.constant 0 : i32
    %c0_i32_1 = arith.constant 0 : i32
    return %c0_i32, %c0_i32_0 : i32, i32
  }
  func.func @transform_6(%arg0: i32, %arg1: i32) -> (i32, i32) {
    %c0_i32 = arith.constant 0 : i32
    %c0_i32_0 = arith.constant 0 : i32
    %c0_i32_1 = arith.constant 0 : i32
    return %c0_i32, %c0_i32_0 : i32, i32
  }
  func.func @transform_7(%arg0: i32, %arg1: i32) -> (i32, i32) {
    %c0_i32 = arith.constant 0 : i32
    %c0_i32_0 = arith.constant 0 : i32
    %c0_i32_1 = arith.constant 0 : i32
    return %c0_i32, %c0_i32_0 : i32, i32
  }
  func.func @transform_8(%arg0: i32, %arg1: i32) -> (i32, i32) {
    %c0_i32 = arith.constant 0 : i32
    %c0_i32_0 = arith.constant 0 : i32
    %c0_i32_1 = arith.constant 0 : i32
    return %c0_i32, %c0_i32_0 : i32, i32
  }
  func.func @transform_9(%arg0: i32, %arg1: i32) -> (i32, i32) {
    %c0_i32 = arith.constant 0 : i32
    %c0_i32_0 = arith.constant 0 : i32
    %c0_i32_1 = arith.constant 0 : i32
    return %c0_i32, %c0_i32_0 : i32, i32
  }
  func.func @transform_10(%arg0: i32, %arg1: i32) -> (i32, i32) {
    %c0_i32 = arith.constant 0 : i32
    %c0_i32_0 = arith.constant 0 : i32
    %c0_i32_1 = arith.constant 0 : i32
    return %c0_i32, %c0_i32_0 : i32, i32
  }
  func.func @transform_11(%arg0: i32, %arg1: i32) -> (i32, i32) {
    %c0_i32 = arith.constant 0 : i32
    %c0_i32_0 = arith.constant 0 : i32
    %c0_i32_1 = arith.constant 0 : i32
    return %c0_i32, %c0_i32_0 : i32, i32
  }
  func.func @transform_12(%arg0: i32, %arg1: i32) -> (i32, i32) {
    %c0_i32 = arith.constant 0 : i32
    %c0_i32_0 = arith.constant 0 : i32
    %c0_i32_1 = arith.constant 0 : i32
    return %c0_i32, %c0_i32_0 : i32, i32
  }
  func.func @transform_13(%arg0: i32, %arg1: i32) -> (i32, i32) {
    %c0_i32 = arith.constant 0 : i32
    %c0_i32_0 = arith.constant 0 : i32
    %c0_i32_1 = arith.constant 0 : i32
    return %c0_i32, %c0_i32_0 : i32, i32
  }
  func.func @transform_14(%arg0: i32, %arg1: i32) -> (i32, i32) {
    %c0_i32 = arith.constant 0 : i32
    %c0_i32_0 = arith.constant 0 : i32
    %c0_i32_1 = arith.constant 0 : i32
    return %c0_i32, %c0_i32_0 : i32, i32
  }
  func.func @transform_15(%arg0: i32, %arg1: i32) -> (i32, i32, i32) {
    %c0_i32 = arith.constant 0 : i32
    %c0_i32_0 = arith.constant 0 : i32
    return %arg0, %arg1, %c0_i32 : i32, i32, i32
  }
}

module attributes {stable_mosaic.version = 11 : i64} {
  func.func @attention_block_kernel(%arg0: i32, %arg1: i32, %arg2: memref<1x8x32xf32, #tpu.memory_space<vmem>>, %arg3: memref<1x8x32xf32, #tpu.memory_space<vmem>>, %arg4: memref<32x32xf32, #tpu.memory_space<vmem>>, %arg5: memref<32x32xf32, #tpu.memory_space<vmem>>, %arg6: memref<32x32xf32, #tpu.memory_space<vmem>>, %arg7: memref<32x32xf32, #tpu.memory_space<vmem>>, %arg8: memref<1x32xf32, #tpu.memory_space<vmem>>, %arg9: memref<32x128xf32, #tpu.memory_space<vmem>>, %arg10: memref<1x128xf32, #tpu.memory_space<vmem>>, %arg11: memref<128x32xf32, #tpu.memory_space<vmem>>, %arg12: memref<1x32xf32, #tpu.memory_space<vmem>>, %arg13: memref<1x32xf32, #tpu.memory_space<vmem>>, %arg14: memref<1x32xf32, #tpu.memory_space<vmem>>, %arg15: memref<1x32xf32, #tpu.memory_space<vmem>>, %arg16: memref<1x32xf32, #tpu.memory_space<vmem>>, %arg17: memref<1x8x32xf32, #tpu.memory_space<vmem>>, %arg18: memref<8x32xf32, #tpu.memory_space<vmem>>, %arg19: memref<8x32xf32, #tpu.memory_space<vmem>>, %arg20: memref<8x32xf32, #tpu.memory_space<vmem>>) attributes {dimension_semantics = [#tpu.dimension_semantics<parallel>, #tpu.dimension_semantics<arbitrary>], iteration_bounds = array<i64: 2, 1>, scalar_prefetch = 0 : i64, scratch_operands = 3 : i64, tpu.core_type = #tpu.core_type<tc>, window_params = [{transform_indices = @transform_0, window_bounds = array<i64: 1, 8, 32>}, {transform_indices = @transform_1, window_bounds = array<i64: 1, 8, 32>}, {pipeline_mode = #tpu.pipeline_mode<synchronous>, transform_indices = @transform_2, window_bounds = array<i64: 32, 32>}, {pipeline_mode = #tpu.pipeline_mode<synchronous>, transform_indices = @transform_3, window_bounds = array<i64: 32, 32>}, {pipeline_mode = #tpu.pipeline_mode<synchronous>, transform_indices = @transform_4, window_bounds = array<i64: 32, 32>}, {pipeline_mode = #tpu.pipeline_mode<synchronous>, transform_indices = @transform_5, window_bounds = array<i64: 32, 32>}, {pipeline_mode = #tpu.pipeline_mode<synchronous>, transform_indices = @transform_6, window_bounds = array<i64: 1, 32>}, {pipeline_mode = #tpu.pipeline_mode<synchronous>, transform_indices = @transform_7, window_bounds = array<i64: 32, 128>}, {pipeline_mode = #tpu.pipeline_mode<synchronous>, transform_indices = @transform_8, window_bounds = array<i64: 1, 128>}, {pipeline_mode = #tpu.pipeline_mode<synchronous>, transform_indices = @transform_9, window_bounds = array<i64: 128, 32>}, {pipeline_mode = #tpu.pipeline_mode<synchronous>, transform_indices = @transform_10, window_bounds = array<i64: 1, 32>}, {pipeline_mode = #tpu.pipeline_mode<synchronous>, transform_indices = @transform_11, window_bounds = array<i64: 1, 32>}, {pipeline_mode = #tpu.pipeline_mode<synchronous>, transform_indices = @transform_12, window_bounds = array<i64: 1, 32>}, {pipeline_mode = #tpu.pipeline_mode<synchronous>, transform_indices = @transform_13, window_bounds = array<i64: 1, 32>}, {pipeline_mode = #tpu.pipeline_mode<synchronous>, transform_indices = @transform_14, window_bounds = array<i64: 1, 32>}, {transform_indices = @transform_15, window_bounds = array<i64: 1, 8, 32>}]} {
    %c0_i32 = arith.constant 0 : i32
    %0 = arith.cmpi eq, %arg1, %c0_i32 : i32
    %1 = arith.extui %0 : i1 to i32
    %c0_i32_0 = arith.constant 0 : i32
    %2 = arith.cmpi ne, %1, %c0_i32_0 : i32
    scf.if %2 {
      %c0_88 = arith.constant 0 : index
      %c0_89 = arith.constant 0 : index
      %c0_90 = arith.constant 0 : index
      %190 = vector.load %arg2[%c0_88, %c0_89, %c0_90] : memref<1x8x32xf32, #tpu.memory_space<vmem>>, vector<1x8x32xf32>
      %191 = vector.shape_cast %190 : vector<1x8x32xf32> to vector<8x32xf32>
      %c0_91 = arith.constant 0 : index
      %c0_92 = arith.constant 0 : index
      %192 = vector.load %arg5[%c0_91, %c0_92] : memref<32x32xf32, #tpu.memory_space<vmem>>, vector<32x32xf32>
      %cst_93 = arith.constant dense<0.000000e+00> : vector<8x32xf32>
      %193 = tpu.matmul %191, %192, %cst_93 {dimension_numbers = #tpu.dot_dimension_numbers<[1], [0], [0], [1], [0, 0, 1, 1], [], []>} : vector<8x32xf32>, vector<32x32xf32>, vector<8x32xf32> -> vector<8x32xf32>
      %c0_94 = arith.constant 0 : index
      %c0_95 = arith.constant 0 : index
      %194 = vector.load %arg18[%c0_94, %c0_95] : memref<8x32xf32, #tpu.memory_space<vmem>>, vector<8x32xf32>
      tpu.vector_store %arg18[%c0_94, %c0_95], %193 {strides = array<i32>} : memref<8x32xf32, #tpu.memory_space<vmem>>, vector<8x32xf32>,
      %c0_96 = arith.constant 0 : index
      %c0_97 = arith.constant 0 : index
      %195 = vector.load %arg6[%c0_96, %c0_97] : memref<32x32xf32, #tpu.memory_space<vmem>>, vector<32x32xf32>
      %cst_98 = arith.constant dense<0.000000e+00> : vector<8x32xf32>
      %196 = tpu.matmul %191, %195, %cst_98 {dimension_numbers = #tpu.dot_dimension_numbers<[1], [0], [0], [1], [0, 0, 1, 1], [], []>} : vector<8x32xf32>, vector<32x32xf32>, vector<8x32xf32> -> vector<8x32xf32>
      %c0_99 = arith.constant 0 : index
      %c0_100 = arith.constant 0 : index
      %197 = vector.load %arg19[%c0_99, %c0_100] : memref<8x32xf32, #tpu.memory_space<vmem>>, vector<8x32xf32>
      tpu.vector_store %arg19[%c0_99, %c0_100], %196 {strides = array<i32>} : memref<8x32xf32, #tpu.memory_space<vmem>>, vector<8x32xf32>,
    } else {
    }
    %c0 = arith.constant 0 : index
    %c0_1 = arith.constant 0 : index
    %c0_2 = arith.constant 0 : index
    %3 = vector.load %arg3[%c0, %c0_1, %c0_2] : memref<1x8x32xf32, #tpu.memory_space<vmem>>, vector<1x8x32xf32>
    %4 = vector.shape_cast %3 : vector<1x8x32xf32> to vector<8x32xf32>
    %c0_3 = arith.constant 0 : index
    %c0_4 = arith.constant 0 : index
    %5 = vector.load %arg4[%c0_3, %c0_4] : memref<32x32xf32, #tpu.memory_space<vmem>>, vector<32x32xf32>
    %cst = arith.constant dense<0.000000e+00> : vector<8x32xf32>
    %6 = tpu.matmul %4, %5, %cst {dimension_numbers = #tpu.dot_dimension_numbers<[1], [0], [0], [1], [0, 0, 1, 1], [], []>} : vector<8x32xf32>, vector<32x32xf32>, vector<8x32xf32> -> vector<8x32xf32>
    %c0_5 = arith.constant 0 : index
    %c0_6 = arith.constant 0 : index
    %7 = vector.load %arg18[%c0_5, %c0_6] : memref<8x32xf32, #tpu.memory_space<vmem>>, vector<8x32xf32>
    %c0_7 = arith.constant 0 : index
    %c0_8 = arith.constant 0 : index
    %8 = vector.load %arg19[%c0_7, %c0_8] : memref<8x32xf32, #tpu.memory_space<vmem>>, vector<8x32xf32>
    %9 = vector.extract_strided_slice %6 {offsets = [0, 0], sizes = [8, 8], strides = [1, 1]} : vector<8x32xf32> to vector<8x8xf32>
    %10 = vector.extract_strided_slice %7 {offsets = [0, 0], sizes = [8, 8], strides = [1, 1]} : vector<8x32xf32> to vector<8x8xf32>
    %11 = vector.extract_strided_slice %8 {offsets = [0, 0], sizes = [8, 8], strides = [1, 1]} : vector<8x32xf32> to vector<8x8xf32>
    %cst_9 = arith.constant dense<0.000000e+00> : vector<8x8xf32>
    %12 = tpu.matmul %9, %10, %cst_9 {dimension_numbers = #tpu.dot_dimension_numbers<[1], [1], [0], [0], [0, 0, 1, 0], [], []>} : vector<8x8xf32>, vector<8x8xf32>, vector<8x8xf32> -> vector<8x8xf32>
    %cst_10 = arith.constant dense<0xFF800000> : vector<8xf32>
    %13 = vector.multi_reduction <maximumf>, %12, %cst_10 [1] : vector<8x8xf32> to vector<8xf32>
    %14 = vector.shape_cast %13 : vector<8xf32> to vector<8x1xf32>
    %15 = vector.broadcast %14 : vector<8x1xf32> to vector<8x8xf32>
    %16 = arith.subf %12, %15 : vector<8x8xf32>
    %17 = math.exp %16 : vector<8x8xf32>
    %cst_11 = arith.constant dense<0.000000e+00> : vector<8xf32>
    %18 = vector.multi_reduction <add>, %17, %cst_11 [1] : vector<8x8xf32> to vector<8xf32>
    %19 = vector.shape_cast %18 : vector<8xf32> to vector<8x1xf32>
    %20 = tpu.reciprocal %19 : vector<8x1xf32> -> vector<8x1xf32>
    %21 = vector.broadcast %20 : vector<8x1xf32> to vector<8x8xf32>
    %22 = arith.mulf %17, %21 : vector<8x8xf32>
    %cst_12 = arith.constant dense<0.000000e+00> : vector<8x8xf32>
    %23 = tpu.matmul %22, %11, %cst_12 {dimension_numbers = #tpu.dot_dimension_numbers<[1], [0], [0], [1], [0, 0, 1, 1], [], []>} : vector<8x8xf32>, vector<8x8xf32>, vector<8x8xf32> -> vector<8x8xf32>
    %c0_13 = arith.constant 0 : index
    %c0_14 = arith.constant 0 : index
    %24 = vector.load %arg20[%c0_13, %c0_14] : memref<8x32xf32, #tpu.memory_space<vmem>>, vector<8x8xf32>
    tpu.vector_store %arg20[%c0_13, %c0_14], %23 {strides = array<i32>} : memref<8x32xf32, #tpu.memory_space<vmem>>, vector<8x8xf32>,
    %25 = vector.extract_strided_slice %6 {offsets = [0, 8], sizes = [8, 8], strides = [1, 1]} : vector<8x32xf32> to vector<8x8xf32>
    %26 = vector.extract_strided_slice %7 {offsets = [0, 8], sizes = [8, 8], strides = [1, 1]} : vector<8x32xf32> to vector<8x8xf32>
    %27 = vector.extract_strided_slice %8 {offsets = [0, 8], sizes = [8, 8], strides = [1, 1]} : vector<8x32xf32> to vector<8x8xf32>
    %cst_15 = arith.constant dense<0.000000e+00> : vector<8x8xf32>
    %28 = tpu.matmul %25, %26, %cst_15 {dimension_numbers = #tpu.dot_dimension_numbers<[1], [1], [0], [0], [0, 0, 1, 0], [], []>} : vector<8x8xf32>, vector<8x8xf32>, vector<8x8xf32> -> vector<8x8xf32>
    %cst_16 = arith.constant dense<0xFF800000> : vector<8xf32>
    %29 = vector.multi_reduction <maximumf>, %28, %cst_16 [1] : vector<8x8xf32> to vector<8xf32>
    %30 = vector.shape_cast %29 : vector<8xf32> to vector<8x1xf32>
    %31 = vector.broadcast %30 : vector<8x1xf32> to vector<8x8xf32>
    %32 = arith.subf %28, %31 : vector<8x8xf32>
    %33 = math.exp %32 : vector<8x8xf32>
    %cst_17 = arith.constant dense<0.000000e+00> : vector<8xf32>
    %34 = vector.multi_reduction <add>, %33, %cst_17 [1] : vector<8x8xf32> to vector<8xf32>
    %35 = vector.shape_cast %34 : vector<8xf32> to vector<8x1xf32>
    %36 = tpu.reciprocal %35 : vector<8x1xf32> -> vector<8x1xf32>
    %37 = vector.broadcast %36 : vector<8x1xf32> to vector<8x8xf32>
    %38 = arith.mulf %33, %37 : vector<8x8xf32>
    %cst_18 = arith.constant dense<0.000000e+00> : vector<8x8xf32>
    %39 = tpu.matmul %38, %27, %cst_18 {dimension_numbers = #tpu.dot_dimension_numbers<[1], [0], [0], [1], [0, 0, 1, 1], [], []>} : vector<8x8xf32>, vector<8x8xf32>, vector<8x8xf32> -> vector<8x8xf32>
    %c0_19 = arith.constant 0 : index
    %c8 = arith.constant 8 : index
    %40 = vector.load %arg20[%c0_19, %c8] : memref<8x32xf32, #tpu.memory_space<vmem>>, vector<8x8xf32>
    tpu.vector_store %arg20[%c0_19, %c8], %39 {strides = array<i32>} : memref<8x32xf32, #tpu.memory_space<vmem>>, vector<8x8xf32>,
    %41 = vector.extract_strided_slice %6 {offsets = [0, 16], sizes = [8, 8], strides = [1, 1]} : vector<8x32xf32> to vector<8x8xf32>
    %42 = vector.extract_strided_slice %7 {offsets = [0, 16], sizes = [8, 8], strides = [1, 1]} : vector<8x32xf32> to vector<8x8xf32>
    %43 = vector.extract_strided_slice %8 {offsets = [0, 16], sizes = [8, 8], strides = [1, 1]} : vector<8x32xf32> to vector<8x8xf32>
    %cst_20 = arith.constant dense<0.000000e+00> : vector<8x8xf32>
    %44 = tpu.matmul %41, %42, %cst_20 {dimension_numbers = #tpu.dot_dimension_numbers<[1], [1], [0], [0], [0, 0, 1, 0], [], []>} : vector<8x8xf32>, vector<8x8xf32>, vector<8x8xf32> -> vector<8x8xf32>
    %cst_21 = arith.constant dense<0xFF800000> : vector<8xf32>
    %45 = vector.multi_reduction <maximumf>, %44, %cst_21 [1] : vector<8x8xf32> to vector<8xf32>
    %46 = vector.shape_cast %45 : vector<8xf32> to vector<8x1xf32>
    %47 = vector.broadcast %46 : vector<8x1xf32> to vector<8x8xf32>
    %48 = arith.subf %44, %47 : vector<8x8xf32>
    %49 = math.exp %48 : vector<8x8xf32>
    %cst_22 = arith.constant dense<0.000000e+00> : vector<8xf32>
    %50 = vector.multi_reduction <add>, %49, %cst_22 [1] : vector<8x8xf32> to vector<8xf32>
    %51 = vector.shape_cast %50 : vector<8xf32> to vector<8x1xf32>
    %52 = tpu.reciprocal %51 : vector<8x1xf32> -> vector<8x1xf32>
    %53 = vector.broadcast %52 : vector<8x1xf32> to vector<8x8xf32>
    %54 = arith.mulf %49, %53 : vector<8x8xf32>
    %cst_23 = arith.constant dense<0.000000e+00> : vector<8x8xf32>
    %55 = tpu.matmul %54, %43, %cst_23 {dimension_numbers = #tpu.dot_dimension_numbers<[1], [0], [0], [1], [0, 0, 1, 1], [], []>} : vector<8x8xf32>, vector<8x8xf32>, vector<8x8xf32> -> vector<8x8xf32>
    %c0_24 = arith.constant 0 : index
    %c16 = arith.constant 16 : index
    %56 = vector.load %arg20[%c0_24, %c16] : memref<8x32xf32, #tpu.memory_space<vmem>>, vector<8x8xf32>
    tpu.vector_store %arg20[%c0_24, %c16], %55 {strides = array<i32>} : memref<8x32xf32, #tpu.memory_space<vmem>>, vector<8x8xf32>,
    %57 = vector.extract_strided_slice %6 {offsets = [0, 24], sizes = [8, 8], strides = [1, 1]} : vector<8x32xf32> to vector<8x8xf32>
    %58 = vector.extract_strided_slice %7 {offsets = [0, 24], sizes = [8, 8], strides = [1, 1]} : vector<8x32xf32> to vector<8x8xf32>
    %59 = vector.extract_strided_slice %8 {offsets = [0, 24], sizes = [8, 8], strides = [1, 1]} : vector<8x32xf32> to vector<8x8xf32>
    %cst_25 = arith.constant dense<0.000000e+00> : vector<8x8xf32>
    %60 = tpu.matmul %57, %58, %cst_25 {dimension_numbers = #tpu.dot_dimension_numbers<[1], [1], [0], [0], [0, 0, 1, 0], [], []>} : vector<8x8xf32>, vector<8x8xf32>, vector<8x8xf32> -> vector<8x8xf32>
    %cst_26 = arith.constant dense<0xFF800000> : vector<8xf32>
    %61 = vector.multi_reduction <maximumf>, %60, %cst_26 [1] : vector<8x8xf32> to vector<8xf32>
    %62 = vector.shape_cast %61 : vector<8xf32> to vector<8x1xf32>
    %63 = vector.broadcast %62 : vector<8x1xf32> to vector<8x8xf32>
    %64 = arith.subf %60, %63 : vector<8x8xf32>
    %65 = math.exp %64 : vector<8x8xf32>
    %cst_27 = arith.constant dense<0.000000e+00> : vector<8xf32>
    %66 = vector.multi_reduction <add>, %65, %cst_27 [1] : vector<8x8xf32> to vector<8xf32>
    %67 = vector.shape_cast %66 : vector<8xf32> to vector<8x1xf32>
    %68 = tpu.reciprocal %67 : vector<8x1xf32> -> vector<8x1xf32>
    %69 = vector.broadcast %68 : vector<8x1xf32> to vector<8x8xf32>
    %70 = arith.mulf %65, %69 : vector<8x8xf32>
    %cst_28 = arith.constant dense<0.000000e+00> : vector<8x8xf32>
    %71 = tpu.matmul %70, %59, %cst_28 {dimension_numbers = #tpu.dot_dimension_numbers<[1], [0], [0], [1], [0, 0, 1, 1], [], []>} : vector<8x8xf32>, vector<8x8xf32>, vector<8x8xf32> -> vector<8x8xf32>
    %c0_29 = arith.constant 0 : index
    %c24 = arith.constant 24 : index
    %72 = vector.load %arg20[%c0_29, %c24] : memref<8x32xf32, #tpu.memory_space<vmem>>, vector<8x8xf32>
    tpu.vector_store %arg20[%c0_29, %c24], %71 {strides = array<i32>} : memref<8x32xf32, #tpu.memory_space<vmem>>, vector<8x8xf32>,
    %c0_30 = arith.constant 0 : index
    %c0_31 = arith.constant 0 : index
    %73 = vector.load %arg20[%c0_30, %c0_31] : memref<8x32xf32, #tpu.memory_space<vmem>>, vector<8x32xf32>
    %c0_32 = arith.constant 0 : index
    %c0_33 = arith.constant 0 : index
    %74 = vector.load %arg7[%c0_32, %c0_33] : memref<32x32xf32, #tpu.memory_space<vmem>>, vector<32x32xf32>
    %cst_34 = arith.constant dense<0.000000e+00> : vector<8x32xf32>
    %75 = tpu.matmul %73, %74, %cst_34 {dimension_numbers = #tpu.dot_dimension_numbers<[1], [0], [0], [1], [0, 0, 1, 1], [], []>} : vector<8x32xf32>, vector<32x32xf32>, vector<8x32xf32> -> vector<8x32xf32>
    %c0_35 = arith.constant 0 : index
    %c0_36 = arith.constant 0 : index
    %76 = vector.load %arg8[%c0_35, %c0_36] : memref<1x32xf32, #tpu.memory_space<vmem>>, vector<1x32xf32>
    %77 = vector.broadcast %76 : vector<1x32xf32> to vector<8x32xf32>
    %78 = arith.addf %75, %77 : vector<8x32xf32>
    %c0_37 = arith.constant 0 : index
    %c0_38 = arith.constant 0 : index
    %c0_39 = arith.constant 0 : index
    %79 = vector.load %arg3[%c0_37, %c0_38, %c0_39] : memref<1x8x32xf32, #tpu.memory_space<vmem>>, vector<1x8x32xf32>
    %80 = vector.shape_cast %79 : vector<1x8x32xf32> to vector<8x32xf32>
    %81 = arith.addf %78, %80 : vector<8x32xf32>
    %c0_40 = arith.constant 0 : index
    %c0_41 = arith.constant 0 : index
    %82 = vector.load %arg13[%c0_40, %c0_41] : memref<1x32xf32, #tpu.memory_space<vmem>>, vector<1x32xf32>
    %c0_42 = arith.constant 0 : index
    %c0_43 = arith.constant 0 : index
    %83 = vector.load %arg14[%c0_42, %c0_43] : memref<1x32xf32, #tpu.memory_space<vmem>>, vector<1x32xf32>
    %cst_44 = arith.constant dense<0.000000e+00> : vector<8xf32>
    %84 = vector.multi_reduction <add>, %81, %cst_44 [1] : vector<8x32xf32> to vector<8xf32>
    %85 = vector.shape_cast %84 : vector<8xf32> to vector<8x1xf32>
    %cst_45 = arith.constant 3.200000e+01 : f32
    %86 = vector.broadcast %cst_45 : f32 to vector<8x1xf32>
    %87 = arith.divf %85, %86 : vector<8x1xf32>
    %88 = vector.broadcast %87 : vector<8x1xf32> to vector<8x32xf32>
    %89 = arith.subf %81, %88 : vector<8x32xf32>
    %90 = arith.mulf %89, %89 : vector<8x32xf32>
    %cst_46 = arith.constant dense<0.000000e+00> : vector<8xf32>
    %91 = vector.multi_reduction <add>, %90, %cst_46 [1] : vector<8x32xf32> to vector<8xf32>
    %92 = vector.shape_cast %91 : vector<8xf32> to vector<8x1xf32>
    %cst_47 = arith.constant 3.200000e+01 : f32
    %93 = vector.broadcast %cst_47 : f32 to vector<8x1xf32>
    %94 = arith.divf %92, %93 : vector<8x1xf32>
    %95 = vector.broadcast %87 : vector<8x1xf32> to vector<8x32xf32>
    %96 = arith.subf %81, %95 : vector<8x32xf32>
    %cst_48 = arith.constant 9.99999974E-6 : f32
    %97 = vector.broadcast %cst_48 : f32 to vector<8x1xf32>
    %98 = arith.addf %94, %97 : vector<8x1xf32>
    %99 = math.rsqrt %98 : vector<8x1xf32>
    %100 = vector.broadcast %99 : vector<8x1xf32> to vector<8x32xf32>
    %101 = arith.mulf %96, %100 : vector<8x32xf32>
    %102 = vector.broadcast %82 : vector<1x32xf32> to vector<8x32xf32>
    %103 = arith.mulf %101, %102 : vector<8x32xf32>
    %104 = vector.broadcast %83 : vector<1x32xf32> to vector<8x32xf32>
    %105 = arith.addf %103, %104 : vector<8x32xf32>
    %c0_49 = arith.constant 0 : index
    %c0_50 = arith.constant 0 : index
    %106 = vector.load %arg9[%c0_49, %c0_50] : memref<32x128xf32, #tpu.memory_space<vmem>>, vector<32x128xf32>
    %cst_51 = arith.constant dense<0.000000e+00> : vector<8x128xf32>
    %107 = tpu.matmul %105, %106, %cst_51 {dimension_numbers = #tpu.dot_dimension_numbers<[1], [0], [0], [1], [0, 0, 1, 1], [], []>} : vector<8x32xf32>, vector<32x128xf32>, vector<8x128xf32> -> vector<8x128xf32>
    %c0_52 = arith.constant 0 : index
    %c0_53 = arith.constant 0 : index
    %108 = vector.load %arg10[%c0_52, %c0_53] : memref<1x128xf32, #tpu.memory_space<vmem>>, vector<1x128xf32>
    %109 = vector.broadcast %108 : vector<1x128xf32> to vector<8x128xf32>
    %110 = arith.addf %107, %109 : vector<8x128xf32>
    %cst_54 = arith.constant 5.000000e-01 : f32
    %111 = vector.broadcast %cst_54 : f32 to vector<8x128xf32>
    %112 = arith.mulf %111, %110 : vector<8x128xf32>
    %cst_55 = arith.constant 0.707106769 : f32
    %113 = vector.broadcast %cst_55 : f32 to vector<8x128xf32>
    %114 = arith.mulf %110, %113 : vector<8x128xf32>
    %cst_56 = arith.constant -4.000000e+00 : f32
    %cst_57 = arith.constant 4.000000e+00 : f32
    %115 = vector.broadcast %cst_56 : f32 to vector<8x128xf32>
    %116 = arith.maximumf %115, %114 : vector<8x128xf32>
    %117 = vector.broadcast %cst_57 : f32 to vector<8x128xf32>
    %118 = arith.minimumf %117, %116 : vector<8x128xf32>
    %119 = arith.mulf %118, %118 : vector<8x128xf32>
    %cst_58 = arith.constant -2.72614237E-10 : f32
    %120 = vector.broadcast %cst_58 : f32 to vector<8x128xf32>
    %121 = arith.mulf %120, %119 : vector<8x128xf32>
    %cst_59 = arith.constant 2.77068146E-8 : f32
    %122 = vector.broadcast %cst_59 : f32 to vector<8x128xf32>
    %123 = arith.addf %121, %122 : vector<8x128xf32>
    %124 = arith.mulf %123, %119 : vector<8x128xf32>
    %cst_60 = arith.constant -2.10102394E-6 : f32
    %125 = vector.broadcast %cst_60 : f32 to vector<8x128xf32>
    %126 = arith.addf %124, %125 : vector<8x128xf32>
    %127 = arith.mulf %126, %119 : vector<8x128xf32>
    %cst_61 = arith.constant -5.69250624E-5 : f32
    %128 = vector.broadcast %cst_61 : f32 to vector<8x128xf32>
    %129 = arith.addf %127, %128 : vector<8x128xf32>
    %130 = arith.mulf %129, %119 : vector<8x128xf32>
    %cst_62 = arith.constant -7.34990637E-4 : f32
    %131 = vector.broadcast %cst_62 : f32 to vector<8x128xf32>
    %132 = arith.addf %130, %131 : vector<8x128xf32>
    %133 = arith.mulf %132, %119 : vector<8x128xf32>
    %cst_63 = arith.constant -2.954600e-03 : f32
    %134 = vector.broadcast %cst_63 : f32 to vector<8x128xf32>
    %135 = arith.addf %133, %134 : vector<8x128xf32>
    %136 = arith.mulf %135, %119 : vector<8x128xf32>
    %cst_64 = arith.constant -0.0160960332 : f32
    %137 = vector.broadcast %cst_64 : f32 to vector<8x128xf32>
    %138 = arith.addf %136, %137 : vector<8x128xf32>
    %139 = arith.mulf %138, %118 : vector<8x128xf32>
    %cst_65 = arith.constant -1.45660715E-5 : f32
    %140 = vector.broadcast %cst_65 : f32 to vector<8x128xf32>
    %141 = arith.mulf %140, %119 : vector<8x128xf32>
    %cst_66 = arith.constant -2.13374049E-4 : f32
    %142 = vector.broadcast %cst_66 : f32 to vector<8x128xf32>
    %143 = arith.addf %141, %142 : vector<8x128xf32>
    %144 = arith.mulf %143, %119 : vector<8x128xf32>
    %cst_67 = arith.constant -0.00168282702 : f32
    %145 = vector.broadcast %cst_67 : f32 to vector<8x128xf32>
    %146 = arith.addf %144, %145 : vector<8x128xf32>
    %147 = arith.mulf %146, %119 : vector<8x128xf32>
    %cst_68 = arith.constant -0.00737332925 : f32
    %148 = vector.broadcast %cst_68 : f32 to vector<8x128xf32>
    %149 = arith.addf %147, %148 : vector<8x128xf32>
    %150 = arith.mulf %149, %119 : vector<8x128xf32>
    %cst_69 = arith.constant -0.0142647391 : f32
    %151 = vector.broadcast %cst_69 : f32 to vector<8x128xf32>
    %152 = arith.addf %150, %151 : vector<8x128xf32>
    %153 = arith.divf %139, %152 : vector<8x128xf32>
    %cst_70 = arith.constant 1.000000e+00 : f32
    %154 = vector.broadcast %cst_70 : f32 to vector<8x128xf32>
    %155 = arith.addf %154, %153 : vector<8x128xf32>
    %156 = arith.mulf %112, %155 : vector<8x128xf32>
    %c0_71 = arith.constant 0 : index
    %c0_72 = arith.constant 0 : index
    %157 = vector.load %arg11[%c0_71, %c0_72] : memref<128x32xf32, #tpu.memory_space<vmem>>, vector<128x32xf32>
    %cst_73 = arith.constant dense<0.000000e+00> : vector<8x32xf32>
    %158 = tpu.matmul %156, %157, %cst_73 {dimension_numbers = #tpu.dot_dimension_numbers<[1], [0], [0], [1], [0, 0, 1, 1], [], []>} : vector<8x128xf32>, vector<128x32xf32>, vector<8x32xf32> -> vector<8x32xf32>
    %c0_74 = arith.constant 0 : index
    %c0_75 = arith.constant 0 : index
    %159 = vector.load %arg12[%c0_74, %c0_75] : memref<1x32xf32, #tpu.memory_space<vmem>>, vector<1x32xf32>
    %160 = vector.broadcast %159 : vector<1x32xf32> to vector<8x32xf32>
    %161 = arith.addf %158, %160 : vector<8x32xf32>
    %162 = arith.addf %161, %105 : vector<8x32xf32>
    %c0_76 = arith.constant 0 : index
    %c0_77 = arith.constant 0 : index
    %163 = vector.load %arg15[%c0_76, %c0_77] : memref<1x32xf32, #tpu.memory_space<vmem>>, vector<1x32xf32>
    %c0_78 = arith.constant 0 : index
    %c0_79 = arith.constant 0 : index
    %164 = vector.load %arg16[%c0_78, %c0_79] : memref<1x32xf32, #tpu.memory_space<vmem>>, vector<1x32xf32>
    %cst_80 = arith.constant dense<0.000000e+00> : vector<8xf32>
    %165 = vector.multi_reduction <add>, %162, %cst_80 [1] : vector<8x32xf32> to vector<8xf32>
    %166 = vector.shape_cast %165 : vector<8xf32> to vector<8x1xf32>
    %cst_81 = arith.constant 3.200000e+01 : f32
    %167 = vector.broadcast %cst_81 : f32 to vector<8x1xf32>
    %168 = arith.divf %166, %167 : vector<8x1xf32>
    %169 = vector.broadcast %168 : vector<8x1xf32> to vector<8x32xf32>
    %170 = arith.subf %162, %169 : vector<8x32xf32>
    %171 = arith.mulf %170, %170 : vector<8x32xf32>
    %cst_82 = arith.constant dense<0.000000e+00> : vector<8xf32>
    %172 = vector.multi_reduction <add>, %171, %cst_82 [1] : vector<8x32xf32> to vector<8xf32>
    %173 = vector.shape_cast %172 : vector<8xf32> to vector<8x1xf32>
    %cst_83 = arith.constant 3.200000e+01 : f32
    %174 = vector.broadcast %cst_83 : f32 to vector<8x1xf32>
    %175 = arith.divf %173, %174 : vector<8x1xf32>
    %176 = vector.broadcast %168 : vector<8x1xf32> to vector<8x32xf32>
    %177 = arith.subf %162, %176 : vector<8x32xf32>
    %cst_84 = arith.constant 9.99999974E-6 : f32
    %178 = vector.broadcast %cst_84 : f32 to vector<8x1xf32>
    %179 = arith.addf %175, %178 : vector<8x1xf32>
    %180 = math.rsqrt %179 : vector<8x1xf32>
    %181 = vector.broadcast %180 : vector<8x1xf32> to vector<8x32xf32>
    %182 = arith.mulf %177, %181 : vector<8x32xf32>
    %183 = vector.broadcast %163 : vector<1x32xf32> to vector<8x32xf32>
    %184 = arith.mulf %182, %183 : vector<8x32xf32>
    %185 = vector.broadcast %164 : vector<1x32xf32> to vector<8x32xf32>
    %186 = arith.addf %184, %185 : vector<8x32xf32>
    %c0_85 = arith.constant 0 : index
    %c0_86 = arith.constant 0 : index
    %c0_87 = arith.constant 0 : index
    %187 = vector.load %arg17[%c0_85, %c0_86, %c0_87] : memref<1x8x32xf32, #tpu.memory_space<vmem>>, vector<1x8x32xf32>
    %188 = vector.shape_cast %187 : vector<1x8x32xf32> to vector<8x32xf32>
    %189 = vector.shape_cast %186 : vector<8x32xf32> to vector<1x8x32xf32>
    tpu.vector_store %arg17[%c0_85, %c0_86, %c0_87], %189 {strides = array<i32>} : memref<1x8x32xf32, #tpu.memory_space<vmem>>, vector<1x8x32xf32>,
    return
  }
  func.func @transform_0(%arg0: i32, %arg1: i32) -> (i32, i32, i32) {
    %c0_i32 = arith.constant 0 : i32
    %c0_i32_0 = arith.constant 0 : i32
    %c0_i32_1 = arith.constant 0 : i32
    return %arg0, %c0_i32, %c0_i32_0 : i32, i32, i32
  }
  func.func @transform_1(%arg0: i32, %arg1: i32) -> (i32, i32, i32) {
    %c0_i32 = arith.constant 0 : i32
    %c0_i32_0 = arith.constant 0 : i32
    return %arg0, %arg1, %c0_i32 : i32, i32, i32
  }
  func.func @transform_2(%arg0: i32, %arg1: i32) -> (i32, i32) {
    %c0_i32 = arith.constant 0 : i32
    %c0_i32_0 = arith.constant 0 : i32
    %c0_i32_1 = arith.constant 0 : i32
    return %c0_i32, %c0_i32_0 : i32, i32
  }
  func.func @transform_3(%arg0: i32, %arg1: i32) -> (i32, i32) {
    %c0_i32 = arith.constant 0 : i32
    %c0_i32_0 = arith.constant 0 : i32
    %c0_i32_1 = arith.constant 0 : i32
    return %c0_i32, %c0_i32_0 : i32, i32
  }
  func.func @transform_4(%arg0: i32, %arg1: i32) -> (i32, i32) {
    %c0_i32 = arith.constant 0 : i32
    %c0_i32_0 = arith.constant 0 : i32
    %c0_i32_1 = arith.constant 0 : i32
    return %c0_i32, %c0_i32_0 : i32, i32
  }
  func.func @transform_5(%arg0: i32, %arg1: i32) -> (i32, i32) {
    %c0_i32 = arith.constant 0 : i32
    %c0_i32_0 = arith.constant 0 : i32
    %c0_i32_1 = arith.constant 0 : i32
    return %c0_i32, %c0_i32_0 : i32, i32
  }
  func.func @transform_6(%arg0: i32, %arg1: i32) -> (i32, i32) {
    %c0_i32 = arith.constant 0 : i32
    %c0_i32_0 = arith.constant 0 : i32
    %c0_i32_1 = arith.constant 0 : i32
    return %c0_i32, %c0_i32_0 : i32, i32
  }
  func.func @transform_7(%arg0: i32, %arg1: i32) -> (i32, i32) {
    %c0_i32 = arith.constant 0 : i32
    %c0_i32_0 = arith.constant 0 : i32
    %c0_i32_1 = arith.constant 0 : i32
    return %c0_i32, %c0_i32_0 : i32, i32
  }
  func.func @transform_8(%arg0: i32, %arg1: i32) -> (i32, i32) {
    %c0_i32 = arith.constant 0 : i32
    %c0_i32_0 = arith.constant 0 : i32
    %c0_i32_1 = arith.constant 0 : i32
    return %c0_i32, %c0_i32_0 : i32, i32
  }
  func.func @transform_9(%arg0: i32, %arg1: i32) -> (i32, i32) {
    %c0_i32 = arith.constant 0 : i32
    %c0_i32_0 = arith.constant 0 : i32
    %c0_i32_1 = arith.constant 0 : i32
    return %c0_i32, %c0_i32_0 : i32, i32
  }
  func.func @transform_10(%arg0: i32, %arg1: i32) -> (i32, i32) {
    %c0_i32 = arith.constant 0 : i32
    %c0_i32_0 = arith.constant 0 : i32
    %c0_i32_1 = arith.constant 0 : i32
    return %c0_i32, %c0_i32_0 : i32, i32
  }
  func.func @transform_11(%arg0: i32, %arg1: i32) -> (i32, i32) {
    %c0_i32 = arith.constant 0 : i32
    %c0_i32_0 = arith.constant 0 : i32
    %c0_i32_1 = arith.constant 0 : i32
    return %c0_i32, %c0_i32_0 : i32, i32
  }
  func.func @transform_12(%arg0: i32, %arg1: i32) -> (i32, i32) {
    %c0_i32 = arith.constant 0 : i32
    %c0_i32_0 = arith.constant 0 : i32
    %c0_i32_1 = arith.constant 0 : i32
    return %c0_i32, %c0_i32_0 : i32, i32
  }
  func.func @transform_13(%arg0: i32, %arg1: i32) -> (i32, i32) {
    %c0_i32 = arith.constant 0 : i32
    %c0_i32_0 = arith.constant 0 : i32
    %c0_i32_1 = arith.constant 0 : i32
    return %c0_i32, %c0_i32_0 : i32, i32
  }
  func.func @transform_14(%arg0: i32, %arg1: i32) -> (i32, i32) {
    %c0_i32 = arith.constant 0 : i32
    %c0_i32_0 = arith.constant 0 : i32
    %c0_i32_1 = arith.constant 0 : i32
    return %c0_i32, %c0_i32_0 : i32, i32
  }
  func.func @transform_15(%arg0: i32, %arg1: i32) -> (i32, i32, i32) {
    %c0_i32 = arith.constant 0 : i32
    %c0_i32_0 = arith.constant 0 : i32
    return %arg0, %arg1, %c0_i32 : i32, i32, i32
  }
}

</mosaic_0001>

<llo_original>
// kernel: tpu_custom_call.1
$region0: #{tpu_custom_call.1}
  #allocation0 [shape = 'u32[]', space=smem, size = 0x4, offset = 0x4, fixed_abs, tag = 'smem constant byte address 0x4 - core index']
  #allocation1 [shape = 'u32[144,128]{1,0:T(1,128)}', space=vmem, size = 0x12000, scoped, tag = 'internal scratch']
  #allocation2 [shape = 'f32[8,32]{1,0:T(8,128)}', space=vmem, size = 0x1000, scoped, tag = 'scratch operand']
  #allocation3 [shape = 'f32[8,32]{1,0:T(8,128)}', space=vmem, size = 0x1000, scoped, tag = 'scratch operand']
  #allocation4 [shape = 'f32[8,32]{1,0:T(8,128)}', space=vmem, size = 0x1000, scoped, tag = 'scratch operand']
  %s0 = inlined_call_operand.hbm [shape: f32[2,8,32], index: 0, kind: input, shape index: {}]
  %s1 = inlined_call_operand.hbm [shape: f32[2,8,32], index: 1, kind: input, shape index: {}]
  %s2 = inlined_call_operand.vmem [shape: f32[32,32], index: 2, kind: input, shape index: {}]
  %s3 = inlined_call_operand.vmem [shape: f32[32,32], index: 3, kind: input, shape index: {}]
  %s4 = inlined_call_operand.vmem [shape: f32[32,32], index: 4, kind: input, shape index: {}]
  %s5 = inlined_call_operand.vmem [shape: f32[32,32], index: 5, kind: input, shape index: {}]
  %s6 = inlined_call_operand.vmem [shape: f32[1,32], index: 6, kind: input, shape index: {}]
  %s7 = inlined_call_operand.vmem [shape: f32[32,128], index: 7, kind: input, shape index: {}]
  %s8 = inlined_call_operand.vmem [shape: f32[1,128], index: 8, kind: input, shape index: {}]
  %s9 = inlined_call_operand.vmem [shape: f32[128,32], index: 9, kind: input, shape index: {}]
  %s10 = inlined_call_operand.vmem [shape: f32[1,32], index: 10, kind: input, shape index: {}]
  %s11 = inlined_call_operand.vmem [shape: f32[1,32], index: 11, kind: input, shape index: {}]
  %s12 = inlined_call_operand.vmem [shape: f32[1,32], index: 12, kind: input, shape index: {}]
  %s13 = inlined_call_operand.vmem [shape: f32[1,32], index: 13, kind: input, shape index: {}]
  %s14 = inlined_call_operand.vmem [shape: f32[1,32], index: 14, kind: input, shape index: {}]
  %s15 = inlined_call_operand.hbm [shape: f32[2,8,32], index: 15, kind: output, shape index: {}]
  %s16 = sld [smem:[#allocation0]]
  $region105: #{tpu_custom_call.1} parent=0
    _
  %s18 = ssub.s32 1, %s16
  %s19 = scalar_select 0, %s18, %s16
  $region1: #{tpu_custom_call.1} parent=0
    #allocation5 [shape = 'u8[4096]{0}', space=vmem, size = 0x1000, scoped, tag = 'input window, operand 0, single buffered']
    #allocation6 [shape = 's32[2]{0}', space=sflag, size = 0x8, scoped, tag = 'scoped memory for tpu_custom_call.1']
    #allocation7 [shape = 's32[2]{0}', space=sflag, size = 0x8, scoped, tag = 'scoped memory for tpu_custom_call.1']
    #allocation8 [shape = 'u8[8192]{0}', space=vmem, size = 0x2000, scoped, tag = 'input window, operand 1']
    #allocation9 [shape = 's32[2]{0}', space=sflag, size = 0x8, scoped, tag = 'scoped memory for tpu_custom_call.1']
    #allocation10 [shape = 'u8[8192]{0}', space=vmem, size = 0x2000, scoped, tag = 'output window, operand 0']
    %20 = vsyncpa [#allocation6], 0
    %21 = vsyncpa [#allocation9], 0
    %s22 = scalar_lea.sflag [#allocation9], 1
    %23 = vsyncpa %s22, 0
    %24 = vsyncpa [#allocation7], 0
    %s25 = scalar_lea.sflag [#allocation7], 1
    %26 = vsyncpa %s25, 0
    loop: start=0, step=1, limit=4
    $region2: #{tpu_custom_call.1} parent=1 // loop_pre_header
      _
    $region3: #{tpu_custom_call.1} parent=1 // loop_header
      %s28 = sphi 0, %s32
      %p29 = scmp.ge.s32.totalorder %s28, 4
      %s35 = sphi 0, %s47
      %s36 = sphi 0, %s43
      %s37 = sphi 0, %s35
      %s38 = sphi 0, %s36
      %s39 = sphi 0, %s37
      %s40 = sphi 0, %s38
      %s50 = sphi 0, %s52
      %s53 = sphi 0, %s50
      %s54 = sphi 0, %s53
      %s70 = sphi 0, %s54
      %s78 = sphi 0, %s80
      %s81 = sphi 0, %s78
      %s82 = sphi 0, %s81
      %s98 = sphi 0, %s82
      %s102 = sphi 0, %s102
      %s104 = sphi 0, %s102
      %s105 = sphi 0, %s104
      %s119 = sphi 0, %s105
      %s123 = sphi 0, %s123
      %s125 = sphi 0, %s123
      %s126 = sphi 0, %s125
      %s140 = sphi 0, %s126
      %s144 = sphi 0, %s144
      %s146 = sphi 0, %s144
      %s147 = sphi 0, %s146
      %s161 = sphi 0, %s147
      %s165 = sphi 0, %s165
      %s167 = sphi 0, %s165
      %s168 = sphi 0, %s167
      %s182 = sphi 0, %s168
      %s186 = sphi 0, %s186
      %s188 = sphi 0, %s186
      %s189 = sphi 0, %s188
      %s203 = sphi 0, %s189
      %s207 = sphi 0, %s207
      %s209 = sphi 0, %s207
      %s210 = sphi 0, %s209
      %s224 = sphi 0, %s210
      %s228 = sphi 0, %s228
      %s230 = sphi 0, %s228
      %s231 = sphi 0, %s230
      %s245 = sphi 0, %s231
      %s249 = sphi 0, %s249
      %s251 = sphi 0, %s249
      %s252 = sphi 0, %s251
      %s266 = sphi 0, %s252
      %s270 = sphi 0, %s270
      %s272 = sphi 0, %s270
      %s273 = sphi 0, %s272
      %s287 = sphi 0, %s273
      %s291 = sphi 0, %s291
      %s293 = sphi 0, %s291
      %s294 = sphi 0, %s293
      %s308 = sphi 0, %s294
      %s312 = sphi 0, %s312
      %s314 = sphi 0, %s312
      %s315 = sphi 0, %s314
      %s329 = sphi 0, %s315
      %s333 = sphi 0, %s333
      %s335 = sphi 0, %s333
      %s336 = sphi 0, %s335
      %s350 = sphi 0, %s336
      %s354 = sphi 0, %s354
      %s356 = sphi 0, %s354
      %s357 = sphi 0, %s356
      %s371 = sphi 0, %s357
      %s379 = sphi 0, %s381
      %s382 = sphi 0, %s379
      %s383 = sphi 0, %s382
      %s399 = sphi 0, %s383
    $region4: #{tpu_custom_call.1} parent=1 // loop_header_branch
      %31 = sbr.rel (%p29) target = $region8
    $region5: #{tpu_custom_call.1} parent=1 // loop_body
      %s33 = ssub.s32 %s28, 1
      %s34 = ssub.s32 %s28, 2
      %s41 = sadd.s32 1, %s36
      %p42 = scmp.ge.s32.totalorder %s41, 1
      %s43 = scalar_select %p42, 0, %s41
      %s44 = sadd.s32 1, %s35
      %s45 = scalar_select %p42, %s44, %s35
      %p46 = scmp.ge.s32.totalorder %s45, 2
      %s47 = scalar_select %p46, 0, %s45
      %s48 = ssub.s32 %s35, %s47
      %p49 = scmp.eq.s32.totalorder %s48, 0
      %s51 = sadd.s32 %s50, 1
      %s52 = scalar_select %p49, %s50, %s51
      %p55 = pneg %p49
      %p56 = scmp.eq.s32.totalorder %s28, 1
      %p57 = por %p55, %p56
      %p58 = scmp.ne.s32.totalorder %s50, %s53
      %p59 = scmp.eq.s32.totalorder %s28, 0
      %p60 = por %p58, %p59
      %p61 = scmp.ne.s32.totalorder %s50, %s53
      %p62 = scmp.eq.s32.totalorder %s33, 1
      %p63 = por %p61, %p62
      %p64 = scmp.ne.s32.totalorder %s53, %s54
      %p65 = scmp.eq.s32.totalorder %s33, 0
      %p66 = por %p64, %p65
      %p67 = scmp.ne.s32.totalorder %s53, %s54
      %p68 = scmp.eq.s32.totalorder %s34, 1
      %p69 = por %p67, %p68
      %p71 = scmp.ne.s32.totalorder %s54, %s70
      %p72 = scmp.eq.s32.totalorder %s34, 0
      %p73 = por %p71, %p72
      %s74 = ssub.s32 %s35, %s47
      %s75 = ssub.s32 %s36, %s43
      %s76 = sor.u32 %s74, %s75
      %p77 = scmp.eq.s32.totalorder %s76, 0
      %s79 = sadd.s32 %s78, 1
      %s80 = scalar_select %p77, %s78, %s79
      %p83 = pneg %p77
      %p84 = scmp.eq.s32.totalorder %s28, 1
      %p85 = por %p83, %p84
      %p86 = scmp.ne.s32.totalorder %s78, %s81
      %p87 = scmp.eq.s32.totalorder %s28, 0
      %p88 = por %p86, %p87
      %p89 = scmp.ne.s32.totalorder %s78, %s81
      %p90 = scmp.eq.s32.totalorder %s33, 1
      %p91 = por %p89, %p90
      %p92 = scmp.ne.s32.totalorder %s81, %s82
      %p93 = scmp.eq.s32.totalorder %s33, 0
      %p94 = por %p92, %p93
      %p95 = scmp.ne.s32.totalorder %s81, %s82
      %p96 = scmp.eq.s32.totalorder %s34, 1
      %p97 = por %p95, %p96
      %p99 = scmp.ne.s32.totalorder %s82, %s98
      %p100 = scmp.eq.s32.totalorder %s34, 0
      %p101 = por %p99, %p100
      %s103 = sadd.s32 %s102, 1
      %p106 = scmp.eq.s32.totalorder %s28, 1
      %p107 = scmp.ne.s32.totalorder %s102, %s104
      %p108 = scmp.eq.s32.totalorder %s28, 0
      %p109 = por %p107, %p108
      %p110 = scmp.ne.s32.totalorder %s102, %s104
      %p111 = scmp.eq.s32.totalorder %s33, 1
      %p112 = por %p110, %p111
      %p113 = scmp.ne.s32.totalorder %s104, %s105
      %p114 = scmp.eq.s32.totalorder %s33, 0
      %p115 = por %p113, %p114
      %p116 = scmp.ne.s32.totalorder %s104, %s105
      %p117 = scmp.eq.s32.totalorder %s34, 1
      %p118 = por %p116, %p117
      %p120 = scmp.ne.s32.totalorder %s105, %s119
      %p121 = scmp.eq.s32.totalorder %s34, 0
      %p122 = por %p120, %p121
      %s124 = sadd.s32 %s123, 1
      %p127 = scmp.eq.s32.totalorder %s28, 1
      %p128 = scmp.ne.s32.totalorder %s123, %s125
      %p129 = scmp.eq.s32.totalorder %s28, 0
      %p130 = por %p128, %p129
      %p131 = scmp.ne.s32.totalorder %s123, %s125
      %p132 = scmp.eq.s32.totalorder %s33, 1
      %p133 = por %p131, %p132
      %p134 = scmp.ne.s32.totalorder %s125, %s126
      %p135 = scmp.eq.s32.totalorder %s33, 0
      %p136 = por %p134, %p135
      %p137 = scmp.ne.s32.totalorder %s125, %s126
      %p138 = scmp.eq.s32.totalorder %s34, 1
      %p139 = por %p137, %p138
      %p141 = scmp.ne.s32.totalorder %s126, %s140
      %p142 = scmp.eq.s32.totalorder %s34, 0
      %p143 = por %p141, %p142
      %s145 = sadd.s32 %s144, 1
      %p148 = scmp.eq.s32.totalorder %s28, 1
      %p149 = scmp.ne.s32.totalorder %s144, %s146
      %p150 = scmp.eq.s32.totalorder %s28, 0
      %p151 = por %p149, %p150
      %p152 = scmp.ne.s32.totalorder %s144, %s146
      %p153 = scmp.eq.s32.totalorder %s33, 1
      %p154 = por %p152, %p153
      %p155 = scmp.ne.s32.totalorder %s146, %s147
      %p156 = scmp.eq.s32.totalorder %s33, 0
      %p157 = por %p155, %p156
      %p158 = scmp.ne.s32.totalorder %s146, %s147
      %p159 = scmp.eq.s32.totalorder %s34, 1
      %p160 = por %p158, %p159
      %p162 = scmp.ne.s32.totalorder %s147, %s161
      %p163 = scmp.eq.s32.totalorder %s34, 0
      %p164 = por %p162, %p163
      %s166 = sadd.s32 %s165, 1
      %p169 = scmp.eq.s32.totalorder %s28, 1
      %p170 = scmp.ne.s32.totalorder %s165, %s167
      %p171 = scmp.eq.s32.totalorder %s28, 0
      %p172 = por %p170, %p171
      %p173 = scmp.ne.s32.totalorder %s165, %s167
      %p174 = scmp.eq.s32.totalorder %s33, 1
      %p175 = por %p173, %p174
      %p176 = scmp.ne.s32.totalorder %s167, %s168
      %p177 = scmp.eq.s32.totalorder %s33, 0
      %p178 = por %p176, %p177
      %p179 = scmp.ne.s32.totalorder %s167, %s168
      %p180 = scmp.eq.s32.totalorder %s34, 1
      %p181 = por %p179, %p180
      %p183 = scmp.ne.s32.totalorder %s168, %s182
      %p184 = scmp.eq.s32.totalorder %s34, 0
      %p185 = por %p183, %p184
      %s187 = sadd.s32 %s186, 1
      %p190 = scmp.eq.s32.totalorder %s28, 1
      %p191 = scmp.ne.s32.totalorder %s186, %s188
      %p192 = scmp.eq.s32.totalorder %s28, 0
      %p193 = por %p191, %p192
      %p194 = scmp.ne.s32.totalorder %s186, %s188
      %p195 = scmp.eq.s32.totalorder %s33, 1
      %p196 = por %p194, %p195
      %p197 = scmp.ne.s32.totalorder %s188, %s189
      %p198 = scmp.eq.s32.totalorder %s33, 0
      %p199 = por %p197, %p198
      %p200 = scmp.ne.s32.totalorder %s188, %s189
      %p201 = scmp.eq.s32.totalorder %s34, 1
      %p202 = por %p200, %p201
      %p204 = scmp.ne.s32.totalorder %s189, %s203
      %p205 = scmp.eq.s32.totalorder %s34, 0
      %p206 = por %p204, %p205
      %s208 = sadd.s32 %s207, 1
      %p211 = scmp.eq.s32.totalorder %s28, 1
      %p212 = scmp.ne.s32.totalorder %s207, %s209
      %p213 = scmp.eq.s32.totalorder %s28, 0
      %p214 = por %p212, %p213
      %p215 = scmp.ne.s32.totalorder %s207, %s209
      %p216 = scmp.eq.s32.totalorder %s33, 1
      %p217 = por %p215, %p216
      %p218 = scmp.ne.s32.totalorder %s209, %s210
      %p219 = scmp.eq.s32.totalorder %s33, 0
      %p220 = por %p218, %p219
      %p221 = scmp.ne.s32.totalorder %s209, %s210
      %p222 = scmp.eq.s32.totalorder %s34, 1
      %p223 = por %p221, %p222
      %p225 = scmp.ne.s32.totalorder %s210, %s224
      %p226 = scmp.eq.s32.totalorder %s34, 0
      %p227 = por %p225, %p226
      %s229 = sadd.s32 %s228, 1
      %p232 = scmp.eq.s32.totalorder %s28, 1
      %p233 = scmp.ne.s32.totalorder %s228, %s230
      %p234 = scmp.eq.s32.totalorder %s28, 0
      %p235 = por %p233, %p234
      %p236 = scmp.ne.s32.totalorder %s228, %s230
      %p237 = scmp.eq.s32.totalorder %s33, 1
      %p238 = por %p236, %p237
      %p239 = scmp.ne.s32.totalorder %s230, %s231
      %p240 = scmp.eq.s32.totalorder %s33, 0
      %p241 = por %p239, %p240
      %p242 = scmp.ne.s32.totalorder %s230, %s231
      %p243 = scmp.eq.s32.totalorder %s34, 1
      %p244 = por %p242, %p243
      %p246 = scmp.ne.s32.totalorder %s231, %s245
      %p247 = scmp.eq.s32.totalorder %s34, 0
      %p248 = por %p246, %p247
      %s250 = sadd.s32 %s249, 1
      %p253 = scmp.eq.s32.totalorder %s28, 1
      %p254 = scmp.ne.s32.totalorder %s249, %s251
      %p255 = scmp.eq.s32.totalorder %s28, 0
      %p256 = por %p254, %p255
      %p257 = scmp.ne.s32.totalorder %s249, %s251
      %p258 = scmp.eq.s32.totalorder %s33, 1
      %p259 = por %p257, %p258
      %p260 = scmp.ne.s32.totalorder %s251, %s252
      %p261 = scmp.eq.s32.totalorder %s33, 0
      %p262 = por %p260, %p261
      %p263 = scmp.ne.s32.totalorder %s251, %s252
      %p264 = scmp.eq.s32.totalorder %s34, 1
      %p265 = por %p263, %p264
      %p267 = scmp.ne.s32.totalorder %s252, %s266
      %p268 = scmp.eq.s32.totalorder %s34, 0
      %p269 = por %p267, %p268
      %s271 = sadd.s32 %s270, 1
      %p274 = scmp.eq.s32.totalorder %s28, 1
      %p275 = scmp.ne.s32.totalorder %s270, %s272
      %p276 = scmp.eq.s32.totalorder %s28, 0
      %p277 = por %p275, %p276
      %p278 = scmp.ne.s32.totalorder %s270, %s272
      %p279 = scmp.eq.s32.totalorder %s33, 1
      %p280 = por %p278, %p279
      %p281 = scmp.ne.s32.totalorder %s272, %s273
      %p282 = scmp.eq.s32.totalorder %s33, 0
      %p283 = por %p281, %p282
      %p284 = scmp.ne.s32.totalorder %s272, %s273
      %p285 = scmp.eq.s32.totalorder %s34, 1
      %p286 = por %p284, %p285
      %p288 = scmp.ne.s32.totalorder %s273, %s287
      %p289 = scmp.eq.s32.totalorder %s34, 0
      %p290 = por %p288, %p289
      %s292 = sadd.s32 %s291, 1
      %p295 = scmp.eq.s32.totalorder %s28, 1
      %p296 = scmp.ne.s32.totalorder %s291, %s293
      %p297 = scmp.eq.s32.totalorder %s28, 0
      %p298 = por %p296, %p297
      %p299 = scmp.ne.s32.totalorder %s291, %s293
      %p300 = scmp.eq.s32.totalorder %s33, 1
      %p301 = por %p299, %p300
      %p302 = scmp.ne.s32.totalorder %s293, %s294
      %p303 = scmp.eq.s32.totalorder %s33, 0
      %p304 = por %p302, %p303
      %p305 = scmp.ne.s32.totalorder %s293, %s294
      %p306 = scmp.eq.s32.totalorder %s34, 1
      %p307 = por %p305, %p306
      %p309 = scmp.ne.s32.totalorder %s294, %s308
      %p310 = scmp.eq.s32.totalorder %s34, 0
      %p311 = por %p309, %p310
      %s313 = sadd.s32 %s312, 1
      %p316 = scmp.eq.s32.totalorder %s28, 1
      %p317 = scmp.ne.s32.totalorder %s312, %s314
      %p318 = scmp.eq.s32.totalorder %s28, 0
      %p319 = por %p317, %p318
      %p320 = scmp.ne.s32.totalorder %s312, %s314
      %p321 = scmp.eq.s32.totalorder %s33, 1
      %p322 = por %p320, %p321
      %p323 = scmp.ne.s32.totalorder %s314, %s315
      %p324 = scmp.eq.s32.totalorder %s33, 0
      %p325 = por %p323, %p324
      %p326 = scmp.ne.s32.totalorder %s314, %s315
      %p327 = scmp.eq.s32.totalorder %s34, 1
      %p328 = por %p326, %p327
      %p330 = scmp.ne.s32.totalorder %s315, %s329
      %p331 = scmp.eq.s32.totalorder %s34, 0
      %p332 = por %p330, %p331
      %s334 = sadd.s32 %s333, 1
      %p337 = scmp.eq.s32.totalorder %s28, 1
      %p338 = scmp.ne.s32.totalorder %s333, %s335
      %p339 = scmp.eq.s32.totalorder %s28, 0
      %p340 = por %p338, %p339
      %p341 = scmp.ne.s32.totalorder %s333, %s335
      %p342 = scmp.eq.s32.totalorder %s33, 1
      %p343 = por %p341, %p342
      %p344 = scmp.ne.s32.totalorder %s335, %s336
      %p345 = scmp.eq.s32.totalorder %s33, 0
      %p346 = por %p344, %p345
      %p347 = scmp.ne.s32.totalorder %s335, %s336
      %p348 = scmp.eq.s32.totalorder %s34, 1
      %p349 = por %p347, %p348
      %p351 = scmp.ne.s32.totalorder %s336, %s350
      %p352 = scmp.eq.s32.totalorder %s34, 0
      %p353 = por %p351, %p352
      %s355 = sadd.s32 %s354, 1
      %p358 = scmp.eq.s32.totalorder %s28, 1
      %p359 = scmp.ne.s32.totalorder %s354, %s356
      %p360 = scmp.eq.s32.totalorder %s28, 0
      %p361 = por %p359, %p360
      %p362 = scmp.ne.s32.totalorder %s354, %s356
      %p363 = scmp.eq.s32.totalorder %s33, 1
      %p364 = por %p362, %p363
      %p365 = scmp.ne.s32.totalorder %s356, %s357
      %p366 = scmp.eq.s32.totalorder %s33, 0
      %p367 = por %p365, %p366
      %p368 = scmp.ne.s32.totalorder %s356, %s357
      %p369 = scmp.eq.s32.totalorder %s34, 1
      %p370 = por %p368, %p369
      %p372 = scmp.ne.s32.totalorder %s357, %s371
      %p373 = scmp.eq.s32.totalorder %s34, 0
      %p374 = por %p372, %p373
      %s375 = ssub.s32 %s35, %s47
      %s376 = ssub.s32 %s36, %s43
      %s377 = sor.u32 %s375, %s376
      %p378 = scmp.eq.s32.totalorder %s377, 0
      %s380 = sadd.s32 %s379, 1
      %s381 = scalar_select %p378, %s379, %s380
      %p384 = pneg %p378
      %p385 = scmp.eq.s32.totalorder %s28, 1
      %p386 = por %p384, %p385
      %p387 = scmp.ne.s32.totalorder %s379, %s382
      %p388 = scmp.eq.s32.totalorder %s28, 0
      %p389 = por %p387, %p388
      %p390 = scmp.ne.s32.totalorder %s379, %s382
      %p391 = scmp.eq.s32.totalorder %s33, 1
      %p392 = por %p390, %p391
      %p393 = scmp.ne.s32.totalorder %s382, %s383
      %p394 = scmp.eq.s32.totalorder %s33, 0
      %p395 = por %p393, %p394
      %p396 = scmp.ne.s32.totalorder %s382, %s383
      %p397 = scmp.eq.s32.totalorder %s34, 1
      %p398 = por %p396, %p397
      %p400 = scmp.ne.s32.totalorder %s383, %s399
      %p401 = scmp.eq.s32.totalorder %s34, 0
      %p402 = por %p400, %p401
      %p403 = scmp.le.s32.totalorder 1, %s28
      %p404 = scmp.lt.s32.totalorder %s28, 3
      %p405 = pnand %p403, %p404
      %p406 = pneg %p405
      // Predicated region
      $region9: #{tpu_custom_call.1} parent=5 // pred_check
        _
      $region10: #{tpu_custom_call.1} parent=5 // pred_check_branch
        %408 = sbr.rel (%p405) target = $region12
      $region11: #{tpu_custom_call.1} parent=5 // pred_region
        %s409 = ssub.s32 %s28, 1
        // Predicated region
        $region13: #{tpu_custom_call.1} parent=11 // pred_check
          %p410 = pneg %p66
        $region14: #{tpu_custom_call.1} parent=11 // pred_check_branch
          %412 = sbr.rel (%p410) target = $region16
        $region15: #{tpu_custom_call.1} parent=11 // pred_region
          %s414 = ssub.s32 128, 128
          %415 = vsyncadd [#allocation6], %s414
          %s416 = smul.addr %s37, 128
          %s417 = scalar_lea.hbm %s0, %s416
          %s419 = sshll.u32 [#allocation5], 4
          %s420 = int_to_ptr.vmem [resolvable:$true] %s419
          %422 = dma.hbm_to_vmem [thread:$0]  %s417, 128, %s420, [#allocation6]
        $region16: #{tpu_custom_call.1} parent=11 // pred_fallthru
          _
        // Predicated region
        $region17: #{tpu_custom_call.1} parent=11 // pred_check
          %p423 = pneg %p115
        $region18: #{tpu_custom_call.1} parent=11 // pred_check_branch
          %425 = sbr.rel (%p423) target = $region20
        $region19: #{tpu_custom_call.1} parent=11 // pred_region
          _
        $region20: #{tpu_custom_call.1} parent=11 // pred_fallthru
          _
        // Predicated region
        $region21: #{tpu_custom_call.1} parent=11 // pred_check
          %p426 = pneg %p136
        $region22: #{tpu_custom_call.1} parent=11 // pred_check_branch
          %428 = sbr.rel (%p426) target = $region24
        $region23: #{tpu_custom_call.1} parent=11 // pred_region
          _
        $region24: #{tpu_custom_call.1} parent=11 // pred_fallthru
          _
        // Predicated region
        $region25: #{tpu_custom_call.1} parent=11 // pred_check
          %p429 = pneg %p157
        $region26: #{tpu_custom_call.1} parent=11 // pred_check_branch
          %431 = sbr.rel (%p429) target = $region28
        $region27: #{tpu_custom_call.1} parent=11 // pred_region
          _
        $region28: #{tpu_custom_call.1} parent=11 // pred_fallthru
          _
        // Predicated region
        $region29: #{tpu_custom_call.1} parent=11 // pred_check
          %p432 = pneg %p178
        $region30: #{tpu_custom_call.1} parent=11 // pred_check_branch
          %434 = sbr.rel (%p432) target = $region32
        $region31: #{tpu_custom_call.1} parent=11 // pred_region
          _
        $region32: #{tpu_custom_call.1} parent=11 // pred_fallthru
          _
        // Predicated region
        $region33: #{tpu_custom_call.1} parent=11 // pred_check
          %p435 = pneg %p199
        $region34: #{tpu_custom_call.1} parent=11 // pred_check_branch
          %437 = sbr.rel (%p435) target = $region36
        $region35: #{tpu_custom_call.1} parent=11 // pred_region
          _
        $region36: #{tpu_custom_call.1} parent=11 // pred_fallthru
          _
        // Predicated region
        $region37: #{tpu_custom_call.1} parent=11 // pred_check
          %p438 = pneg %p220
        $region38: #{tpu_custom_call.1} parent=11 // pred_check_branch
          %440 = sbr.rel (%p438) target = $region40
        $region39: #{tpu_custom_call.1} parent=11 // pred_region
          _
        $region40: #{tpu_custom_call.1} parent=11 // pred_fallthru
          _
        // Predicated region
        $region41: #{tpu_custom_call.1} parent=11 // pred_check
          %p441 = pneg %p241
        $region42: #{tpu_custom_call.1} parent=11 // pred_check_branch
          %443 = sbr.rel (%p441) target = $region44
        $region43: #{tpu_custom_call.1} parent=11 // pred_region
          _
        $region44: #{tpu_custom_call.1} parent=11 // pred_fallthru
          _
        // Predicated region
        $region45: #{tpu_custom_call.1} parent=11 // pred_check
          %p444 = pneg %p262
        $region46: #{tpu_custom_call.1} parent=11 // pred_check_branch
          %446 = sbr.rel (%p444) target = $region48
        $region47: #{tpu_custom_call.1} parent=11 // pred_region
          _
        $region48: #{tpu_custom_call.1} parent=11 // pred_fallthru
          _
        // Predicated region
        $region49: #{tpu_custom_call.1} parent=11 // pred_check
          %p447 = pneg %p283
        $region50: #{tpu_custom_call.1} parent=11 // pred_check_branch
          %449 = sbr.rel (%p447) target = $region52
        $region51: #{tpu_custom_call.1} parent=11 // pred_region
          _
        $region52: #{tpu_custom_call.1} parent=11 // pred_fallthru
          _
        // Predicated region
        $region53: #{tpu_custom_call.1} parent=11 // pred_check
          %p450 = pneg %p304
        $region54: #{tpu_custom_call.1} parent=11 // pred_check_branch
          %452 = sbr.rel (%p450) target = $region56
        $region55: #{tpu_custom_call.1} parent=11 // pred_region
          _
        $region56: #{tpu_custom_call.1} parent=11 // pred_fallthru
          _
        // Predicated region
        $region57: #{tpu_custom_call.1} parent=11 // pred_check
          %p453 = pneg %p325
        $region58: #{tpu_custom_call.1} parent=11 // pred_check_branch
          %455 = sbr.rel (%p453) target = $region60
        $region59: #{tpu_custom_call.1} parent=11 // pred_region
          _
        $region60: #{tpu_custom_call.1} parent=11 // pred_fallthru
          _
        // Predicated region
        $region61: #{tpu_custom_call.1} parent=11 // pred_check
          %p456 = pneg %p346
        $region62: #{tpu_custom_call.1} parent=11 // pred_check_branch
          %458 = sbr.rel (%p456) target = $region64
        $region63: #{tpu_custom_call.1} parent=11 // pred_region
          _
        $region64: #{tpu_custom_call.1} parent=11 // pred_fallthru
          _
        // Predicated region
        $region65: #{tpu_custom_call.1} parent=11 // pred_check
          %p459 = pneg %p367
        $region66: #{tpu_custom_call.1} parent=11 // pred_check_branch
          %461 = sbr.rel (%p459) target = $region68
        $region67: #{tpu_custom_call.1} parent=11 // pred_region
          _
        $region68: #{tpu_custom_call.1} parent=11 // pred_fallthru
          _
      $region12: #{tpu_custom_call.1} parent=5 // pred_fallthru
        _
      %p462 = scmp.lt.s32.totalorder %s28, 2
      // Predicated region
      $region69: #{tpu_custom_call.1} parent=5 // pred_check
        %p463 = pneg %p462
      $region70: #{tpu_custom_call.1} parent=5 // pred_check_branch
        %465 = sbr.rel (%p463) target = $region72
      $region71: #{tpu_custom_call.1} parent=5 // pred_region
        // Predicated region
        $region73: #{tpu_custom_call.1} parent=71 // pred_check
          %p466 = pneg %p88
        $region74: #{tpu_custom_call.1} parent=71 // pred_check_branch
          %468 = sbr.rel (%p466) target = $region76
        $region75: #{tpu_custom_call.1} parent=71 // pred_region
          %s469 = sand.u32 %s78, 1
          %s470 = scalar_lea.sflag [#allocation9], %s469
          %s471 = sand.u32 %s78, 1
          %s472 = smul.addr %s471, 8
          %s473 = scalar_lea.vmem [#allocation8], %s472
          %s475 = ssub.s32 128, 128
          %476 = vsyncadd %s470, %s475
          %s477 = sadd.s32 %s36, %s35
          %s478 = smul.addr %s477, 128
          %s479 = scalar_lea.hbm %s1, %s478
          %s481 = sshll.u32 %s473, 4
          %s482 = int_to_ptr.vmem [resolvable:$true] %s481
          %484 = dma.hbm_to_vmem [thread:$0]  %s479, 128, %s482, %s470
        $region76: #{tpu_custom_call.1} parent=71 // pred_fallthru
          _
      $region72: #{tpu_custom_call.1} parent=5 // pred_fallthru
        _
      %p485 = scmp.le.s32.totalorder 1, %s28
      %p486 = scmp.lt.s32.totalorder %s28, 3
      %p487 = pnand %p485, %p486
      %p488 = pneg %p487
      // Predicated region
      $region77: #{tpu_custom_call.1} parent=5 // pred_check
        _
      $region78: #{tpu_custom_call.1} parent=5 // pred_check_branch
        %490 = sbr.rel (%p487) target = $region80
      $region79: #{tpu_custom_call.1} parent=5 // pred_region
        %s491 = ssub.s32 %s28, 1
        // Predicated region
        $region81: #{tpu_custom_call.1} parent=79 // pred_check
          %p492 = pneg %p66
        $region82: #{tpu_custom_call.1} parent=79 // pred_check_branch
          %494 = sbr.rel (%p492) target = $region84
        $region83: #{tpu_custom_call.1} parent=79 // pred_region
          %495 = dma.done [#allocation6], 128
        $region84: #{tpu_custom_call.1} parent=79 // pred_fallthru
          _
        %s496 = sand.u32 %s81, 1
        %s497 = scalar_lea.sflag [#allocation9], %s496
        %s498 = sand.u32 %s81, 1
        %s499 = smul.addr %s498, 8
        %s500 = scalar_lea.vmem [#allocation8], %s499
        // Predicated region
        $region85: #{tpu_custom_call.1} parent=79 // pred_check
          %p501 = pneg %p94
        $region86: #{tpu_custom_call.1} parent=79 // pred_check_branch
          %503 = sbr.rel (%p501) target = $region88
        $region87: #{tpu_custom_call.1} parent=79 // pred_region
          %504 = dma.done %s497, 128
        $region88: #{tpu_custom_call.1} parent=79 // pred_fallthru
          _
        %p505 = pneg %p66
        %p506 = pneg %p63
        %s507 = sand.u32 %s81, 1
        %s508 = scalar_lea.sflag [#allocation9], %s507
        %s509 = sand.u32 %s81, 1
        %s510 = smul.addr %s509, 8
        %s511 = scalar_lea.vmem [#allocation8], %s510
        %p512 = pneg %p94
        %p513 = pneg %p91
        %p514 = pneg %p115
        %p515 = pneg %p112
        %p516 = pneg %p136
        %p517 = pneg %p133
        %p518 = pneg %p157
        %p519 = pneg %p154
        %p520 = pneg %p178
        %p521 = pneg %p175
        %p522 = pneg %p199
        %p523 = pneg %p196
        %p524 = pneg %p220
        %p525 = pneg %p217
        %p526 = pneg %p241
        %p527 = pneg %p238
        %p528 = pneg %p262
        %p529 = pneg %p259
        %p530 = pneg %p283
        %p531 = pneg %p280
        %p532 = pneg %p304
        %p533 = pneg %p301
        %p534 = pneg %p325
        %p535 = pneg %p322
        %p536 = pneg %p346
        %p537 = pneg %p343
        %p538 = pneg %p367
        %p539 = pneg %p364
        %p540 = pneg %p395
        %p541 = pneg %p392
        %s542 = sand.u32 %s382, 1
        %s543 = scalar_lea.sflag [#allocation7], %s542
        %s544 = sand.u32 %s382, 1
        %s545 = smul.addr %s544, 8
        %s546 = scalar_lea.vmem [#allocation10], %s545
        %p547 = scmp.eq.s32.totalorder %s38, 0
        // Predicated region
        $region89: #{tpu_custom_call.1} parent=79 // pred_check
          %p548 = pneg %p547
        $region90: #{tpu_custom_call.1} parent=79 // pred_check_branch
          %550 = sbr.rel (%p548) target = $region92
        $region91: #{tpu_custom_call.1} parent=79 // pred_region
          %v551 = vld [vmem:[#allocation5] sm:$0xff]
          %v552 = vld [vmem:[%s3] sm:$0xff]
          %v553 = vld [vmem:[%s3 + $0x8] sm:$0xff]
          %v554 = vld [vmem:[%s3 + $0x10] sm:$0xff]
          %v555 = vld [vmem:[%s3 + $0x18] sm:$0xff]
          %vm556 = vcmask 261120
          %v558 = vsel %vm556, %v551, 0
          %560 = vmatprep.subr.mxu0 0.0
          %561 = vmatpush1.msra.mxu0 %v552
          %562 = vmatprep.subr.mxu0 0.0
          %563 = vmatpush1.msra.mxu0 %v553
          %564 = vmatprep.subr.mxu0 0.0
          %565 = vmatpush1.msra.mxu0 %v554
          %566 = vmatprep.subr.mxu0 0.0
          %567 = vmatpush1.msra.mxu0 %v555
          %568 = vmatprep.subr.mxu0 0.0
          %569 = vmatpush1.msra.mxu0 0.0
          %570 = vmatprep.subr.mxu0 0.0
          %571 = vmatpush1.msra.mxu0 0.0
          %572 = vmatprep.subr.mxu0 0.0
          %573 = vmatpush1.msra.mxu0 0.0
          %574 = vmatprep.subr.mxu0 0.0
          %575 = vmatpush1.msra.mxu0 0.0
          %576 = vmatprep.subr.mxu0 0.0
          %577 = vmatpush1.msra.mxu0 0.0
          %578 = vmatprep.subr.mxu0 0.0
          %579 = vmatpush1.msra.mxu0 0.0
          %580 = vmatprep.subr.mxu0 0.0
          %581 = vmatpush1.msra.mxu0 0.0
          %582 = vmatprep.subr.mxu0 0.0
          %583 = vmatpush1.msra.mxu0 0.0
          %584 = vmatprep.subr.mxu0 0.0
          %585 = vmatpush1.msra.mxu0 0.0
          %586 = vmatprep.subr.mxu0 0.0
          %587 = vmatpush1.msra.mxu0 0.0
          %588 = vmatprep.subr.mxu0 0.0
          %589 = vmatpush1.msra.mxu0 0.0
          %590 = vmatprep.subr.mxu0 0.0
          %591 = vmatpush1.msra.mxu0 0.0
          %592 = vmatprep.subr.mxu0 0.0
          %593 = vmatpush1.msra.mxu0 0.0
          %594 = vmatprep.subr.mxu0 0.0
          %595 = vmatpush1.msra.mxu0 0.0
          %596 = vmatprep.subr.mxu0 0.0
          %597 = vmatpush1.msra.mxu0 0.0
          %598 = vmatprep.subr.mxu0 0.0
          %599 = vmatpush1.msra.mxu0 0.0
          %600 = vmatprep.subr.mxu0 0.0
          %601 = vmatpush1.msra.mxu0 0.0
          %602 = vmatprep.subr.mxu0 0.0
          %603 = vmatpush1.msra.mxu0 0.0
          %604 = vmatprep.subr.mxu0 0.0
          %605 = vmatpush1.msra.mxu0 0.0
          %606 = vmatprep.subr.mxu0 0.0
          %607 = vmatpush1.msra.mxu0 0.0
          %608 = vmatprep.subr.mxu0 0.0
          %609 = vmatpush1.msra.mxu0 0.0
          %610 = vmatprep.subr.mxu0 0.0
          %611 = vmatpush1.msra.mxu0 0.0
          %612 = vmatprep.subr.mxu0 0.0
          %613 = vmatpush1.msra.mxu0 0.0
          %614 = vmatprep.subr.mxu0 0.0
          %615 = vmatpush1.msra.mxu0 0.0
          %616 = vmatprep.subr.mxu0 0.0
          %617 = vmatpush1.msra.mxu0 0.0
          %618 = vmatprep.subr.mxu0 0.0
          %619 = vmatpush1.msra.mxu0 0.0
          %620 = vmatprep.subr.mxu0 0.0
          %621 = vmatpush1.msra.mxu0 0.0
          %622 = vmatprep.subr.mxu0 0.0
          %623 = vmatpush1.msra.mxu0 0.0
          %624 = vmatprep.mubr.f32.mxu0 0.0
          %625 = vmatmul.mubr.f32.gmra.mrb[0].mxu0 %v558
          %v626 = vpop.f32.mrb[0].mxu0
          %v627 = vadd.f32 0.0, %v626
          %v628 = vpop.f32.mrb[0].mxu0
          %629 = vdwg.mxu0
          %630 = vst.msk [vmem:[#allocation2] sm:$0xff] %vm556, %v627
          %v631 = vld [vmem:[%s4] sm:$0xff]
          %v632 = vld [vmem:[%s4 + $0x8] sm:$0xff]
          %v633 = vld [vmem:[%s4 + $0x10] sm:$0xff]
          %v634 = vld [vmem:[%s4 + $0x18] sm:$0xff]
          %635 = vmatprep.subr.mxu0 0.0
          %636 = vmatpush1.msra.mxu0 %v631
          %637 = vmatprep.subr.mxu0 0.0
          %638 = vmatpush1.msra.mxu0 %v632
          %639 = vmatprep.subr.mxu0 0.0
          %640 = vmatpush1.msra.mxu0 %v633
          %641 = vmatprep.subr.mxu0 0.0
          %642 = vmatpush1.msra.mxu0 %v634
          %643 = vmatprep.subr.mxu0 0.0
          %644 = vmatpush1.msra.mxu0 0.0
          %645 = vmatprep.subr.mxu0 0.0
          %646 = vmatpush1.msra.mxu0 0.0
          %647 = vmatprep.subr.mxu0 0.0
          %648 = vmatpush1.msra.mxu0 0.0
          %649 = vmatprep.subr.mxu0 0.0
          %650 = vmatpush1.msra.mxu0 0.0
          %651 = vmatprep.subr.mxu0 0.0
          %652 = vmatpush1.msra.mxu0 0.0
          %653 = vmatprep.subr.mxu0 0.0
          %654 = vmatpush1.msra.mxu0 0.0
          %655 = vmatprep.subr.mxu0 0.0
          %656 = vmatpush1.msra.mxu0 0.0
          %657 = vmatprep.subr.mxu0 0.0
          %658 = vmatpush1.msra.mxu0 0.0
          %659 = vmatprep.subr.mxu0 0.0
          %660 = vmatpush1.msra.mxu0 0.0
          %661 = vmatprep.subr.mxu0 0.0
          %662 = vmatpush1.msra.mxu0 0.0
          %663 = vmatprep.subr.mxu0 0.0
          %664 = vmatpush1.msra.mxu0 0.0
          %665 = vmatprep.subr.mxu0 0.0
          %666 = vmatpush1.msra.mxu0 0.0
          %667 = vmatprep.subr.mxu0 0.0
          %668 = vmatpush1.msra.mxu0 0.0
          %669 = vmatprep.subr.mxu0 0.0
          %670 = vmatpush1.msra.mxu0 0.0
          %671 = vmatprep.subr.mxu0 0.0
          %672 = vmatpush1.msra.mxu0 0.0
          %673 = vmatprep.subr.mxu0 0.0
          %674 = vmatpush1.msra.mxu0 0.0
          %675 = vmatprep.subr.mxu0 0.0
          %676 = vmatpush1.msra.mxu0 0.0
          %677 = vmatprep.subr.mxu0 0.0
          %678 = vmatpush1.msra.mxu0 0.0
          %679 = vmatprep.subr.mxu0 0.0
          %680 = vmatpush1.msra.mxu0 0.0
          %681 = vmatprep.subr.mxu0 0.0
          %682 = vmatpush1.msra.mxu0 0.0
          %683 = vmatprep.subr.mxu0 0.0
          %684 = vmatpush1.msra.mxu0 0.0
          %685 = vmatprep.subr.mxu0 0.0
          %686 = vmatpush1.msra.mxu0 0.0
          %687 = vmatprep.subr.mxu0 0.0
          %688 = vmatpush1.msra.mxu0 0.0
          %689 = vmatprep.subr.mxu0 0.0
          %690 = vmatpush1.msra.mxu0 0.0
          %691 = vmatprep.subr.mxu0 0.0
          %692 = vmatpush1.msra.mxu0 0.0
          %693 = vmatprep.subr.mxu0 0.0
          %694 = vmatpush1.msra.mxu0 0.0
          %695 = vmatprep.subr.mxu0 0.0
          %696 = vmatpush1.msra.mxu0 0.0
          %697 = vmatprep.subr.mxu0 0.0
          %698 = vmatpush1.msra.mxu0 0.0
          %699 = vmatprep.mubr.f32.mxu0 0.0
          %700 = vmatmul.mubr.f32.gmra.mrb[0].mxu0 %v558
          %v701 = vpop.f32.mrb[0].mxu0
          %v702 = vadd.f32 0.0, %v701
          %v703 = vpop.f32.mrb[0].mxu0
          %704 = vdwg.mxu0
          %705 = vst.msk [vmem:[#allocation3] sm:$0xff] %vm556, %v702
        $region92: #{tpu_custom_call.1} parent=79 // pred_fallthru
          _
        %v706 = vld [vmem:[%s500] sm:$0xff]
        %v707 = vld [vmem:[%s2] sm:$0xff]
        %v708 = vld [vmem:[%s2 + $0x8] sm:$0xff]
        %v709 = vld [vmem:[%s2 + $0x10] sm:$0xff]
        %v710 = vld [vmem:[%s2 + $0x18] sm:$0xff]
        %vm711 = vcmask 261120
        %v713 = vsel %vm711, %v706, 0
        %715 = vmatprep.subr.mxu0 0.0
        %716 = vmatpush1.msra.mxu0 %v707
        %717 = vmatprep.subr.mxu0 0.0
        %718 = vmatpush1.msra.mxu0 %v708
        %719 = vmatprep.subr.mxu0 0.0
        %720 = vmatpush1.msra.mxu0 %v709
        %721 = vmatprep.subr.mxu0 0.0
        %722 = vmatpush1.msra.mxu0 %v710
        %723 = vmatprep.subr.mxu0 0.0
        %724 = vmatpush1.msra.mxu0 0.0
        %725 = vmatprep.subr.mxu0 0.0
        %726 = vmatpush1.msra.mxu0 0.0
        %727 = vmatprep.subr.mxu0 0.0
        %728 = vmatpush1.msra.mxu0 0.0
        %729 = vmatprep.subr.mxu0 0.0
        %730 = vmatpush1.msra.mxu0 0.0
        %731 = vmatprep.subr.mxu0 0.0
        %732 = vmatpush1.msra.mxu0 0.0
        %733 = vmatprep.subr.mxu0 0.0
        %734 = vmatpush1.msra.mxu0 0.0
        %735 = vmatprep.subr.mxu0 0.0
        %736 = vmatpush1.msra.mxu0 0.0
        %737 = vmatprep.subr.mxu0 0.0
        %738 = vmatpush1.msra.mxu0 0.0
        %739 = vmatprep.subr.mxu0 0.0
        %740 = vmatpush1.msra.mxu0 0.0
        %741 = vmatprep.subr.mxu0 0.0
        %742 = vmatpush1.msra.mxu0 0.0
        %743 = vmatprep.subr.mxu0 0.0
        %744 = vmatpush1.msra.mxu0 0.0
        %745 = vmatprep.subr.mxu0 0.0
        %746 = vmatpush1.msra.mxu0 0.0
        %747 = vmatprep.subr.mxu0 0.0
        %748 = vmatpush1.msra.mxu0 0.0
        %749 = vmatprep.subr.mxu0 0.0
        %750 = vmatpush1.msra.mxu0 0.0
        %751 = vmatprep.subr.mxu0 0.0
        %752 = vmatpush1.msra.mxu0 0.0
        %753 = vmatprep.subr.mxu0 0.0
        %754 = vmatpush1.msra.mxu0 0.0
        %755 = vmatprep.subr.mxu0 0.0
        %756 = vmatpush1.msra.mxu0 0.0
        %757 = vmatprep.subr.mxu0 0.0
        %758 = vmatpush1.msra.mxu0 0.0
        %759 = vmatprep.subr.mxu0 0.0
        %760 = vmatpush1.msra.mxu0 0.0
        %761 = vmatprep.subr.mxu0 0.0
        %762 = vmatpush1.msra.mxu0 0.0
        %763 = vmatprep.subr.mxu0 0.0
        %764 = vmatpush1.msra.mxu0 0.0
        %765 = vmatprep.subr.mxu0 0.0
        %766 = vmatpush1.msra.mxu0 0.0
        %767 = vmatprep.subr.mxu0 0.0
        %768 = vmatpush1.msra.mxu0 0.0
        %769 = vmatprep.subr.mxu0 0.0
        %770 = vmatpush1.msra.mxu0 0.0
        %771 = vmatprep.subr.mxu0 0.0
        %772 = vmatpush1.msra.mxu0 0.0
        %773 = vmatprep.subr.mxu0 0.0
        %774 = vmatpush1.msra.mxu0 0.0
        %775 = vmatprep.subr.mxu0 0.0
        %776 = vmatpush1.msra.mxu0 0.0
        %777 = vmatprep.subr.mxu0 0.0
        %778 = vmatpush1.msra.mxu0 0.0
        %779 = vmatprep.mubr.f32.mxu0 0.0
        %780 = vmatmul.mubr.f32.gmra.mrb[0].mxu0 %v713
        %v781 = vpop.f32.mrb[0].mxu0
        %v782 = vadd.f32 0.0, %v781
        %v783 = vpop.f32.mrb[0].mxu0
        %784 = vdwg.mxu0
        %v785 = vld [vmem:[#allocation2] sm:$0xff]
        %v786 = vld [vmem:[#allocation3] sm:$0xff]
        %vm787 = vcmask 64512
        %v789 = vsel %vm787, %v782, 0
        %v792 = vsel %vm787, %v785, 0
        %794 = vmatprep.subr.mxu0 0.0
        %795 = vmatpush1.xpose.msra.mxu0 %v792
        %796 = vmatprep.subr.mxu0 0.0
        %797 = vmatpush1.xpose.msra.mxu0 0.0
        %798 = vmatprep.subr.mxu0 0.0
        %799 = vmatpush1.xpose.msra.mxu0 0.0
        %800 = vmatprep.subr.mxu0 0.0
        %801 = vmatpush1.xpose.msra.mxu0 0.0
        %802 = vmatprep.subr.mxu0 0.0
        %803 = vmatpush1.xpose.msra.mxu0 0.0
        %804 = vmatprep.subr.mxu0 0.0
        %805 = vmatpush1.xpose.msra.mxu0 0.0
        %806 = vmatprep.subr.mxu0 0.0
        %807 = vmatpush1.xpose.msra.mxu0 0.0
        %808 = vmatprep.subr.mxu0 0.0
        %809 = vmatpush1.xpose.msra.mxu0 0.0
        %810 = vmatprep.subr.mxu0 0.0
        %811 = vmatpush1.xpose.msra.mxu0 0.0
        %812 = vmatprep.subr.mxu0 0.0
        %813 = vmatpush1.xpose.msra.mxu0 0.0
        %814 = vmatprep.subr.mxu0 0.0
        %815 = vmatpush1.xpose.msra.mxu0 0.0
        %816 = vmatprep.subr.mxu0 0.0
        %817 = vmatpush1.xpose.msra.mxu0 0.0
        %818 = vmatprep.subr.mxu0 0.0
        %819 = vmatpush1.xpose.msra.mxu0 0.0
        %820 = vmatprep.subr.mxu0 0.0
        %821 = vmatpush1.xpose.msra.mxu0 0.0
        %822 = vmatprep.subr.mxu0 0.0
        %823 = vmatpush1.xpose.msra.mxu0 0.0
        %824 = vmatprep.subr.mxu0 0.0
        %825 = vmatpush1.xpose.msra.mxu0 0.0
        %826 = vmatprep.subr.mxu0 0.0
        %827 = vmatpush1.xpose.msra.mxu0 0.0
        %828 = vmatprep.subr.mxu0 0.0
        %829 = vmatpush1.xpose.msra.mxu0 0.0
        %830 = vmatprep.subr.mxu0 0.0
        %831 = vmatpush1.xpose.msra.mxu0 0.0
        %832 = vmatprep.subr.mxu0 0.0
        %833 = vmatpush1.xpose.msra.mxu0 0.0
        %834 = vmatprep.subr.mxu0 0.0
        %835 = vmatpush1.xpose.msra.mxu0 0.0
        %836 = vmatprep.subr.mxu0 0.0
        %837 = vmatpush1.xpose.msra.mxu0 0.0
        %838 = vmatprep.subr.mxu0 0.0
        %839 = vmatpush1.xpose.msra.mxu0 0.0
        %840 = vmatprep.subr.mxu0 0.0
        %841 = vmatpush1.xpose.msra.mxu0 0.0
        %842 = vmatprep.subr.mxu0 0.0
        %843 = vmatpush1.xpose.msra.mxu0 0.0
        %844 = vmatprep.subr.mxu0 0.0
        %845 = vmatpush1.xpose.msra.mxu0 0.0
        %846 = vmatprep.subr.mxu0 0.0
        %847 = vmatpush1.xpose.msra.mxu0 0.0
        %848 = vmatprep.subr.mxu0 0.0
        %849 = vmatpush1.xpose.msra.mxu0 0.0
        %850 = vmatprep.subr.mxu0 0.0
        %851 = vmatpush1.xpose.msra.mxu0 0.0
        %852 = vmatprep.subr.mxu0 0.0
        %853 = vmatpush1.xpose.msra.mxu0 0.0
        %854 = vmatprep.subr.mxu0 0.0
        %855 = vmatpush1.xpose.msra.mxu0 0.0
        %856 = vmatprep.subr.mxu0 0.0
        %857 = vmatpush1.xpose.msra.mxu0 0.0
        %858 = vmatprep.mubr.f32.mxu0 0.0
        %859 = vmatmul.mubr.f32.gmra.mrb[0].mxu0 %v789
        %v860 = vpop.f32.mrb[0].mxu0
        %v861 = vadd.f32 0.0, %v860
        %v862 = vpop.f32.mrb[0].mxu0
        %863 = vdwg.mxu0
        %v864 = vsel %vm787, %v861, -inf
        %865 = vmax.xlane.f32.xlu0 %v864
        %v866 = vpop.xlane.xlu0 %865
        %v867 = vsub.f32 %v861, %v866
        %v868 = vmul.f32 %v867, 1.442695
        %v869 = vpow.pop %v868
        %v870 = vsel %vm787, %v869, 0.0
        %871 = vadd.xlane.f32.xlu0 %v870
        %v872 = vpop.xlane.xlu0 %871
        %v873 = vrcp.pop %v872
        %v874 = vmul.f32 %v869, %v873
        %v876 = vsel %vm787, %v874, 0
        %878 = vmatprep.subr.mxu0 0.0
        %879 = vmatpush1.msra.mxu0 %v786
        %880 = vmatprep.subr.mxu0 0.0
        %881 = vmatpush1.msra.mxu0 0.0
        %882 = vmatprep.subr.mxu0 0.0
        %883 = vmatpush1.msra.mxu0 0.0
        %884 = vmatprep.subr.mxu0 0.0
        %885 = vmatpush1.msra.mxu0 0.0
        %886 = vmatprep.subr.mxu0 0.0
        %887 = vmatpush1.msra.mxu0 0.0
        %888 = vmatprep.subr.mxu0 0.0
        %889 = vmatpush1.msra.mxu0 0.0
        %890 = vmatprep.subr.mxu0 0.0
        %891 = vmatpush1.msra.mxu0 0.0
        %892 = vmatprep.subr.mxu0 0.0
        %893 = vmatpush1.msra.mxu0 0.0
        %894 = vmatprep.subr.mxu0 0.0
        %895 = vmatpush1.msra.mxu0 0.0
        %896 = vmatprep.subr.mxu0 0.0
        %897 = vmatpush1.msra.mxu0 0.0
        %898 = vmatprep.subr.mxu0 0.0
        %899 = vmatpush1.msra.mxu0 0.0
        %900 = vmatprep.subr.mxu0 0.0
        %901 = vmatpush1.msra.mxu0 0.0
        %902 = vmatprep.subr.mxu0 0.0
        %903 = vmatpush1.msra.mxu0 0.0
        %904 = vmatprep.subr.mxu0 0.0
        %905 = vmatpush1.msra.mxu0 0.0
        %906 = vmatprep.subr.mxu0 0.0
        %907 = vmatpush1.msra.mxu0 0.0
        %908 = vmatprep.subr.mxu0 0.0
        %909 = vmatpush1.msra.mxu0 0.0
        %910 = vmatprep.subr.mxu0 0.0
        %911 = vmatpush1.msra.mxu0 0.0
        %912 = vmatprep.subr.mxu0 0.0
        %913 = vmatpush1.msra.mxu0 0.0
        %914 = vmatprep.subr.mxu0 0.0
        %915 = vmatpush1.msra.mxu0 0.0
        %916 = vmatprep.subr.mxu0 0.0
        %917 = vmatpush1.msra.mxu0 0.0
        %918 = vmatprep.subr.mxu0 0.0
        %919 = vmatpush1.msra.mxu0 0.0
        %920 = vmatprep.subr.mxu0 0.0
        %921 = vmatpush1.msra.mxu0 0.0
        %922 = vmatprep.subr.mxu0 0.0
        %923 = vmatpush1.msra.mxu0 0.0
        %924 = vmatprep.subr.mxu0 0.0
        %925 = vmatpush1.msra.mxu0 0.0
        %926 = vmatprep.subr.mxu0 0.0
        %927 = vmatpush1.msra.mxu0 0.0
        %928 = vmatprep.subr.mxu0 0.0
        %929 = vmatpush1.msra.mxu0 0.0
        %930 = vmatprep.subr.mxu0 0.0
        %931 = vmatpush1.msra.mxu0 0.0
        %932 = vmatprep.subr.mxu0 0.0
        %933 = vmatpush1.msra.mxu0 0.0
        %934 = vmatprep.subr.mxu0 0.0
        %935 = vmatpush1.msra.mxu0 0.0
        %936 = vmatprep.subr.mxu0 0.0
        %937 = vmatpush1.msra.mxu0 0.0
        %938 = vmatprep.subr.mxu0 0.0
        %939 = vmatpush1.msra.mxu0 0.0
        %940 = vmatprep.subr.mxu0 0.0
        %941 = vmatpush1.msra.mxu0 0.0
        %942 = vmatprep.mubr.f32.mxu0 0.0
        %943 = vmatmul.mubr.f32.gmra.mrb[0].mxu0 %v876
        %v944 = vpop.f32.mrb[0].mxu0
        %v945 = vadd.f32 0.0, %v944
        %v946 = vpop.f32.mrb[0].mxu0
        %947 = vdwg.mxu0
        %948 = vst.msk [vmem:[#allocation4] sm:$0xff] %vm787, %v945
        %949 = vrot.lane.b32.xlu0 %v782, 120
        %v950 = vpop.permute.xlu0 %949
        %951 = vrot.lane.b32.xlu0 %v785, 120
        %v952 = vpop.permute.xlu0 %951
        %v953 = vsel %vm787, %v950, 0
        %v955 = vsel %vm787, %v952, 0
        %957 = vmatprep.subr.mxu0 0.0
        %958 = vmatpush1.xpose.msra.mxu0 %v955
        %959 = vmatprep.subr.mxu0 0.0
        %960 = vmatpush1.xpose.msra.mxu0 0.0
        %961 = vmatprep.subr.mxu0 0.0
        %962 = vmatpush1.xpose.msra.mxu0 0.0
        %963 = vmatprep.subr.mxu0 0.0
        %964 = vmatpush1.xpose.msra.mxu0 0.0
        %965 = vmatprep.subr.mxu0 0.0
        %966 = vmatpush1.xpose.msra.mxu0 0.0
        %967 = vmatprep.subr.mxu0 0.0
        %968 = vmatpush1.xpose.msra.mxu0 0.0
        %969 = vmatprep.subr.mxu0 0.0
        %970 = vmatpush1.xpose.msra.mxu0 0.0
        %971 = vmatprep.subr.mxu0 0.0
        %972 = vmatpush1.xpose.msra.mxu0 0.0
        %973 = vmatprep.subr.mxu0 0.0
        %974 = vmatpush1.xpose.msra.mxu0 0.0
        %975 = vmatprep.subr.mxu0 0.0
        %976 = vmatpush1.xpose.msra.mxu0 0.0
        %977 = vmatprep.subr.mxu0 0.0
        %978 = vmatpush1.xpose.msra.mxu0 0.0
        %979 = vmatprep.subr.mxu0 0.0
        %980 = vmatpush1.xpose.msra.mxu0 0.0
        %981 = vmatprep.subr.mxu0 0.0
        %982 = vmatpush1.xpose.msra.mxu0 0.0
        %983 = vmatprep.subr.mxu0 0.0
        %984 = vmatpush1.xpose.msra.mxu0 0.0
        %985 = vmatprep.subr.mxu0 0.0
        %986 = vmatpush1.xpose.msra.mxu0 0.0
        %987 = vmatprep.subr.mxu0 0.0
        %988 = vmatpush1.xpose.msra.mxu0 0.0
        %989 = vmatprep.subr.mxu0 0.0
        %990 = vmatpush1.xpose.msra.mxu0 0.0
        %991 = vmatprep.subr.mxu0 0.0
        %992 = vmatpush1.xpose.msra.mxu0 0.0
        %993 = vmatprep.subr.mxu0 0.0
        %994 = vmatpush1.xpose.msra.mxu0 0.0
        %995 = vmatprep.subr.mxu0 0.0
        %996 = vmatpush1.xpose.msra.mxu0 0.0
        %997 = vmatprep.subr.mxu0 0.0
        %998 = vmatpush1.xpose.msra.mxu0 0.0
        %999 = vmatprep.subr.mxu0 0.0
        %1000 = vmatpush1.xpose.msra.mxu0 0.0
        %1001 = vmatprep.subr.mxu0 0.0
        %1002 = vmatpush1.xpose.msra.mxu0 0.0
        %1003 = vmatprep.subr.mxu0 0.0
        %1004 = vmatpush1.xpose.msra.mxu0 0.0
        %1005 = vmatprep.subr.mxu0 0.0
        %1006 = vmatpush1.xpose.msra.mxu0 0.0
        %1007 = vmatprep.subr.mxu0 0.0
        %1008 = vmatpush1.xpose.msra.mxu0 0.0
        %1009 = vmatprep.subr.mxu0 0.0
        %1010 = vmatpush1.xpose.msra.mxu0 0.0
        %1011 = vmatprep.subr.mxu0 0.0
        %1012 = vmatpush1.xpose.msra.mxu0 0.0
        %1013 = vmatprep.subr.mxu0 0.0
        %1014 = vmatpush1.xpose.msra.mxu0 0.0
        %1015 = vmatprep.subr.mxu0 0.0
        %1016 = vmatpush1.xpose.msra.mxu0 0.0
        %1017 = vmatprep.subr.mxu0 0.0
        %1018 = vmatpush1.xpose.msra.mxu0 0.0
        %1019 = vmatprep.subr.mxu0 0.0
        %1020 = vmatpush1.xpose.msra.mxu0 0.0
        %1021 = vmatprep.mubr.f32.mxu0 0.0
        %1022 = vmatmul.mubr.f32.gmra.mrb[0].mxu0 %v953
        %v1023 = vpop.f32.mrb[0].mxu0
        %v1024 = vadd.f32 0.0, %v1023
        %v1025 = vpop.f32.mrb[0].mxu0
        %1026 = vdwg.mxu0
        %v1027 = vsel %vm787, %v1024, -inf
        %1028 = vmax.xlane.f32.xlu0 %v1027
        %v1029 = vpop.xlane.xlu0 %1028
        %v1030 = vsub.f32 %v1024, %v1029
        %v1031 = vmul.f32 %v1030, 1.442695
        %v1032 = vpow.pop %v1031
        %v1033 = vsel %vm787, %v1032, 0.0
        %1034 = vadd.xlane.f32.xlu0 %v1033
        %v1035 = vpop.xlane.xlu0 %1034
        %v1036 = vrcp.pop %v1035
        %v1037 = vmul.f32 %v1032, %v1036
        %1039 = vrot.lane.b32.xlu0 %v786, 120
        %v1040 = vpop.permute.xlu0 %1039
        %v1043 = vsel %vm787, %v1037, 0
        %1045 = vmatprep.subr.mxu0 0.0
        %1046 = vmatpush1.msra.mxu0 %v1040
        %1047 = vmatprep.subr.mxu0 0.0
        %1048 = vmatpush1.msra.mxu0 0.0
        %1049 = vmatprep.subr.mxu0 0.0
        %1050 = vmatpush1.msra.mxu0 0.0
        %1051 = vmatprep.subr.mxu0 0.0
        %1052 = vmatpush1.msra.mxu0 0.0
        %1053 = vmatprep.subr.mxu0 0.0
        %1054 = vmatpush1.msra.mxu0 0.0
        %1055 = vmatprep.subr.mxu0 0.0
        %1056 = vmatpush1.msra.mxu0 0.0
        %1057 = vmatprep.subr.mxu0 0.0
        %1058 = vmatpush1.msra.mxu0 0.0
        %1059 = vmatprep.subr.mxu0 0.0
        %1060 = vmatpush1.msra.mxu0 0.0
        %1061 = vmatprep.subr.mxu0 0.0
        %1062 = vmatpush1.msra.mxu0 0.0
        %1063 = vmatprep.subr.mxu0 0.0
        %1064 = vmatpush1.msra.mxu0 0.0
        %1065 = vmatprep.subr.mxu0 0.0
        %1066 = vmatpush1.msra.mxu0 0.0
        %1067 = vmatprep.subr.mxu0 0.0
        %1068 = vmatpush1.msra.mxu0 0.0
        %1069 = vmatprep.subr.mxu0 0.0
        %1070 = vmatpush1.msra.mxu0 0.0
        %1071 = vmatprep.subr.mxu0 0.0
        %1072 = vmatpush1.msra.mxu0 0.0
        %1073 = vmatprep.subr.mxu0 0.0
        %1074 = vmatpush1.msra.mxu0 0.0
        %1075 = vmatprep.subr.mxu0 0.0
        %1076 = vmatpush1.msra.mxu0 0.0
        %1077 = vmatprep.subr.mxu0 0.0
        %1078 = vmatpush1.msra.mxu0 0.0
        %1079 = vmatprep.subr.mxu0 0.0
        %1080 = vmatpush1.msra.mxu0 0.0
        %1081 = vmatprep.subr.mxu0 0.0
        %1082 = vmatpush1.msra.mxu0 0.0
        %1083 = vmatprep.subr.mxu0 0.0
        %1084 = vmatpush1.msra.mxu0 0.0
        %1085 = vmatprep.subr.mxu0 0.0
        %1086 = vmatpush1.msra.mxu0 0.0
        %1087 = vmatprep.subr.mxu0 0.0
        %1088 = vmatpush1.msra.mxu0 0.0
        %1089 = vmatprep.subr.mxu0 0.0
        %1090 = vmatpush1.msra.mxu0 0.0
        %1091 = vmatprep.subr.mxu0 0.0
        %1092 = vmatpush1.msra.mxu0 0.0
        %1093 = vmatprep.subr.mxu0 0.0
        %1094 = vmatpush1.msra.mxu0 0.0
        %1095 = vmatprep.subr.mxu0 0.0
        %1096 = vmatpush1.msra.mxu0 0.0
        %1097 = vmatprep.subr.mxu0 0.0
        %1098 = vmatpush1.msra.mxu0 0.0
        %1099 = vmatprep.subr.mxu0 0.0
        %1100 = vmatpush1.msra.mxu0 0.0
        %1101 = vmatprep.subr.mxu0 0.0
        %1102 = vmatpush1.msra.mxu0 0.0
        %1103 = vmatprep.subr.mxu0 0.0
        %1104 = vmatpush1.msra.mxu0 0.0
        %1105 = vmatprep.subr.mxu0 0.0
        %1106 = vmatpush1.msra.mxu0 0.0
        %1107 = vmatprep.subr.mxu0 0.0
        %1108 = vmatpush1.msra.mxu0 0.0
        %1109 = vmatprep.mubr.f32.mxu0 0.0
        %1110 = vmatmul.mubr.f32.gmra.mrb[0].mxu0 %v1043
        %v1111 = vpop.f32.mrb[0].mxu0
        %v1112 = vadd.f32 0.0, %v1111
        %v1113 = vpop.f32.mrb[0].mxu0
        %1114 = vdwg.mxu0
        %1116 = vrot.lane.b32.xlu0 %v1112, 8
        %v1117 = vpop.permute.xlu0 %1116
        %vm1119 = vcmask 130112
        %1120 = vst.msk [vmem:[#allocation4] sm:$0xff] %vm1119, %v1117
        %1121 = vrot.lane.b32.xlu0 %v782, 112
        %v1122 = vpop.permute.xlu0 %1121
        %1123 = vrot.lane.b32.xlu0 %v785, 112
        %v1124 = vpop.permute.xlu0 %1123
        %v1125 = vsel %vm787, %v1122, 0
        %v1127 = vsel %vm787, %v1124, 0
        %1129 = vmatprep.subr.mxu0 0.0
        %1130 = vmatpush1.xpose.msra.mxu0 %v1127
        %1131 = vmatprep.subr.mxu0 0.0
        %1132 = vmatpush1.xpose.msra.mxu0 0.0
        %1133 = vmatprep.subr.mxu0 0.0
        %1134 = vmatpush1.xpose.msra.mxu0 0.0
        %1135 = vmatprep.subr.mxu0 0.0
        %1136 = vmatpush1.xpose.msra.mxu0 0.0
        %1137 = vmatprep.subr.mxu0 0.0
        %1138 = vmatpush1.xpose.msra.mxu0 0.0
        %1139 = vmatprep.subr.mxu0 0.0
        %1140 = vmatpush1.xpose.msra.mxu0 0.0
        %1141 = vmatprep.subr.mxu0 0.0
        %1142 = vmatpush1.xpose.msra.mxu0 0.0
        %1143 = vmatprep.subr.mxu0 0.0
        %1144 = vmatpush1.xpose.msra.mxu0 0.0
        %1145 = vmatprep.subr.mxu0 0.0
        %1146 = vmatpush1.xpose.msra.mxu0 0.0
        %1147 = vmatprep.subr.mxu0 0.0
        %1148 = vmatpush1.xpose.msra.mxu0 0.0
        %1149 = vmatprep.subr.mxu0 0.0
        %1150 = vmatpush1.xpose.msra.mxu0 0.0
        %1151 = vmatprep.subr.mxu0 0.0
        %1152 = vmatpush1.xpose.msra.mxu0 0.0
        %1153 = vmatprep.subr.mxu0 0.0
        %1154 = vmatpush1.xpose.msra.mxu0 0.0
        %1155 = vmatprep.subr.mxu0 0.0
        %1156 = vmatpush1.xpose.msra.mxu0 0.0
        %1157 = vmatprep.subr.mxu0 0.0
        %1158 = vmatpush1.xpose.msra.mxu0 0.0
        %1159 = vmatprep.subr.mxu0 0.0
        %1160 = vmatpush1.xpose.msra.mxu0 0.0
        %1161 = vmatprep.subr.mxu0 0.0
        %1162 = vmatpush1.xpose.msra.mxu0 0.0
        %1163 = vmatprep.subr.mxu0 0.0
        %1164 = vmatpush1.xpose.msra.mxu0 0.0
        %1165 = vmatprep.subr.mxu0 0.0
        %1166 = vmatpush1.xpose.msra.mxu0 0.0
        %1167 = vmatprep.subr.mxu0 0.0
        %1168 = vmatpush1.xpose.msra.mxu0 0.0
        %1169 = vmatprep.subr.mxu0 0.0
        %1170 = vmatpush1.xpose.msra.mxu0 0.0
        %1171 = vmatprep.subr.mxu0 0.0
        %1172 = vmatpush1.xpose.msra.mxu0 0.0
        %1173 = vmatprep.subr.mxu0 0.0
        %1174 = vmatpush1.xpose.msra.mxu0 0.0
        %1175 = vmatprep.subr.mxu0 0.0
        %1176 = vmatpush1.xpose.msra.mxu0 0.0
        %1177 = vmatprep.subr.mxu0 0.0
        %1178 = vmatpush1.xpose.msra.mxu0 0.0
        %1179 = vmatprep.subr.mxu0 0.0
        %1180 = vmatpush1.xpose.msra.mxu0 0.0
        %1181 = vmatprep.subr.mxu0 0.0
        %1182 = vmatpush1.xpose.msra.mxu0 0.0
        %1183 = vmatprep.subr.mxu0 0.0
        %1184 = vmatpush1.xpose.msra.mxu0 0.0
        %1185 = vmatprep.subr.mxu0 0.0
        %1186 = vmatpush1.xpose.msra.mxu0 0.0
        %1187 = vmatprep.subr.mxu0 0.0
        %1188 = vmatpush1.xpose.msra.mxu0 0.0
        %1189 = vmatprep.subr.mxu0 0.0
        %1190 = vmatpush1.xpose.msra.mxu0 0.0
        %1191 = vmatprep.subr.mxu0 0.0
        %1192 = vmatpush1.xpose.msra.mxu0 0.0
        %1193 = vmatprep.mubr.f32.mxu0 0.0
        %1194 = vmatmul.mubr.f32.gmra.mrb[0].mxu0 %v1125
        %v1195 = vpop.f32.mrb[0].mxu0
        %v1196 = vadd.f32 0.0, %v1195
        %v1197 = vpop.f32.mrb[0].mxu0
        %1198 = vdwg.mxu0
        %v1199 = vsel %vm787, %v1196, -inf
        %1200 = vmax.xlane.f32.xlu0 %v1199
        %v1201 = vpop.xlane.xlu0 %1200
        %v1202 = vsub.f32 %v1196, %v1201
        %v1203 = vmul.f32 %v1202, 1.442695
        %v1204 = vpow.pop %v1203
        %v1205 = vsel %vm787, %v1204, 0.0
        %1206 = vadd.xlane.f32.xlu0 %v1205
        %v1207 = vpop.xlane.xlu0 %1206
        %v1208 = vrcp.pop %v1207
        %v1209 = vmul.f32 %v1204, %v1208
        %1210 = vrot.lane.b32.xlu0 %v786, 112
        %v1211 = vpop.permute.xlu0 %1210
        %v1214 = vsel %vm787, %v1209, 0
        %1216 = vmatprep.subr.mxu0 0.0
        %1217 = vmatpush1.msra.mxu0 %v1211
        %1218 = vmatprep.subr.mxu0 0.0
        %1219 = vmatpush1.msra.mxu0 0.0
        %1220 = vmatprep.subr.mxu0 0.0
        %1221 = vmatpush1.msra.mxu0 0.0
        %1222 = vmatprep.subr.mxu0 0.0
        %1223 = vmatpush1.msra.mxu0 0.0
        %1224 = vmatprep.subr.mxu0 0.0
        %1225 = vmatpush1.msra.mxu0 0.0
        %1226 = vmatprep.subr.mxu0 0.0
        %1227 = vmatpush1.msra.mxu0 0.0
        %1228 = vmatprep.subr.mxu0 0.0
        %1229 = vmatpush1.msra.mxu0 0.0
        %1230 = vmatprep.subr.mxu0 0.0
        %1231 = vmatpush1.msra.mxu0 0.0
        %1232 = vmatprep.subr.mxu0 0.0
        %1233 = vmatpush1.msra.mxu0 0.0
        %1234 = vmatprep.subr.mxu0 0.0
        %1235 = vmatpush1.msra.mxu0 0.0
        %1236 = vmatprep.subr.mxu0 0.0
        %1237 = vmatpush1.msra.mxu0 0.0
        %1238 = vmatprep.subr.mxu0 0.0
        %1239 = vmatpush1.msra.mxu0 0.0
        %1240 = vmatprep.subr.mxu0 0.0
        %1241 = vmatpush1.msra.mxu0 0.0
        %1242 = vmatprep.subr.mxu0 0.0
        %1243 = vmatpush1.msra.mxu0 0.0
        %1244 = vmatprep.subr.mxu0 0.0
        %1245 = vmatpush1.msra.mxu0 0.0
        %1246 = vmatprep.subr.mxu0 0.0
        %1247 = vmatpush1.msra.mxu0 0.0
        %1248 = vmatprep.subr.mxu0 0.0
        %1249 = vmatpush1.msra.mxu0 0.0
        %1250 = vmatprep.subr.mxu0 0.0
        %1251 = vmatpush1.msra.mxu0 0.0
        %1252 = vmatprep.subr.mxu0 0.0
        %1253 = vmatpush1.msra.mxu0 0.0
        %1254 = vmatprep.subr.mxu0 0.0
        %1255 = vmatpush1.msra.mxu0 0.0
        %1256 = vmatprep.subr.mxu0 0.0
        %1257 = vmatpush1.msra.mxu0 0.0
        %1258 = vmatprep.subr.mxu0 0.0
        %1259 = vmatpush1.msra.mxu0 0.0
        %1260 = vmatprep.subr.mxu0 0.0
        %1261 = vmatpush1.msra.mxu0 0.0
        %1262 = vmatprep.subr.mxu0 0.0
        %1263 = vmatpush1.msra.mxu0 0.0
        %1264 = vmatprep.subr.mxu0 0.0
        %1265 = vmatpush1.msra.mxu0 0.0
        %1266 = vmatprep.subr.mxu0 0.0
        %1267 = vmatpush1.msra.mxu0 0.0
        %1268 = vmatprep.subr.mxu0 0.0
        %1269 = vmatpush1.msra.mxu0 0.0
        %1270 = vmatprep.subr.mxu0 0.0
        %1271 = vmatpush1.msra.mxu0 0.0
        %1272 = vmatprep.subr.mxu0 0.0
        %1273 = vmatpush1.msra.mxu0 0.0
        %1274 = vmatprep.subr.mxu0 0.0
        %1275 = vmatpush1.msra.mxu0 0.0
        %1276 = vmatprep.subr.mxu0 0.0
        %1277 = vmatpush1.msra.mxu0 0.0
        %1278 = vmatprep.subr.mxu0 0.0
        %1279 = vmatpush1.msra.mxu0 0.0
        %1280 = vmatprep.mubr.f32.mxu0 0.0
        %1281 = vmatmul.mubr.f32.gmra.mrb[0].mxu0 %v1214
        %v1282 = vpop.f32.mrb[0].mxu0
        %v1283 = vadd.f32 0.0, %v1282
        %v1284 = vpop.f32.mrb[0].mxu0
        %1285 = vdwg.mxu0
        %1287 = vrot.lane.b32.xlu0 %v1283, 16
        %v1288 = vpop.permute.xlu0 %1287
        %vm1290 = vcmask 195712
        %1291 = vst.msk [vmem:[#allocation4] sm:$0xff] %vm1290, %v1288
        %1292 = vrot.lane.b32.xlu0 %v782, 104
        %v1293 = vpop.permute.xlu0 %1292
        %1294 = vrot.lane.b32.xlu0 %v785, 104
        %v1295 = vpop.permute.xlu0 %1294
        %v1296 = vsel %vm787, %v1293, 0
        %v1298 = vsel %vm787, %v1295, 0
        %1300 = vmatprep.subr.mxu0 0.0
        %1301 = vmatpush1.xpose.msra.mxu0 %v1298
        %1302 = vmatprep.subr.mxu0 0.0
        %1303 = vmatpush1.xpose.msra.mxu0 0.0
        %1304 = vmatprep.subr.mxu0 0.0
        %1305 = vmatpush1.xpose.msra.mxu0 0.0
        %1306 = vmatprep.subr.mxu0 0.0
        %1307 = vmatpush1.xpose.msra.mxu0 0.0
        %1308 = vmatprep.subr.mxu0 0.0
        %1309 = vmatpush1.xpose.msra.mxu0 0.0
        %1310 = vmatprep.subr.mxu0 0.0
        %1311 = vmatpush1.xpose.msra.mxu0 0.0
        %1312 = vmatprep.subr.mxu0 0.0
        %1313 = vmatpush1.xpose.msra.mxu0 0.0
        %1314 = vmatprep.subr.mxu0 0.0
        %1315 = vmatpush1.xpose.msra.mxu0 0.0
        %1316 = vmatprep.subr.mxu0 0.0
        %1317 = vmatpush1.xpose.msra.mxu0 0.0
        %1318 = vmatprep.subr.mxu0 0.0
        %1319 = vmatpush1.xpose.msra.mxu0 0.0
        %1320 = vmatprep.subr.mxu0 0.0
        %1321 = vmatpush1.xpose.msra.mxu0 0.0
        %1322 = vmatprep.subr.mxu0 0.0
        %1323 = vmatpush1.xpose.msra.mxu0 0.0
        %1324 = vmatprep.subr.mxu0 0.0
        %1325 = vmatpush1.xpose.msra.mxu0 0.0
        %1326 = vmatprep.subr.mxu0 0.0
        %1327 = vmatpush1.xpose.msra.mxu0 0.0
        %1328 = vmatprep.subr.mxu0 0.0
        %1329 = vmatpush1.xpose.msra.mxu0 0.0
        %1330 = vmatprep.subr.mxu0 0.0
        %1331 = vmatpush1.xpose.msra.mxu0 0.0
        %1332 = vmatprep.subr.mxu0 0.0
        %1333 = vmatpush1.xpose.msra.mxu0 0.0
        %1334 = vmatprep.subr.mxu0 0.0
        %1335 = vmatpush1.xpose.msra.mxu0 0.0
        %1336 = vmatprep.subr.mxu0 0.0
        %1337 = vmatpush1.xpose.msra.mxu0 0.0
        %1338 = vmatprep.subr.mxu0 0.0
        %1339 = vmatpush1.xpose.msra.mxu0 0.0
        %1340 = vmatprep.subr.mxu0 0.0
        %1341 = vmatpush1.xpose.msra.mxu0 0.0
        %1342 = vmatprep.subr.mxu0 0.0
        %1343 = vmatpush1.xpose.msra.mxu0 0.0
        %1344 = vmatprep.subr.mxu0 0.0
        %1345 = vmatpush1.xpose.msra.mxu0 0.0
        %1346 = vmatprep.subr.mxu0 0.0
        %1347 = vmatpush1.xpose.msra.mxu0 0.0
        %1348 = vmatprep.subr.mxu0 0.0
        %1349 = vmatpush1.xpose.msra.mxu0 0.0
        %1350 = vmatprep.subr.mxu0 0.0
        %1351 = vmatpush1.xpose.msra.mxu0 0.0
        %1352 = vmatprep.subr.mxu0 0.0
        %1353 = vmatpush1.xpose.msra.mxu0 0.0
        %1354 = vmatprep.subr.mxu0 0.0
        %1355 = vmatpush1.xpose.msra.mxu0 0.0
        %1356 = vmatprep.subr.mxu0 0.0
        %1357 = vmatpush1.xpose.msra.mxu0 0.0
        %1358 = vmatprep.subr.mxu0 0.0
        %1359 = vmatpush1.xpose.msra.mxu0 0.0
        %1360 = vmatprep.subr.mxu0 0.0
        %1361 = vmatpush1.xpose.msra.mxu0 0.0
        %1362 = vmatprep.subr.mxu0 0.0
        %1363 = vmatpush1.xpose.msra.mxu0 0.0
        %1364 = vmatprep.mubr.f32.mxu0 0.0
        %1365 = vmatmul.mubr.f32.gmra.mrb[0].mxu0 %v1296
        %v1366 = vpop.f32.mrb[0].mxu0
        %v1367 = vadd.f32 0.0, %v1366
        %v1368 = vpop.f32.mrb[0].mxu0
        %1369 = vdwg.mxu0
        %v1370 = vsel %vm787, %v1367, -inf
        %1371 = vmax.xlane.f32.xlu0 %v1370
        %v1372 = vpop.xlane.xlu0 %1371
        %v1373 = vsub.f32 %v1367, %v1372
        %v1374 = vmul.f32 %v1373, 1.442695
        %v1375 = vpow.pop %v1374
        %v1376 = vsel %vm787, %v1375, 0.0
        %1377 = vadd.xlane.f32.xlu0 %v1376
        %v1378 = vpop.xlane.xlu0 %1377
        %v1379 = vrcp.pop %v1378
        %v1380 = vmul.f32 %v1375, %v1379
        %1381 = vrot.lane.b32.xlu0 %v786, 104
        %v1382 = vpop.permute.xlu0 %1381
        %v1385 = vsel %vm787, %v1380, 0
        %1387 = vmatprep.subr.mxu0 0.0
        %1388 = vmatpush1.msra.mxu0 %v1382
        %1389 = vmatprep.subr.mxu0 0.0
        %1390 = vmatpush1.msra.mxu0 0.0
        %1391 = vmatprep.subr.mxu0 0.0
        %1392 = vmatpush1.msra.mxu0 0.0
        %1393 = vmatprep.subr.mxu0 0.0
        %1394 = vmatpush1.msra.mxu0 0.0
        %1395 = vmatprep.subr.mxu0 0.0
        %1396 = vmatpush1.msra.mxu0 0.0
        %1397 = vmatprep.subr.mxu0 0.0
        %1398 = vmatpush1.msra.mxu0 0.0
        %1399 = vmatprep.subr.mxu0 0.0
        %1400 = vmatpush1.msra.mxu0 0.0
        %1401 = vmatprep.subr.mxu0 0.0
        %1402 = vmatpush1.msra.mxu0 0.0
        %1403 = vmatprep.subr.mxu0 0.0
        %1404 = vmatpush1.msra.mxu0 0.0
        %1405 = vmatprep.subr.mxu0 0.0
        %1406 = vmatpush1.msra.mxu0 0.0
        %1407 = vmatprep.subr.mxu0 0.0
        %1408 = vmatpush1.msra.mxu0 0.0
        %1409 = vmatprep.subr.mxu0 0.0
        %1410 = vmatpush1.msra.mxu0 0.0
        %1411 = vmatprep.subr.mxu0 0.0
        %1412 = vmatpush1.msra.mxu0 0.0
        %1413 = vmatprep.subr.mxu0 0.0
        %1414 = vmatpush1.msra.mxu0 0.0
        %1415 = vmatprep.subr.mxu0 0.0
        %1416 = vmatpush1.msra.mxu0 0.0
        %1417 = vmatprep.subr.mxu0 0.0
        %1418 = vmatpush1.msra.mxu0 0.0
        %1419 = vmatprep.subr.mxu0 0.0
        %1420 = vmatpush1.msra.mxu0 0.0
        %1421 = vmatprep.subr.mxu0 0.0
        %1422 = vmatpush1.msra.mxu0 0.0
        %1423 = vmatprep.subr.mxu0 0.0
        %1424 = vmatpush1.msra.mxu0 0.0
        %1425 = vmatprep.subr.mxu0 0.0
        %1426 = vmatpush1.msra.mxu0 0.0
        %1427 = vmatprep.subr.mxu0 0.0
        %1428 = vmatpush1.msra.mxu0 0.0
        %1429 = vmatprep.subr.mxu0 0.0
        %1430 = vmatpush1.msra.mxu0 0.0
        %1431 = vmatprep.subr.mxu0 0.0
        %1432 = vmatpush1.msra.mxu0 0.0
        %1433 = vmatprep.subr.mxu0 0.0
        %1434 = vmatpush1.msra.mxu0 0.0
        %1435 = vmatprep.subr.mxu0 0.0
        %1436 = vmatpush1.msra.mxu0 0.0
        %1437 = vmatprep.subr.mxu0 0.0
        %1438 = vmatpush1.msra.mxu0 0.0
        %1439 = vmatprep.subr.mxu0 0.0
        %1440 = vmatpush1.msra.mxu0 0.0
        %1441 = vmatprep.subr.mxu0 0.0
        %1442 = vmatpush1.msra.mxu0 0.0
        %1443 = vmatprep.subr.mxu0 0.0
        %1444 = vmatpush1.msra.mxu0 0.0
        %1445 = vmatprep.subr.mxu0 0.0
        %1446 = vmatpush1.msra.mxu0 0.0
        %1447 = vmatprep.subr.mxu0 0.0
        %1448 = vmatpush1.msra.mxu0 0.0
        %1449 = vmatprep.subr.mxu0 0.0
        %1450 = vmatpush1.msra.mxu0 0.0
        %1451 = vmatprep.mubr.f32.mxu0 0.0
        %1452 = vmatmul.mubr.f32.gmra.mrb[0].mxu0 %v1385
        %v1453 = vpop.f32.mrb[0].mxu0
        %v1454 = vadd.f32 0.0, %v1453
        %v1455 = vpop.f32.mrb[0].mxu0
        %1456 = vdwg.mxu0
        %1458 = vrot.lane.b32.xlu0 %v1454, 24
        %v1459 = vpop.permute.xlu0 %1458
        %vm1461 = vcmask 261312
        %1462 = vst.msk [vmem:[#allocation4] sm:$0xff] %vm1461, %v1459
        %v1463 = vld [vmem:[#allocation4] sm:$0xff]
        %v1464 = vld [vmem:[%s5] sm:$0xff]
        %v1465 = vld [vmem:[%s5 + $0x8] sm:$0xff]
        %v1466 = vld [vmem:[%s5 + $0x10] sm:$0xff]
        %v1467 = vld [vmem:[%s5 + $0x18] sm:$0xff]
        %v1468 = vld [vmem:[%s6] sm:$0x1]
        %v1470 = vlaneseq
        %v1471 = vshrl.u32 %v1470, 7
        %v1472 = vsub.s32 0, %v1471
        %v1473 = vrot.slane %v1468, %v1472
        %v1476 = vsel %vm711, %v1463, 0
        %1478 = vmatprep.subr.mxu0 0.0
        %1479 = vmatpush1.msra.mxu0 %v1464
        %1480 = vmatprep.subr.mxu0 0.0
        %1481 = vmatpush1.msra.mxu0 %v1465
        %1482 = vmatprep.subr.mxu0 0.0
        %1483 = vmatpush1.msra.mxu0 %v1466
        %1484 = vmatprep.subr.mxu0 0.0
        %1485 = vmatpush1.msra.mxu0 %v1467
        %1486 = vmatprep.subr.mxu0 0.0
        %1487 = vmatpush1.msra.mxu0 0.0
        %1488 = vmatprep.subr.mxu0 0.0
        %1489 = vmatpush1.msra.mxu0 0.0
        %1490 = vmatprep.subr.mxu0 0.0
        %1491 = vmatpush1.msra.mxu0 0.0
        %1492 = vmatprep.subr.mxu0 0.0
        %1493 = vmatpush1.msra.mxu0 0.0
        %1494 = vmatprep.subr.mxu0 0.0
        %1495 = vmatpush1.msra.mxu0 0.0
        %1496 = vmatprep.subr.mxu0 0.0
        %1497 = vmatpush1.msra.mxu0 0.0
        %1498 = vmatprep.subr.mxu0 0.0
        %1499 = vmatpush1.msra.mxu0 0.0
        %1500 = vmatprep.subr.mxu0 0.0
        %1501 = vmatpush1.msra.mxu0 0.0
        %1502 = vmatprep.subr.mxu0 0.0
        %1503 = vmatpush1.msra.mxu0 0.0
        %1504 = vmatprep.subr.mxu0 0.0
        %1505 = vmatpush1.msra.mxu0 0.0
        %1506 = vmatprep.subr.mxu0 0.0
        %1507 = vmatpush1.msra.mxu0 0.0
        %1508 = vmatprep.subr.mxu0 0.0
        %1509 = vmatpush1.msra.mxu0 0.0
        %1510 = vmatprep.subr.mxu0 0.0
        %1511 = vmatpush1.msra.mxu0 0.0
        %1512 = vmatprep.subr.mxu0 0.0
        %1513 = vmatpush1.msra.mxu0 0.0
        %1514 = vmatprep.subr.mxu0 0.0
        %1515 = vmatpush1.msra.mxu0 0.0
        %1516 = vmatprep.subr.mxu0 0.0
        %1517 = vmatpush1.msra.mxu0 0.0
        %1518 = vmatprep.subr.mxu0 0.0
        %1519 = vmatpush1.msra.mxu0 0.0
        %1520 = vmatprep.subr.mxu0 0.0
        %1521 = vmatpush1.msra.mxu0 0.0
        %1522 = vmatprep.subr.mxu0 0.0
        %1523 = vmatpush1.msra.mxu0 0.0
        %1524 = vmatprep.subr.mxu0 0.0
        %1525 = vmatpush1.msra.mxu0 0.0
        %1526 = vmatprep.subr.mxu0 0.0
        %1527 = vmatpush1.msra.mxu0 0.0
        %1528 = vmatprep.subr.mxu0 0.0
        %1529 = vmatpush1.msra.mxu0 0.0
        %1530 = vmatprep.subr.mxu0 0.0
        %1531 = vmatpush1.msra.mxu0 0.0
        %1532 = vmatprep.subr.mxu0 0.0
        %1533 = vmatpush1.msra.mxu0 0.0
        %1534 = vmatprep.subr.mxu0 0.0
        %1535 = vmatpush1.msra.mxu0 0.0
        %1536 = vmatprep.subr.mxu0 0.0
        %1537 = vmatpush1.msra.mxu0 0.0
        %1538 = vmatprep.subr.mxu0 0.0
        %1539 = vmatpush1.msra.mxu0 0.0
        %1540 = vmatprep.subr.mxu0 0.0
        %1541 = vmatpush1.msra.mxu0 0.0
        %1542 = vmatprep.mubr.f32.mxu0 0.0
        %1543 = vmatmul.mubr.f32.gmra.mrb[0].mxu0 %v1476
        %v1544 = vpop.f32.mrb[0].mxu0
        %v1545 = vadd.f32 %v1473, %v1544
        %v1546 = vpop.f32.mrb[0].mxu0
        %1547 = vdwg.mxu0
        %v1548 = vld [vmem:[%s500] sm:$0xff]
        %v1549 = vadd.f32 %v1545, %v1548
        %v1550 = vld [vmem:[%s11] sm:$0x1]
        %v1551 = vld [vmem:[%s12] sm:$0x1]
        %v1552 = vsel %vm711, %v1549, 0.0
        %1553 = vadd.xlane.f32.xlu0 %v1552
        %v1554 = vpop.xlane.xlu0 %1553
        %v1555 = vrcp.pop 32.0
        %v1556 = vmul.f32 %v1554, %v1555
        %v1557 = vsub.f32 %v1549, %v1556
        %v1558 = vmul.f32 %v1557, %v1557
        %v1559 = vsel %vm711, %v1558, 0.0
        %1560 = vadd.xlane.f32.xlu0 %v1559
        %v1561 = vpop.xlane.xlu0 %1560
        %v1562 = vmul.f32 %v1561, %v1555
        %v1563 = vadd.f32 %v1562, 1e-05
        %v1564 = vrsqrt.pop %v1563
        %v1565 = vmul.f32 %v1557, %v1564
        %v1567 = vlaneseq
        %v1568 = vshrl.u32 %v1567, 7
        %v1569 = vsub.s32 0, %v1568
        %v1570 = vrot.slane %v1550, %v1569
        %v1572 = vmul.f32 %v1565, %v1570
        %v1574 = vlaneseq
        %v1575 = vshrl.u32 %v1574, 7
        %v1576 = vsub.s32 0, %v1575
        %v1577 = vrot.slane %v1551, %v1576
        %v1579 = vadd.f32 %v1572, %v1577
        %v1580 = vld [vmem:[%s7] sm:$0xff]
        %v1581 = vld [vmem:[%s7 + $0x8] sm:$0xff]
        %v1582 = vld [vmem:[%s7 + $0x10] sm:$0xff]
        %v1583 = vld [vmem:[%s7 + $0x18] sm:$0xff]
        %v1584 = vld [vmem:[%s8] sm:$0x1]
        %v1586 = vlaneseq
        %v1587 = vshrl.u32 %v1586, 7
        %v1588 = vsub.s32 0, %v1587
        %v1589 = vrot.slane %v1584, %v1588
        %v1592 = vsel %vm711, %v1579, 0
        %1594 = vmatprep.subr.mxu0 0.0
        %1595 = vmatpush1.msra.mxu0 %v1580
        %1596 = vmatprep.subr.mxu0 0.0
        %1597 = vmatpush1.msra.mxu0 %v1581
        %1598 = vmatprep.subr.mxu0 0.0
        %1599 = vmatpush1.msra.mxu0 %v1582
        %1600 = vmatprep.subr.mxu0 0.0
        %1601 = vmatpush1.msra.mxu0 %v1583
        %1602 = vmatprep.subr.mxu0 0.0
        %1603 = vmatpush1.msra.mxu0 0.0
        %1604 = vmatprep.subr.mxu0 0.0
        %1605 = vmatpush1.msra.mxu0 0.0
        %1606 = vmatprep.subr.mxu0 0.0
        %1607 = vmatpush1.msra.mxu0 0.0
        %1608 = vmatprep.subr.mxu0 0.0
        %1609 = vmatpush1.msra.mxu0 0.0
        %1610 = vmatprep.subr.mxu0 0.0
        %1611 = vmatpush1.msra.mxu0 0.0
        %1612 = vmatprep.subr.mxu0 0.0
        %1613 = vmatpush1.msra.mxu0 0.0
        %1614 = vmatprep.subr.mxu0 0.0
        %1615 = vmatpush1.msra.mxu0 0.0
        %1616 = vmatprep.subr.mxu0 0.0
        %1617 = vmatpush1.msra.mxu0 0.0
        %1618 = vmatprep.subr.mxu0 0.0
        %1619 = vmatpush1.msra.mxu0 0.0
        %1620 = vmatprep.subr.mxu0 0.0
        %1621 = vmatpush1.msra.mxu0 0.0
        %1622 = vmatprep.subr.mxu0 0.0
        %1623 = vmatpush1.msra.mxu0 0.0
        %1624 = vmatprep.subr.mxu0 0.0
        %1625 = vmatpush1.msra.mxu0 0.0
        %1626 = vmatprep.subr.mxu0 0.0
        %1627 = vmatpush1.msra.mxu0 0.0
        %1628 = vmatprep.subr.mxu0 0.0
        %1629 = vmatpush1.msra.mxu0 0.0
        %1630 = vmatprep.subr.mxu0 0.0
        %1631 = vmatpush1.msra.mxu0 0.0
        %1632 = vmatprep.subr.mxu0 0.0
        %1633 = vmatpush1.msra.mxu0 0.0
        %1634 = vmatprep.subr.mxu0 0.0
        %1635 = vmatpush1.msra.mxu0 0.0
        %1636 = vmatprep.subr.mxu0 0.0
        %1637 = vmatpush1.msra.mxu0 0.0
        %1638 = vmatprep.subr.mxu0 0.0
        %1639 = vmatpush1.msra.mxu0 0.0
        %1640 = vmatprep.subr.mxu0 0.0
        %1641 = vmatpush1.msra.mxu0 0.0
        %1642 = vmatprep.subr.mxu0 0.0
        %1643 = vmatpush1.msra.mxu0 0.0
        %1644 = vmatprep.subr.mxu0 0.0
        %1645 = vmatpush1.msra.mxu0 0.0
        %1646 = vmatprep.subr.mxu0 0.0
        %1647 = vmatpush1.msra.mxu0 0.0
        %1648 = vmatprep.subr.mxu0 0.0
        %1649 = vmatpush1.msra.mxu0 0.0
        %1650 = vmatprep.subr.mxu0 0.0
        %1651 = vmatpush1.msra.mxu0 0.0
        %1652 = vmatprep.subr.mxu0 0.0
        %1653 = vmatpush1.msra.mxu0 0.0
        %1654 = vmatprep.subr.mxu0 0.0
        %1655 = vmatpush1.msra.mxu0 0.0
        %1656 = vmatprep.subr.mxu0 0.0
        %1657 = vmatpush1.msra.mxu0 0.0
        %1658 = vmatprep.mubr.f32.mxu0 0.0
        %1659 = vmatmul.mubr.f32.gmra.mrb[0].mxu0 %v1592
        %v1660 = vpop.f32.mrb[0].mxu0
        %v1661 = vadd.f32 %v1589, %v1660
        %v1662 = vpop.f32.mrb[0].mxu0
        %1663 = vdwg.mxu0
        %v1664 = vmul.f32 %v1661, 0.5
        %v1665 = vmul.f32 %v1661, 0.70710677
        %v1666 = vmax.f32 %v1665, -4.0
        %v1667 = vmin.f32 %v1666, 4.0
        %v1668 = vmul.f32 %v1667, %v1667
        %v1669 = vmul.f32 %v1668, -2.7261424e-10
        %v1670 = vadd.f32 %v1669, 2.7706815e-08
        %v1671 = vmul.f32 %v1670, %v1668
        %v1672 = vadd.f32 %v1671, -2.101024e-06
        %v1673 = vmul.f32 %v1672, %v1668
        %v1674 = vadd.f32 %v1673, -5.6925062e-05
        %v1675 = vmul.f32 %v1674, %v1668
        %v1676 = vadd.f32 %v1675, -0.00073499064
        %v1677 = vmul.f32 %v1676, %v1668
        %v1678 = vadd.f32 %v1677, -0.0029546
        %v1679 = vmul.f32 %v1678, %v1668
        %v1680 = vadd.f32 %v1679, -0.016096033
        %v1681 = vmul.f32 %v1680, %v1667
        %v1682 = vmul.f32 %v1668, -1.45660715e-05
        %v1683 = vadd.f32 %v1682, -0.00021337405
        %v1684 = vmul.f32 %v1683, %v1668
        %v1685 = vadd.f32 %v1684, -0.001682827
        %v1686 = vmul.f32 %v1685, %v1668
        %v1687 = vadd.f32 %v1686, -0.0073733293
        %v1688 = vmul.f32 %v1687, %v1668
        %v1689 = vadd.f32 %v1688, -0.014264739
        %v1690 = vrcp.pop %v1689
        %v1691 = vmul.f32 %v1681, %v1690
        %v1692 = vadd.f32 %v1691, 1.0
        %v1693 = vmul.f32 %v1664, %v1692
        %v1694 = vld [vmem:[%s9] sm:$0xff]
        %v1695 = vld [vmem:[%s9 + $0x8] sm:$0xff]
        %v1696 = vld [vmem:[%s9 + $0x10] sm:$0xff]
        %v1697 = vld [vmem:[%s9 + $0x18] sm:$0xff]
        %v1698 = vld [vmem:[%s9 + $0x20] sm:$0xff]
        %v1699 = vld [vmem:[%s9 + $0x28] sm:$0xff]
        %v1700 = vld [vmem:[%s9 + $0x30] sm:$0xff]
        %v1701 = vld [vmem:[%s9 + $0x38] sm:$0xff]
        %v1702 = vld [vmem:[%s9 + $0x40] sm:$0xff]
        %v1703 = vld [vmem:[%s9 + $0x48] sm:$0xff]
        %v1704 = vld [vmem:[%s9 + $0x50] sm:$0xff]
        %v1705 = vld [vmem:[%s9 + $0x58] sm:$0xff]
        %v1706 = vld [vmem:[%s9 + $0x60] sm:$0xff]
        %v1707 = vld [vmem:[%s9 + $0x68] sm:$0xff]
        %v1708 = vld [vmem:[%s9 + $0x70] sm:$0xff]
        %v1709 = vld [vmem:[%s9 + $0x78] sm:$0xff]
        %v1710 = vld [vmem:[%s10] sm:$0x1]
        %v1712 = vlaneseq
        %v1713 = vshrl.u32 %v1712, 7
        %v1714 = vsub.s32 0, %v1713
        %v1715 = vrot.slane %v1710, %v1714
        %1717 = vmatprep.subr.mxu0 0.0
        %1718 = vmatpush1.msra.mxu0 %v1694
        %1719 = vmatprep.subr.mxu0 0.0
        %1720 = vmatpush1.msra.mxu0 %v1695
        %1721 = vmatprep.subr.mxu0 0.0
        %1722 = vmatpush1.msra.mxu0 %v1696
        %1723 = vmatprep.subr.mxu0 0.0
        %1724 = vmatpush1.msra.mxu0 %v1697
        %1725 = vmatprep.subr.mxu0 0.0
        %1726 = vmatpush1.msra.mxu0 %v1698
        %1727 = vmatprep.subr.mxu0 0.0
        %1728 = vmatpush1.msra.mxu0 %v1699
        %1729 = vmatprep.subr.mxu0 0.0
        %1730 = vmatpush1.msra.mxu0 %v1700
        %1731 = vmatprep.subr.mxu0 0.0
        %1732 = vmatpush1.msra.mxu0 %v1701
        %1733 = vmatprep.subr.mxu0 0.0
        %1734 = vmatpush1.msra.mxu0 %v1702
        %1735 = vmatprep.subr.mxu0 0.0
        %1736 = vmatpush1.msra.mxu0 %v1703
        %1737 = vmatprep.subr.mxu0 0.0
        %1738 = vmatpush1.msra.mxu0 %v1704
        %1739 = vmatprep.subr.mxu0 0.0
        %1740 = vmatpush1.msra.mxu0 %v1705
        %1741 = vmatprep.subr.mxu0 0.0
        %1742 = vmatpush1.msra.mxu0 %v1706
        %1743 = vmatprep.subr.mxu0 0.0
        %1744 = vmatpush1.msra.mxu0 %v1707
        %1745 = vmatprep.subr.mxu0 0.0
        %1746 = vmatpush1.msra.mxu0 %v1708
        %1747 = vmatprep.subr.mxu0 0.0
        %1748 = vmatpush1.msra.mxu0 %v1709
        %1749 = vmatprep.subr.mxu0 0.0
        %1750 = vmatpush1.msra.mxu0 0.0
        %1751 = vmatprep.subr.mxu0 0.0
        %1752 = vmatpush1.msra.mxu0 0.0
        %1753 = vmatprep.subr.mxu0 0.0
        %1754 = vmatpush1.msra.mxu0 0.0
        %1755 = vmatprep.subr.mxu0 0.0
        %1756 = vmatpush1.msra.mxu0 0.0
        %1757 = vmatprep.subr.mxu0 0.0
        %1758 = vmatpush1.msra.mxu0 0.0
        %1759 = vmatprep.subr.mxu0 0.0
        %1760 = vmatpush1.msra.mxu0 0.0
        %1761 = vmatprep.subr.mxu0 0.0
        %1762 = vmatpush1.msra.mxu0 0.0
        %1763 = vmatprep.subr.mxu0 0.0
        %1764 = vmatpush1.msra.mxu0 0.0
        %1765 = vmatprep.subr.mxu0 0.0
        %1766 = vmatpush1.msra.mxu0 0.0
        %1767 = vmatprep.subr.mxu0 0.0
        %1768 = vmatpush1.msra.mxu0 0.0
        %1769 = vmatprep.subr.mxu0 0.0
        %1770 = vmatpush1.msra.mxu0 0.0
        %1771 = vmatprep.subr.mxu0 0.0
        %1772 = vmatpush1.msra.mxu0 0.0
        %1773 = vmatprep.subr.mxu0 0.0
        %1774 = vmatpush1.msra.mxu0 0.0
        %1775 = vmatprep.subr.mxu0 0.0
        %1776 = vmatpush1.msra.mxu0 0.0
        %1777 = vmatprep.subr.mxu0 0.0
        %1778 = vmatpush1.msra.mxu0 0.0
        %1779 = vmatprep.subr.mxu0 0.0
        %1780 = vmatpush1.msra.mxu0 0.0
        %1781 = vmatprep.mubr.f32.mxu0 0.0
        %1782 = vmatmul.mubr.f32.gmra.mrb[0].mxu0 %v1693
        %v1783 = vpop.f32.mrb[0].mxu0
        %v1784 = vadd.f32 %v1715, %v1783
        %v1785 = vpop.f32.mrb[0].mxu0
        %1786 = vdwg.mxu0
        %v1787 = vadd.f32 %v1784, %v1579
        %v1788 = vld [vmem:[%s13] sm:$0x1]
        %v1789 = vld [vmem:[%s14] sm:$0x1]
        %v1790 = vsel %vm711, %v1787, 0.0
        %1791 = vadd.xlane.f32.xlu0 %v1790
        %v1792 = vpop.xlane.xlu0 %1791
        %v1793 = vmul.f32 %v1792, %v1555
        %v1794 = vsub.f32 %v1787, %v1793
        %v1795 = vmul.f32 %v1794, %v1794
        %v1796 = vsel %vm711, %v1795, 0.0
        %1797 = vadd.xlane.f32.xlu0 %v1796
        %v1798 = vpop.xlane.xlu0 %1797
        %v1799 = vmul.f32 %v1798, %v1555
        %v1800 = vadd.f32 %v1799, 1e-05
        %v1801 = vrsqrt.pop %v1800
        %v1802 = vmul.f32 %v1794, %v1801
        %v1804 = vlaneseq
        %v1805 = vshrl.u32 %v1804, 7
        %v1806 = vsub.s32 0, %v1805
        %v1807 = vrot.slane %v1788, %v1806
        %v1809 = vmul.f32 %v1802, %v1807
        %v1811 = vlaneseq
        %v1812 = vshrl.u32 %v1811, 7
        %v1813 = vsub.s32 0, %v1812
        %v1814 = vrot.slane %v1789, %v1813
        %v1816 = vadd.f32 %v1809, %v1814
        %1817 = vst.msk [vmem:[%s546] sm:$0xff] %vm711, %v1816
        %s1818 = sand.u32 %s382, 1
        %s1819 = scalar_lea.sflag [#allocation7], %s1818
        %s1820 = sand.u32 %s382, 1
        %s1821 = smul.addr %s1820, 8
        %s1822 = scalar_lea.vmem [#allocation10], %s1821
        // Predicated region
        $region93: #{tpu_custom_call.1} parent=79 // pred_check
          %p1823 = pneg %p392
        $region94: #{tpu_custom_call.1} parent=79 // pred_check_branch
          %1825 = sbr.rel (%p1823) target = $region96
        $region95: #{tpu_custom_call.1} parent=79 // pred_region
          %s1827 = ssub.s32 128, 128
          %1828 = vsyncadd %s1819, %s1827
          %s1829 = sadd.s32 %s38, %s37
          %s1830 = smul.addr %s1829, 128
          %s1831 = scalar_lea.hbm %s15, %s1830
          %s1833 = sshll.u32 %s1822, 4
          %s1834 = int_to_ptr.vmem [resolvable:$true] %s1833
          %1836 = dma.vmem_to_hbm [thread:$0]  %s1834, 128, %s1831, %s1819
        $region96: #{tpu_custom_call.1} parent=79 // pred_fallthru
          _
      $region80: #{tpu_custom_call.1} parent=5 // pred_fallthru
        _
      %p1837 = scmp.le.s32.totalorder 2, %s28
      // Predicated region
      $region97: #{tpu_custom_call.1} parent=5 // pred_check
        %p1838 = pneg %p1837
      $region98: #{tpu_custom_call.1} parent=5 // pred_check_branch
        %1840 = sbr.rel (%p1838) target = $region100
      $region99: #{tpu_custom_call.1} parent=5 // pred_region
        %s1841 = ssub.s32 %s28, 2
        // Predicated region
        $region101: #{tpu_custom_call.1} parent=99 // pred_check
          %p1842 = pneg %p398
        $region102: #{tpu_custom_call.1} parent=99 // pred_check_branch
          %1844 = sbr.rel (%p1842) target = $region104
        $region103: #{tpu_custom_call.1} parent=99 // pred_region
          %s1845 = sand.u32 %s383, 1
          %s1846 = scalar_lea.sflag [#allocation7], %s1845
          %s1847 = sand.u32 %s383, 1
          %s1848 = smul.addr %s1847, 8
          %s1849 = scalar_lea.vmem [#allocation10], %s1848
          %1850 = dma.done %s1846, 128
        $region104: #{tpu_custom_call.1} parent=99 // pred_fallthru
          _
      $region100: #{tpu_custom_call.1} parent=5 // pred_fallthru
        _
    $region6: #{tpu_custom_call.1} parent=1 // loop_footer
      %s32 = sadd.s32 1, %s28
    $region7: #{tpu_custom_call.1} parent=1 // loop_footer_branch
      %27 = sbr.rel target = $region3
    $region8: #{tpu_custom_call.1} parent=1 // loop_exit
      _
    %1851 = vsyncpa [#allocation6], 1
    %s1852 = scalar_lea.sflag [#allocation6], 1
    %1853 = vsyncpa %s1852, 1
    %1854 = vsyncpa [#allocation9], 1
    %s1855 = scalar_lea.sflag [#allocation9], 1
    %1856 = vsyncpa %s1855, 1
    %1857 = vsyncpa [#allocation7], 1
    %s1858 = scalar_lea.sflag [#allocation7], 1
    %1859 = vsyncpa %s1858, 1

// kernel: tpu_custom_call.1
$region0: #{tpu_custom_call.1}
  #allocation0 [shape = 'u32[]', space=smem, size = 0x4, offset = 0x4, fixed_abs, tag = 'smem constant byte address 0x4 - core index']
  #allocation1 [shape = 'u32[144,128]{1,0:T(1,128)}', space=vmem, size = 0x12000, scoped, tag = 'internal scratch']
  #allocation2 [shape = 'f32[8,32]{1,0:T(8,128)}', space=vmem, size = 0x1000, scoped, tag = 'scratch operand']
  #allocation3 [shape = 'f32[8,32]{1,0:T(8,128)}', space=vmem, size = 0x1000, scoped, tag = 'scratch operand']
  #allocation4 [shape = 'f32[8,32]{1,0:T(8,128)}', space=vmem, size = 0x1000, scoped, tag = 'scratch operand']
  %s0 = inlined_call_operand.hbm [shape: f32[2,8,32], index: 0, kind: input, shape index: {}]
  %s1 = inlined_call_operand.hbm [shape: f32[2,8,32], index: 1, kind: input, shape index: {}]
  %s2 = inlined_call_operand.vmem [shape: f32[32,32], index: 2, kind: input, shape index: {}]
  %s3 = inlined_call_operand.vmem [shape: f32[32,32], index: 3, kind: input, shape index: {}]
  %s4 = inlined_call_operand.vmem [shape: f32[32,32], index: 4, kind: input, shape index: {}]
  %s5 = inlined_call_operand.vmem [shape: f32[32,32], index: 5, kind: input, shape index: {}]
  %s6 = inlined_call_operand.vmem [shape: f32[1,32], index: 6, kind: input, shape index: {}]
  %s7 = inlined_call_operand.vmem [shape: f32[32,128], index: 7, kind: input, shape index: {}]
  %s8 = inlined_call_operand.vmem [shape: f32[1,128], index: 8, kind: input, shape index: {}]
  %s9 = inlined_call_operand.vmem [shape: f32[128,32], index: 9, kind: input, shape index: {}]
  %s10 = inlined_call_operand.vmem [shape: f32[1,32], index: 10, kind: input, shape index: {}]
  %s11 = inlined_call_operand.vmem [shape: f32[1,32], index: 11, kind: input, shape index: {}]
  %s12 = inlined_call_operand.vmem [shape: f32[1,32], index: 12, kind: input, shape index: {}]
  %s13 = inlined_call_operand.vmem [shape: f32[1,32], index: 13, kind: input, shape index: {}]
  %s14 = inlined_call_operand.vmem [shape: f32[1,32], index: 14, kind: input, shape index: {}]
  %s15 = inlined_call_operand.hbm [shape: f32[2,8,32], index: 15, kind: output, shape index: {}]
  %s16 = sld [smem:[#allocation0]]
  $region105: #{tpu_custom_call.1} parent=0
    _
  %s18 = ssub.s32 1, %s16
  %s19 = scalar_select 0, %s18, %s16
  $region1: #{tpu_custom_call.1} parent=0
    #allocation5 [shape = 'u8[8192]{0}', space=vmem, size = 0x2000, scoped, tag = 'input window, operand 0']
    #allocation6 [shape = 's32[2]{0}', space=sflag, size = 0x8, scoped, tag = 'scoped memory for tpu_custom_call.1']
    #allocation7 [shape = 's32[2]{0}', space=sflag, size = 0x8, scoped, tag = 'scoped memory for tpu_custom_call.1']
    #allocation8 [shape = 'u8[8192]{0}', space=vmem, size = 0x2000, scoped, tag = 'input window, operand 1']
    #allocation9 [shape = 's32[2]{0}', space=sflag, size = 0x8, scoped, tag = 'scoped memory for tpu_custom_call.1']
    #allocation10 [shape = 'u8[8192]{0}', space=vmem, size = 0x2000, scoped, tag = 'output window, operand 0']
    %20 = vsyncpa [#allocation6], 0
    %s21 = scalar_lea.sflag [#allocation6], 1
    %22 = vsyncpa %s21, 0
    %23 = vsyncpa [#allocation9], 0
    %s24 = scalar_lea.sflag [#allocation9], 1
    %25 = vsyncpa %s24, 0
    %26 = vsyncpa [#allocation7], 0
    %s27 = scalar_lea.sflag [#allocation7], 1
    %28 = vsyncpa %s27, 0
    loop: start=0, step=1, limit=4
    $region2: #{tpu_custom_call.1} parent=1 // loop_pre_header
      _
    $region3: #{tpu_custom_call.1} parent=1 // loop_header
      %s30 = sphi 0, %s34
      %p31 = scmp.ge.s32.totalorder %s30, 4
      %s37 = sphi 0, %s49
      %s38 = sphi 0, %s45
      %s39 = sphi 0, %s37
      %s40 = sphi 0, %s38
      %s41 = sphi 0, %s39
      %s42 = sphi 0, %s40
      %s52 = sphi 0, %s54
      %s55 = sphi 0, %s52
      %s56 = sphi 0, %s55
      %s72 = sphi 0, %s56
      %s80 = sphi 0, %s82
      %s83 = sphi 0, %s80
      %s84 = sphi 0, %s83
      %s100 = sphi 0, %s84
      %s104 = sphi 0, %s104
      %s106 = sphi 0, %s104
      %s107 = sphi 0, %s106
      %s121 = sphi 0, %s107
      %s125 = sphi 0, %s125
      %s127 = sphi 0, %s125
      %s128 = sphi 0, %s127
      %s142 = sphi 0, %s128
      %s146 = sphi 0, %s146
      %s148 = sphi 0, %s146
      %s149 = sphi 0, %s148
      %s163 = sphi 0, %s149
      %s167 = sphi 0, %s167
      %s169 = sphi 0, %s167
      %s170 = sphi 0, %s169
      %s184 = sphi 0, %s170
      %s188 = sphi 0, %s188
      %s190 = sphi 0, %s188
      %s191 = sphi 0, %s190
      %s205 = sphi 0, %s191
      %s209 = sphi 0, %s209
      %s211 = sphi 0, %s209
      %s212 = sphi 0, %s211
      %s226 = sphi 0, %s212
      %s230 = sphi 0, %s230
      %s232 = sphi 0, %s230
      %s233 = sphi 0, %s232
      %s247 = sphi 0, %s233
      %s251 = sphi 0, %s251
      %s253 = sphi 0, %s251
      %s254 = sphi 0, %s253
      %s268 = sphi 0, %s254
      %s272 = sphi 0, %s272
      %s274 = sphi 0, %s272
      %s275 = sphi 0, %s274
      %s289 = sphi 0, %s275
      %s293 = sphi 0, %s293
      %s295 = sphi 0, %s293
      %s296 = sphi 0, %s295
      %s310 = sphi 0, %s296
      %s314 = sphi 0, %s314
      %s316 = sphi 0, %s314
      %s317 = sphi 0, %s316
      %s331 = sphi 0, %s317
      %s335 = sphi 0, %s335
      %s337 = sphi 0, %s335
      %s338 = sphi 0, %s337
      %s352 = sphi 0, %s338
      %s356 = sphi 0, %s356
      %s358 = sphi 0, %s356
      %s359 = sphi 0, %s358
      %s373 = sphi 0, %s359
      %s381 = sphi 0, %s383
      %s384 = sphi 0, %s381
      %s385 = sphi 0, %s384
      %s401 = sphi 0, %s385
    $region4: #{tpu_custom_call.1} parent=1 // loop_header_branch
      %33 = sbr.rel (%p31) target = $region8
    $region5: #{tpu_custom_call.1} parent=1 // loop_body
      %s35 = ssub.s32 %s30, 1
      %s36 = ssub.s32 %s30, 2
      %s43 = sadd.s32 1, %s38
      %p44 = scmp.ge.s32.totalorder %s43, 1
      %s45 = scalar_select %p44, 0, %s43
      %s46 = sadd.s32 1, %s37
      %s47 = scalar_select %p44, %s46, %s37
      %p48 = scmp.ge.s32.totalorder %s47, 2
      %s49 = scalar_select %p48, 0, %s47
      %s50 = ssub.s32 %s37, %s49
      %p51 = scmp.eq.s32.totalorder %s50, 0
      %s53 = sadd.s32 %s52, 1
      %s54 = scalar_select %p51, %s52, %s53
      %p57 = pneg %p51
      %p58 = scmp.eq.s32.totalorder %s30, 1
      %p59 = por %p57, %p58
      %p60 = scmp.ne.s32.totalorder %s52, %s55
      %p61 = scmp.eq.s32.totalorder %s30, 0
      %p62 = por %p60, %p61
      %p63 = scmp.ne.s32.totalorder %s52, %s55
      %p64 = scmp.eq.s32.totalorder %s35, 1
      %p65 = por %p63, %p64
      %p66 = scmp.ne.s32.totalorder %s55, %s56
      %p67 = scmp.eq.s32.totalorder %s35, 0
      %p68 = por %p66, %p67
      %p69 = scmp.ne.s32.totalorder %s55, %s56
      %p70 = scmp.eq.s32.totalorder %s36, 1
      %p71 = por %p69, %p70
      %p73 = scmp.ne.s32.totalorder %s56, %s72
      %p74 = scmp.eq.s32.totalorder %s36, 0
      %p75 = por %p73, %p74
      %s76 = ssub.s32 %s37, %s49
      %s77 = ssub.s32 %s38, %s45
      %s78 = sor.u32 %s76, %s77
      %p79 = scmp.eq.s32.totalorder %s78, 0
      %s81 = sadd.s32 %s80, 1
      %s82 = scalar_select %p79, %s80, %s81
      %p85 = pneg %p79
      %p86 = scmp.eq.s32.totalorder %s30, 1
      %p87 = por %p85, %p86
      %p88 = scmp.ne.s32.totalorder %s80, %s83
      %p89 = scmp.eq.s32.totalorder %s30, 0
      %p90 = por %p88, %p89
      %p91 = scmp.ne.s32.totalorder %s80, %s83
      %p92 = scmp.eq.s32.totalorder %s35, 1
      %p93 = por %p91, %p92
      %p94 = scmp.ne.s32.totalorder %s83, %s84
      %p95 = scmp.eq.s32.totalorder %s35, 0
      %p96 = por %p94, %p95
      %p97 = scmp.ne.s32.totalorder %s83, %s84
      %p98 = scmp.eq.s32.totalorder %s36, 1
      %p99 = por %p97, %p98
      %p101 = scmp.ne.s32.totalorder %s84, %s100
      %p102 = scmp.eq.s32.totalorder %s36, 0
      %p103 = por %p101, %p102
      %s105 = sadd.s32 %s104, 1
      %p108 = scmp.eq.s32.totalorder %s30, 1
      %p109 = scmp.ne.s32.totalorder %s104, %s106
      %p110 = scmp.eq.s32.totalorder %s30, 0
      %p111 = por %p109, %p110
      %p112 = scmp.ne.s32.totalorder %s104, %s106
      %p113 = scmp.eq.s32.totalorder %s35, 1
      %p114 = por %p112, %p113
      %p115 = scmp.ne.s32.totalorder %s106, %s107
      %p116 = scmp.eq.s32.totalorder %s35, 0
      %p117 = por %p115, %p116
      %p118 = scmp.ne.s32.totalorder %s106, %s107
      %p119 = scmp.eq.s32.totalorder %s36, 1
      %p120 = por %p118, %p119
      %p122 = scmp.ne.s32.totalorder %s107, %s121
      %p123 = scmp.eq.s32.totalorder %s36, 0
      %p124 = por %p122, %p123
      %s126 = sadd.s32 %s125, 1
      %p129 = scmp.eq.s32.totalorder %s30, 1
      %p130 = scmp.ne.s32.totalorder %s125, %s127
      %p131 = scmp.eq.s32.totalorder %s30, 0
      %p132 = por %p130, %p131
      %p133 = scmp.ne.s32.totalorder %s125, %s127
      %p134 = scmp.eq.s32.totalorder %s35, 1
      %p135 = por %p133, %p134
      %p136 = scmp.ne.s32.totalorder %s127, %s128
      %p137 = scmp.eq.s32.totalorder %s35, 0
      %p138 = por %p136, %p137
      %p139 = scmp.ne.s32.totalorder %s127, %s128
      %p140 = scmp.eq.s32.totalorder %s36, 1
      %p141 = por %p139, %p140
      %p143 = scmp.ne.s32.totalorder %s128, %s142
      %p144 = scmp.eq.s32.totalorder %s36, 0
      %p145 = por %p143, %p144
      %s147 = sadd.s32 %s146, 1
      %p150 = scmp.eq.s32.totalorder %s30, 1
      %p151 = scmp.ne.s32.totalorder %s146, %s148
      %p152 = scmp.eq.s32.totalorder %s30, 0
      %p153 = por %p151, %p152
      %p154 = scmp.ne.s32.totalorder %s146, %s148
      %p155 = scmp.eq.s32.totalorder %s35, 1
      %p156 = por %p154, %p155
      %p157 = scmp.ne.s32.totalorder %s148, %s149
      %p158 = scmp.eq.s32.totalorder %s35, 0
      %p159 = por %p157, %p158
      %p160 = scmp.ne.s32.totalorder %s148, %s149
      %p161 = scmp.eq.s32.totalorder %s36, 1
      %p162 = por %p160, %p161
      %p164 = scmp.ne.s32.totalorder %s149, %s163
      %p165 = scmp.eq.s32.totalorder %s36, 0
      %p166 = por %p164, %p165
      %s168 = sadd.s32 %s167, 1
      %p171 = scmp.eq.s32.totalorder %s30, 1
      %p172 = scmp.ne.s32.totalorder %s167, %s169
      %p173 = scmp.eq.s32.totalorder %s30, 0
      %p174 = por %p172, %p173
      %p175 = scmp.ne.s32.totalorder %s167, %s169
      %p176 = scmp.eq.s32.totalorder %s35, 1
      %p177 = por %p175, %p176
      %p178 = scmp.ne.s32.totalorder %s169, %s170
      %p179 = scmp.eq.s32.totalorder %s35, 0
      %p180 = por %p178, %p179
      %p181 = scmp.ne.s32.totalorder %s169, %s170
      %p182 = scmp.eq.s32.totalorder %s36, 1
      %p183 = por %p181, %p182
      %p185 = scmp.ne.s32.totalorder %s170, %s184
      %p186 = scmp.eq.s32.totalorder %s36, 0
      %p187 = por %p185, %p186
      %s189 = sadd.s32 %s188, 1
      %p192 = scmp.eq.s32.totalorder %s30, 1
      %p193 = scmp.ne.s32.totalorder %s188, %s190
      %p194 = scmp.eq.s32.totalorder %s30, 0
      %p195 = por %p193, %p194
      %p196 = scmp.ne.s32.totalorder %s188, %s190
      %p197 = scmp.eq.s32.totalorder %s35, 1
      %p198 = por %p196, %p197
      %p199 = scmp.ne.s32.totalorder %s190, %s191
      %p200 = scmp.eq.s32.totalorder %s35, 0
      %p201 = por %p199, %p200
      %p202 = scmp.ne.s32.totalorder %s190, %s191
      %p203 = scmp.eq.s32.totalorder %s36, 1
      %p204 = por %p202, %p203
      %p206 = scmp.ne.s32.totalorder %s191, %s205
      %p207 = scmp.eq.s32.totalorder %s36, 0
      %p208 = por %p206, %p207
      %s210 = sadd.s32 %s209, 1
      %p213 = scmp.eq.s32.totalorder %s30, 1
      %p214 = scmp.ne.s32.totalorder %s209, %s211
      %p215 = scmp.eq.s32.totalorder %s30, 0
      %p216 = por %p214, %p215
      %p217 = scmp.ne.s32.totalorder %s209, %s211
      %p218 = scmp.eq.s32.totalorder %s35, 1
      %p219 = por %p217, %p218
      %p220 = scmp.ne.s32.totalorder %s211, %s212
      %p221 = scmp.eq.s32.totalorder %s35, 0
      %p222 = por %p220, %p221
      %p223 = scmp.ne.s32.totalorder %s211, %s212
      %p224 = scmp.eq.s32.totalorder %s36, 1
      %p225 = por %p223, %p224
      %p227 = scmp.ne.s32.totalorder %s212, %s226
      %p228 = scmp.eq.s32.totalorder %s36, 0
      %p229 = por %p227, %p228
      %s231 = sadd.s32 %s230, 1
      %p234 = scmp.eq.s32.totalorder %s30, 1
      %p235 = scmp.ne.s32.totalorder %s230, %s232
      %p236 = scmp.eq.s32.totalorder %s30, 0
      %p237 = por %p235, %p236
      %p238 = scmp.ne.s32.totalorder %s230, %s232
      %p239 = scmp.eq.s32.totalorder %s35, 1
      %p240 = por %p238, %p239
      %p241 = scmp.ne.s32.totalorder %s232, %s233
      %p242 = scmp.eq.s32.totalorder %s35, 0
      %p243 = por %p241, %p242
      %p244 = scmp.ne.s32.totalorder %s232, %s233
      %p245 = scmp.eq.s32.totalorder %s36, 1
      %p246 = por %p244, %p245
      %p248 = scmp.ne.s32.totalorder %s233, %s247
      %p249 = scmp.eq.s32.totalorder %s36, 0
      %p250 = por %p248, %p249
      %s252 = sadd.s32 %s251, 1
      %p255 = scmp.eq.s32.totalorder %s30, 1
      %p256 = scmp.ne.s32.totalorder %s251, %s253
      %p257 = scmp.eq.s32.totalorder %s30, 0
      %p258 = por %p256, %p257
      %p259 = scmp.ne.s32.totalorder %s251, %s253
      %p260 = scmp.eq.s32.totalorder %s35, 1
      %p261 = por %p259, %p260
      %p262 = scmp.ne.s32.totalorder %s253, %s254
      %p263 = scmp.eq.s32.totalorder %s35, 0
      %p264 = por %p262, %p263
      %p265 = scmp.ne.s32.totalorder %s253, %s254
      %p266 = scmp.eq.s32.totalorder %s36, 1
      %p267 = por %p265, %p266
      %p269 = scmp.ne.s32.totalorder %s254, %s268
      %p270 = scmp.eq.s32.totalorder %s36, 0
      %p271 = por %p269, %p270
      %s273 = sadd.s32 %s272, 1
      %p276 = scmp.eq.s32.totalorder %s30, 1
      %p277 = scmp.ne.s32.totalorder %s272, %s274
      %p278 = scmp.eq.s32.totalorder %s30, 0
      %p279 = por %p277, %p278
      %p280 = scmp.ne.s32.totalorder %s272, %s274
      %p281 = scmp.eq.s32.totalorder %s35, 1
      %p282 = por %p280, %p281
      %p283 = scmp.ne.s32.totalorder %s274, %s275
      %p284 = scmp.eq.s32.totalorder %s35, 0
      %p285 = por %p283, %p284
      %p286 = scmp.ne.s32.totalorder %s274, %s275
      %p287 = scmp.eq.s32.totalorder %s36, 1
      %p288 = por %p286, %p287
      %p290 = scmp.ne.s32.totalorder %s275, %s289
      %p291 = scmp.eq.s32.totalorder %s36, 0
      %p292 = por %p290, %p291
      %s294 = sadd.s32 %s293, 1
      %p297 = scmp.eq.s32.totalorder %s30, 1
      %p298 = scmp.ne.s32.totalorder %s293, %s295
      %p299 = scmp.eq.s32.totalorder %s30, 0
      %p300 = por %p298, %p299
      %p301 = scmp.ne.s32.totalorder %s293, %s295
      %p302 = scmp.eq.s32.totalorder %s35, 1
      %p303 = por %p301, %p302
      %p304 = scmp.ne.s32.totalorder %s295, %s296
      %p305 = scmp.eq.s32.totalorder %s35, 0
      %p306 = por %p304, %p305
      %p307 = scmp.ne.s32.totalorder %s295, %s296
      %p308 = scmp.eq.s32.totalorder %s36, 1
      %p309 = por %p307, %p308
      %p311 = scmp.ne.s32.totalorder %s296, %s310
      %p312 = scmp.eq.s32.totalorder %s36, 0
      %p313 = por %p311, %p312
      %s315 = sadd.s32 %s314, 1
      %p318 = scmp.eq.s32.totalorder %s30, 1
      %p319 = scmp.ne.s32.totalorder %s314, %s316
      %p320 = scmp.eq.s32.totalorder %s30, 0
      %p321 = por %p319, %p320
      %p322 = scmp.ne.s32.totalorder %s314, %s316
      %p323 = scmp.eq.s32.totalorder %s35, 1
      %p324 = por %p322, %p323
      %p325 = scmp.ne.s32.totalorder %s316, %s317
      %p326 = scmp.eq.s32.totalorder %s35, 0
      %p327 = por %p325, %p326
      %p328 = scmp.ne.s32.totalorder %s316, %s317
      %p329 = scmp.eq.s32.totalorder %s36, 1
      %p330 = por %p328, %p329
      %p332 = scmp.ne.s32.totalorder %s317, %s331
      %p333 = scmp.eq.s32.totalorder %s36, 0
      %p334 = por %p332, %p333
      %s336 = sadd.s32 %s335, 1
      %p339 = scmp.eq.s32.totalorder %s30, 1
      %p340 = scmp.ne.s32.totalorder %s335, %s337
      %p341 = scmp.eq.s32.totalorder %s30, 0
      %p342 = por %p340, %p341
      %p343 = scmp.ne.s32.totalorder %s335, %s337
      %p344 = scmp.eq.s32.totalorder %s35, 1
      %p345 = por %p343, %p344
      %p346 = scmp.ne.s32.totalorder %s337, %s338
      %p347 = scmp.eq.s32.totalorder %s35, 0
      %p348 = por %p346, %p347
      %p349 = scmp.ne.s32.totalorder %s337, %s338
      %p350 = scmp.eq.s32.totalorder %s36, 1
      %p351 = por %p349, %p350
      %p353 = scmp.ne.s32.totalorder %s338, %s352
      %p354 = scmp.eq.s32.totalorder %s36, 0
      %p355 = por %p353, %p354
      %s357 = sadd.s32 %s356, 1
      %p360 = scmp.eq.s32.totalorder %s30, 1
      %p361 = scmp.ne.s32.totalorder %s356, %s358
      %p362 = scmp.eq.s32.totalorder %s30, 0
      %p363 = por %p361, %p362
      %p364 = scmp.ne.s32.totalorder %s356, %s358
      %p365 = scmp.eq.s32.totalorder %s35, 1
      %p366 = por %p364, %p365
      %p367 = scmp.ne.s32.totalorder %s358, %s359
      %p368 = scmp.eq.s32.totalorder %s35, 0
      %p369 = por %p367, %p368
      %p370 = scmp.ne.s32.totalorder %s358, %s359
      %p371 = scmp.eq.s32.totalorder %s36, 1
      %p372 = por %p370, %p371
      %p374 = scmp.ne.s32.totalorder %s359, %s373
      %p375 = scmp.eq.s32.totalorder %s36, 0
      %p376 = por %p374, %p375
      %s377 = ssub.s32 %s37, %s49
      %s378 = ssub.s32 %s38, %s45
      %s379 = sor.u32 %s377, %s378
      %p380 = scmp.eq.s32.totalorder %s379, 0
      %s382 = sadd.s32 %s381, 1
      %s383 = scalar_select %p380, %s381, %s382
      %p386 = pneg %p380
      %p387 = scmp.eq.s32.totalorder %s30, 1
      %p388 = por %p386, %p387
      %p389 = scmp.ne.s32.totalorder %s381, %s384
      %p390 = scmp.eq.s32.totalorder %s30, 0
      %p391 = por %p389, %p390
      %p392 = scmp.ne.s32.totalorder %s381, %s384
      %p393 = scmp.eq.s32.totalorder %s35, 1
      %p394 = por %p392, %p393
      %p395 = scmp.ne.s32.totalorder %s384, %s385
      %p396 = scmp.eq.s32.totalorder %s35, 0
      %p397 = por %p395, %p396
      %p398 = scmp.ne.s32.totalorder %s384, %s385
      %p399 = scmp.eq.s32.totalorder %s36, 1
      %p400 = por %p398, %p399
      %p402 = scmp.ne.s32.totalorder %s385, %s401
      %p403 = scmp.eq.s32.totalorder %s36, 0
      %p404 = por %p402, %p403
      %p405 = scmp.le.s32.totalorder 1, %s30
      %p406 = scmp.lt.s32.totalorder %s30, 3
      %p407 = pnand %p405, %p406
      %p408 = pneg %p407
      // Predicated region
      $region9: #{tpu_custom_call.1} parent=5 // pred_check
        _
      $region10: #{tpu_custom_call.1} parent=5 // pred_check_branch
        %410 = sbr.rel (%p407) target = $region12
      $region11: #{tpu_custom_call.1} parent=5 // pred_region
        %s411 = ssub.s32 %s30, 1
        // Predicated region
        $region13: #{tpu_custom_call.1} parent=11 // pred_check
          %p412 = pneg %p117
        $region14: #{tpu_custom_call.1} parent=11 // pred_check_branch
          %414 = sbr.rel (%p412) target = $region16
        $region15: #{tpu_custom_call.1} parent=11 // pred_region
          _
        $region16: #{tpu_custom_call.1} parent=11 // pred_fallthru
          _
        // Predicated region
        $region17: #{tpu_custom_call.1} parent=11 // pred_check
          %p415 = pneg %p138
        $region18: #{tpu_custom_call.1} parent=11 // pred_check_branch
          %417 = sbr.rel (%p415) target = $region20
        $region19: #{tpu_custom_call.1} parent=11 // pred_region
          _
        $region20: #{tpu_custom_call.1} parent=11 // pred_fallthru
          _
        // Predicated region
        $region21: #{tpu_custom_call.1} parent=11 // pred_check
          %p418 = pneg %p159
        $region22: #{tpu_custom_call.1} parent=11 // pred_check_branch
          %420 = sbr.rel (%p418) target = $region24
        $region23: #{tpu_custom_call.1} parent=11 // pred_region
          _
        $region24: #{tpu_custom_call.1} parent=11 // pred_fallthru
          _
        // Predicated region
        $region25: #{tpu_custom_call.1} parent=11 // pred_check
          %p421 = pneg %p180
        $region26: #{tpu_custom_call.1} parent=11 // pred_check_branch
          %423 = sbr.rel (%p421) target = $region28
        $region27: #{tpu_custom_call.1} parent=11 // pred_region
          _
        $region28: #{tpu_custom_call.1} parent=11 // pred_fallthru
          _
        // Predicated region
        $region29: #{tpu_custom_call.1} parent=11 // pred_check
          %p424 = pneg %p201
        $region30: #{tpu_custom_call.1} parent=11 // pred_check_branch
          %426 = sbr.rel (%p424) target = $region32
        $region31: #{tpu_custom_call.1} parent=11 // pred_region
          _
        $region32: #{tpu_custom_call.1} parent=11 // pred_fallthru
          _
        // Predicated region
        $region33: #{tpu_custom_call.1} parent=11 // pred_check
          %p427 = pneg %p222
        $region34: #{tpu_custom_call.1} parent=11 // pred_check_branch
          %429 = sbr.rel (%p427) target = $region36
        $region35: #{tpu_custom_call.1} parent=11 // pred_region
          _
        $region36: #{tpu_custom_call.1} parent=11 // pred_fallthru
          _
        // Predicated region
        $region37: #{tpu_custom_call.1} parent=11 // pred_check
          %p430 = pneg %p243
        $region38: #{tpu_custom_call.1} parent=11 // pred_check_branch
          %432 = sbr.rel (%p430) target = $region40
        $region39: #{tpu_custom_call.1} parent=11 // pred_region
          _
        $region40: #{tpu_custom_call.1} parent=11 // pred_fallthru
          _
        // Predicated region
        $region41: #{tpu_custom_call.1} parent=11 // pred_check
          %p433 = pneg %p264
        $region42: #{tpu_custom_call.1} parent=11 // pred_check_branch
          %435 = sbr.rel (%p433) target = $region44
        $region43: #{tpu_custom_call.1} parent=11 // pred_region
          _
        $region44: #{tpu_custom_call.1} parent=11 // pred_fallthru
          _
        // Predicated region
        $region45: #{tpu_custom_call.1} parent=11 // pred_check
          %p436 = pneg %p285
        $region46: #{tpu_custom_call.1} parent=11 // pred_check_branch
          %438 = sbr.rel (%p436) target = $region48
        $region47: #{tpu_custom_call.1} parent=11 // pred_region
          _
        $region48: #{tpu_custom_call.1} parent=11 // pred_fallthru
          _
        // Predicated region
        $region49: #{tpu_custom_call.1} parent=11 // pred_check
          %p439 = pneg %p306
        $region50: #{tpu_custom_call.1} parent=11 // pred_check_branch
          %441 = sbr.rel (%p439) target = $region52
        $region51: #{tpu_custom_call.1} parent=11 // pred_region
          _
        $region52: #{tpu_custom_call.1} parent=11 // pred_fallthru
          _
        // Predicated region
        $region53: #{tpu_custom_call.1} parent=11 // pred_check
          %p442 = pneg %p327
        $region54: #{tpu_custom_call.1} parent=11 // pred_check_branch
          %444 = sbr.rel (%p442) target = $region56
        $region55: #{tpu_custom_call.1} parent=11 // pred_region
          _
        $region56: #{tpu_custom_call.1} parent=11 // pred_fallthru
          _
        // Predicated region
        $region57: #{tpu_custom_call.1} parent=11 // pred_check
          %p445 = pneg %p348
        $region58: #{tpu_custom_call.1} parent=11 // pred_check_branch
          %447 = sbr.rel (%p445) target = $region60
        $region59: #{tpu_custom_call.1} parent=11 // pred_region
          _
        $region60: #{tpu_custom_call.1} parent=11 // pred_fallthru
          _
        // Predicated region
        $region61: #{tpu_custom_call.1} parent=11 // pred_check
          %p448 = pneg %p369
        $region62: #{tpu_custom_call.1} parent=11 // pred_check_branch
          %450 = sbr.rel (%p448) target = $region64
        $region63: #{tpu_custom_call.1} parent=11 // pred_region
          _
        $region64: #{tpu_custom_call.1} parent=11 // pred_fallthru
          _
      $region12: #{tpu_custom_call.1} parent=5 // pred_fallthru
        _
      %p451 = scmp.lt.s32.totalorder %s30, 2
      // Predicated region
      $region65: #{tpu_custom_call.1} parent=5 // pred_check
        %p452 = pneg %p451
      $region66: #{tpu_custom_call.1} parent=5 // pred_check_branch
        %454 = sbr.rel (%p452) target = $region68
      $region67: #{tpu_custom_call.1} parent=5 // pred_region
        // Predicated region
        $region69: #{tpu_custom_call.1} parent=67 // pred_check
          %p455 = pneg %p62
        $region70: #{tpu_custom_call.1} parent=67 // pred_check_branch
          %457 = sbr.rel (%p455) target = $region72
        $region71: #{tpu_custom_call.1} parent=67 // pred_region
          %s458 = sand.u32 %s52, 1
          %s459 = scalar_lea.sflag [#allocation6], %s458
          %s460 = sand.u32 %s52, 1
          %s461 = smul.addr %s460, 8
          %s462 = scalar_lea.vmem [#allocation5], %s461
          %s464 = ssub.s32 128, 128
          %465 = vsyncadd %s459, %s464
          %s466 = smul.addr %s37, 128
          %s467 = scalar_lea.hbm %s0, %s466
          %s469 = sshll.u32 %s462, 4
          %s470 = int_to_ptr.vmem [resolvable:$true] %s469
          %472 = dma.hbm_to_vmem [thread:$0]  %s467, 128, %s470, %s459
        $region72: #{tpu_custom_call.1} parent=67 // pred_fallthru
          _
        // Predicated region
        $region73: #{tpu_custom_call.1} parent=67 // pred_check
          %p473 = pneg %p90
        $region74: #{tpu_custom_call.1} parent=67 // pred_check_branch
          %475 = sbr.rel (%p473) target = $region76
        $region75: #{tpu_custom_call.1} parent=67 // pred_region
          %s476 = sand.u32 %s80, 1
          %s477 = scalar_lea.sflag [#allocation9], %s476
          %s478 = sand.u32 %s80, 1
          %s479 = smul.addr %s478, 8
          %s480 = scalar_lea.vmem [#allocation8], %s479
          %s482 = ssub.s32 128, 128
          %483 = vsyncadd %s477, %s482
          %s484 = sadd.s32 %s38, %s37
          %s485 = smul.addr %s484, 128
          %s486 = scalar_lea.hbm %s1, %s485
          %s488 = sshll.u32 %s480, 4
          %s489 = int_to_ptr.vmem [resolvable:$true] %s488
          %491 = dma.hbm_to_vmem [thread:$0]  %s486, 128, %s489, %s477
        $region76: #{tpu_custom_call.1} parent=67 // pred_fallthru
          _
      $region68: #{tpu_custom_call.1} parent=5 // pred_fallthru
        _
      %p492 = scmp.le.s32.totalorder 1, %s30
      %p493 = scmp.lt.s32.totalorder %s30, 3
      %p494 = pnand %p492, %p493
      %p495 = pneg %p494
      // Predicated region
      $region77: #{tpu_custom_call.1} parent=5 // pred_check
        _
      $region78: #{tpu_custom_call.1} parent=5 // pred_check_branch
        %497 = sbr.rel (%p494) target = $region80
      $region79: #{tpu_custom_call.1} parent=5 // pred_region
        %s498 = ssub.s32 %s30, 1
        %s499 = sand.u32 %s55, 1
        %s500 = scalar_lea.sflag [#allocation6], %s499
        %s501 = sand.u32 %s55, 1
        %s502 = smul.addr %s501, 8
        %s503 = scalar_lea.vmem [#allocation5], %s502
        // Predicated region
        $region81: #{tpu_custom_call.1} parent=79 // pred_check
          %p504 = pneg %p68
        $region82: #{tpu_custom_call.1} parent=79 // pred_check_branch
          %506 = sbr.rel (%p504) target = $region84
        $region83: #{tpu_custom_call.1} parent=79 // pred_region
          %507 = dma.done %s500, 128
        $region84: #{tpu_custom_call.1} parent=79 // pred_fallthru
          _
        %s508 = sand.u32 %s83, 1
        %s509 = scalar_lea.sflag [#allocation9], %s508
        %s510 = sand.u32 %s83, 1
        %s511 = smul.addr %s510, 8
        %s512 = scalar_lea.vmem [#allocation8], %s511
        // Predicated region
        $region85: #{tpu_custom_call.1} parent=79 // pred_check
          %p513 = pneg %p96
        $region86: #{tpu_custom_call.1} parent=79 // pred_check_branch
          %515 = sbr.rel (%p513) target = $region88
        $region87: #{tpu_custom_call.1} parent=79 // pred_region
          %516 = dma.done %s509, 128
        $region88: #{tpu_custom_call.1} parent=79 // pred_fallthru
          _
        %s517 = sand.u32 %s55, 1
        %s518 = scalar_lea.sflag [#allocation6], %s517
        %s519 = sand.u32 %s55, 1
        %s520 = smul.addr %s519, 8
        %s521 = scalar_lea.vmem [#allocation5], %s520
        %p522 = pneg %p68
        %p523 = pneg %p65
        %s524 = sand.u32 %s83, 1
        %s525 = scalar_lea.sflag [#allocation9], %s524
        %s526 = sand.u32 %s83, 1
        %s527 = smul.addr %s526, 8
        %s528 = scalar_lea.vmem [#allocation8], %s527
        %p529 = pneg %p96
        %p530 = pneg %p93
        %p531 = pneg %p117
        %p532 = pneg %p114
        %p533 = pneg %p138
        %p534 = pneg %p135
        %p535 = pneg %p159
        %p536 = pneg %p156
        %p537 = pneg %p180
        %p538 = pneg %p177
        %p539 = pneg %p201
        %p540 = pneg %p198
        %p541 = pneg %p222
        %p542 = pneg %p219
        %p543 = pneg %p243
        %p544 = pneg %p240
        %p545 = pneg %p264
        %p546 = pneg %p261
        %p547 = pneg %p285
        %p548 = pneg %p282
        %p549 = pneg %p306
        %p550 = pneg %p303
        %p551 = pneg %p327
        %p552 = pneg %p324
        %p553 = pneg %p348
        %p554 = pneg %p345
        %p555 = pneg %p369
        %p556 = pneg %p366
        %p557 = pneg %p397
        %p558 = pneg %p394
        %s559 = sand.u32 %s384, 1
        %s560 = scalar_lea.sflag [#allocation7], %s559
        %s561 = sand.u32 %s384, 1
        %s562 = smul.addr %s561, 8
        %s563 = scalar_lea.vmem [#allocation10], %s562
        %p564 = scmp.eq.s32.totalorder %s40, 0
        // Predicated region
        $region89: #{tpu_custom_call.1} parent=79 // pred_check
          %p565 = pneg %p564
        $region90: #{tpu_custom_call.1} parent=79 // pred_check_branch
          %567 = sbr.rel (%p565) target = $region92
        $region91: #{tpu_custom_call.1} parent=79 // pred_region
          %v568 = vld [vmem:[%s503] sm:$0xff]
          %v569 = vld [vmem:[%s3] sm:$0xff]
          %v570 = vld [vmem:[%s3 + $0x8] sm:$0xff]
          %v571 = vld [vmem:[%s3 + $0x10] sm:$0xff]
          %v572 = vld [vmem:[%s3 + $0x18] sm:$0xff]
          %vm573 = vcmask 261120
          %v575 = vsel %vm573, %v568, 0
          %577 = vmatprep.subr.mxu0 0.0
          %578 = vmatpush1.msra.mxu0 %v569
          %579 = vmatprep.subr.mxu0 0.0
          %580 = vmatpush1.msra.mxu0 %v570
          %581 = vmatprep.subr.mxu0 0.0
          %582 = vmatpush1.msra.mxu0 %v571
          %583 = vmatprep.subr.mxu0 0.0
          %584 = vmatpush1.msra.mxu0 %v572
          %585 = vmatprep.subr.mxu0 0.0
          %586 = vmatpush1.msra.mxu0 0.0
          %587 = vmatprep.subr.mxu0 0.0
          %588 = vmatpush1.msra.mxu0 0.0
          %589 = vmatprep.subr.mxu0 0.0
          %590 = vmatpush1.msra.mxu0 0.0
          %591 = vmatprep.subr.mxu0 0.0
          %592 = vmatpush1.msra.mxu0 0.0
          %593 = vmatprep.subr.mxu0 0.0
          %594 = vmatpush1.msra.mxu0 0.0
          %595 = vmatprep.subr.mxu0 0.0
          %596 = vmatpush1.msra.mxu0 0.0
          %597 = vmatprep.subr.mxu0 0.0
          %598 = vmatpush1.msra.mxu0 0.0
          %599 = vmatprep.subr.mxu0 0.0
          %600 = vmatpush1.msra.mxu0 0.0
          %601 = vmatprep.subr.mxu0 0.0
          %602 = vmatpush1.msra.mxu0 0.0
          %603 = vmatprep.subr.mxu0 0.0
          %604 = vmatpush1.msra.mxu0 0.0
          %605 = vmatprep.subr.mxu0 0.0
          %606 = vmatpush1.msra.mxu0 0.0
          %607 = vmatprep.subr.mxu0 0.0
          %608 = vmatpush1.msra.mxu0 0.0
          %609 = vmatprep.subr.mxu0 0.0
          %610 = vmatpush1.msra.mxu0 0.0
          %611 = vmatprep.subr.mxu0 0.0
          %612 = vmatpush1.msra.mxu0 0.0
          %613 = vmatprep.subr.mxu0 0.0
          %614 = vmatpush1.msra.mxu0 0.0
          %615 = vmatprep.subr.mxu0 0.0
          %616 = vmatpush1.msra.mxu0 0.0
          %617 = vmatprep.subr.mxu0 0.0
          %618 = vmatpush1.msra.mxu0 0.0
          %619 = vmatprep.subr.mxu0 0.0
          %620 = vmatpush1.msra.mxu0 0.0
          %621 = vmatprep.subr.mxu0 0.0
          %622 = vmatpush1.msra.mxu0 0.0
          %623 = vmatprep.subr.mxu0 0.0
          %624 = vmatpush1.msra.mxu0 0.0
          %625 = vmatprep.subr.mxu0 0.0
          %626 = vmatpush1.msra.mxu0 0.0
          %627 = vmatprep.subr.mxu0 0.0
          %628 = vmatpush1.msra.mxu0 0.0
          %629 = vmatprep.subr.mxu0 0.0
          %630 = vmatpush1.msra.mxu0 0.0
          %631 = vmatprep.subr.mxu0 0.0
          %632 = vmatpush1.msra.mxu0 0.0
          %633 = vmatprep.subr.mxu0 0.0
          %634 = vmatpush1.msra.mxu0 0.0
          %635 = vmatprep.subr.mxu0 0.0
          %636 = vmatpush1.msra.mxu0 0.0
          %637 = vmatprep.subr.mxu0 0.0
          %638 = vmatpush1.msra.mxu0 0.0
          %639 = vmatprep.subr.mxu0 0.0
          %640 = vmatpush1.msra.mxu0 0.0
          %641 = vmatprep.mubr.f32.mxu0 0.0
          %642 = vmatmul.mubr.f32.gmra.mrb[0].mxu0 %v575
          %v643 = vpop.f32.mrb[0].mxu0
          %v644 = vadd.f32 0.0, %v643
          %v645 = vpop.f32.mrb[0].mxu0
          %646 = vdwg.mxu0
          %647 = vst.msk [vmem:[#allocation2] sm:$0xff] %vm573, %v644
          %v648 = vld [vmem:[%s4] sm:$0xff]
          %v649 = vld [vmem:[%s4 + $0x8] sm:$0xff]
          %v650 = vld [vmem:[%s4 + $0x10] sm:$0xff]
          %v651 = vld [vmem:[%s4 + $0x18] sm:$0xff]
          %652 = vmatprep.subr.mxu0 0.0
          %653 = vmatpush1.msra.mxu0 %v648
          %654 = vmatprep.subr.mxu0 0.0
          %655 = vmatpush1.msra.mxu0 %v649
          %656 = vmatprep.subr.mxu0 0.0
          %657 = vmatpush1.msra.mxu0 %v650
          %658 = vmatprep.subr.mxu0 0.0
          %659 = vmatpush1.msra.mxu0 %v651
          %660 = vmatprep.subr.mxu0 0.0
          %661 = vmatpush1.msra.mxu0 0.0
          %662 = vmatprep.subr.mxu0 0.0
          %663 = vmatpush1.msra.mxu0 0.0
          %664 = vmatprep.subr.mxu0 0.0
          %665 = vmatpush1.msra.mxu0 0.0
          %666 = vmatprep.subr.mxu0 0.0
          %667 = vmatpush1.msra.mxu0 0.0
          %668 = vmatprep.subr.mxu0 0.0
          %669 = vmatpush1.msra.mxu0 0.0
          %670 = vmatprep.subr.mxu0 0.0
          %671 = vmatpush1.msra.mxu0 0.0
          %672 = vmatprep.subr.mxu0 0.0
          %673 = vmatpush1.msra.mxu0 0.0
          %674 = vmatprep.subr.mxu0 0.0
          %675 = vmatpush1.msra.mxu0 0.0
          %676 = vmatprep.subr.mxu0 0.0
          %677 = vmatpush1.msra.mxu0 0.0
          %678 = vmatprep.subr.mxu0 0.0
          %679 = vmatpush1.msra.mxu0 0.0
          %680 = vmatprep.subr.mxu0 0.0
          %681 = vmatpush1.msra.mxu0 0.0
          %682 = vmatprep.subr.mxu0 0.0
          %683 = vmatpush1.msra.mxu0 0.0
          %684 = vmatprep.subr.mxu0 0.0
          %685 = vmatpush1.msra.mxu0 0.0
          %686 = vmatprep.subr.mxu0 0.0
          %687 = vmatpush1.msra.mxu0 0.0
          %688 = vmatprep.subr.mxu0 0.0
          %689 = vmatpush1.msra.mxu0 0.0
          %690 = vmatprep.subr.mxu0 0.0
          %691 = vmatpush1.msra.mxu0 0.0
          %692 = vmatprep.subr.mxu0 0.0
          %693 = vmatpush1.msra.mxu0 0.0
          %694 = vmatprep.subr.mxu0 0.0
          %695 = vmatpush1.msra.mxu0 0.0
          %696 = vmatprep.subr.mxu0 0.0
          %697 = vmatpush1.msra.mxu0 0.0
          %698 = vmatprep.subr.mxu0 0.0
          %699 = vmatpush1.msra.mxu0 0.0
          %700 = vmatprep.subr.mxu0 0.0
          %701 = vmatpush1.msra.mxu0 0.0
          %702 = vmatprep.subr.mxu0 0.0
          %703 = vmatpush1.msra.mxu0 0.0
          %704 = vmatprep.subr.mxu0 0.0
          %705 = vmatpush1.msra.mxu0 0.0
          %706 = vmatprep.subr.mxu0 0.0
          %707 = vmatpush1.msra.mxu0 0.0
          %708 = vmatprep.subr.mxu0 0.0
          %709 = vmatpush1.msra.mxu0 0.0
          %710 = vmatprep.subr.mxu0 0.0
          %711 = vmatpush1.msra.mxu0 0.0
          %712 = vmatprep.subr.mxu0 0.0
          %713 = vmatpush1.msra.mxu0 0.0
          %714 = vmatprep.subr.mxu0 0.0
          %715 = vmatpush1.msra.mxu0 0.0
          %716 = vmatprep.mubr.f32.mxu0 0.0
          %717 = vmatmul.mubr.f32.gmra.mrb[0].mxu0 %v575
          %v718 = vpop.f32.mrb[0].mxu0
          %v719 = vadd.f32 0.0, %v718
          %v720 = vpop.f32.mrb[0].mxu0
          %721 = vdwg.mxu0
          %722 = vst.msk [vmem:[#allocation3] sm:$0xff] %vm573, %v719
        $region92: #{tpu_custom_call.1} parent=79 // pred_fallthru
          _
        %v723 = vld [vmem:[%s512] sm:$0xff]
        %v724 = vld [vmem:[%s2] sm:$0xff]
        %v725 = vld [vmem:[%s2 + $0x8] sm:$0xff]
        %v726 = vld [vmem:[%s2 + $0x10] sm:$0xff]
        %v727 = vld [vmem:[%s2 + $0x18] sm:$0xff]
        %vm728 = vcmask 261120
        %v730 = vsel %vm728, %v723, 0
        %732 = vmatprep.subr.mxu0 0.0
        %733 = vmatpush1.msra.mxu0 %v724
        %734 = vmatprep.subr.mxu0 0.0
        %735 = vmatpush1.msra.mxu0 %v725
        %736 = vmatprep.subr.mxu0 0.0
        %737 = vmatpush1.msra.mxu0 %v726
        %738 = vmatprep.subr.mxu0 0.0
        %739 = vmatpush1.msra.mxu0 %v727
        %740 = vmatprep.subr.mxu0 0.0
        %741 = vmatpush1.msra.mxu0 0.0
        %742 = vmatprep.subr.mxu0 0.0
        %743 = vmatpush1.msra.mxu0 0.0
        %744 = vmatprep.subr.mxu0 0.0
        %745 = vmatpush1.msra.mxu0 0.0
        %746 = vmatprep.subr.mxu0 0.0
        %747 = vmatpush1.msra.mxu0 0.0
        %748 = vmatprep.subr.mxu0 0.0
        %749 = vmatpush1.msra.mxu0 0.0
        %750 = vmatprep.subr.mxu0 0.0
        %751 = vmatpush1.msra.mxu0 0.0
        %752 = vmatprep.subr.mxu0 0.0
        %753 = vmatpush1.msra.mxu0 0.0
        %754 = vmatprep.subr.mxu0 0.0
        %755 = vmatpush1.msra.mxu0 0.0
        %756 = vmatprep.subr.mxu0 0.0
        %757 = vmatpush1.msra.mxu0 0.0
        %758 = vmatprep.subr.mxu0 0.0
        %759 = vmatpush1.msra.mxu0 0.0
        %760 = vmatprep.subr.mxu0 0.0
        %761 = vmatpush1.msra.mxu0 0.0
        %762 = vmatprep.subr.mxu0 0.0
        %763 = vmatpush1.msra.mxu0 0.0
        %764 = vmatprep.subr.mxu0 0.0
        %765 = vmatpush1.msra.mxu0 0.0
        %766 = vmatprep.subr.mxu0 0.0
        %767 = vmatpush1.msra.mxu0 0.0
        %768 = vmatprep.subr.mxu0 0.0
        %769 = vmatpush1.msra.mxu0 0.0
        %770 = vmatprep.subr.mxu0 0.0
        %771 = vmatpush1.msra.mxu0 0.0
        %772 = vmatprep.subr.mxu0 0.0
        %773 = vmatpush1.msra.mxu0 0.0
        %774 = vmatprep.subr.mxu0 0.0
        %775 = vmatpush1.msra.mxu0 0.0
        %776 = vmatprep.subr.mxu0 0.0
        %777 = vmatpush1.msra.mxu0 0.0
        %778 = vmatprep.subr.mxu0 0.0
        %779 = vmatpush1.msra.mxu0 0.0
        %780 = vmatprep.subr.mxu0 0.0
        %781 = vmatpush1.msra.mxu0 0.0
        %782 = vmatprep.subr.mxu0 0.0
        %783 = vmatpush1.msra.mxu0 0.0
        %784 = vmatprep.subr.mxu0 0.0
        %785 = vmatpush1.msra.mxu0 0.0
        %786 = vmatprep.subr.mxu0 0.0
        %787 = vmatpush1.msra.mxu0 0.0
        %788 = vmatprep.subr.mxu0 0.0
        %789 = vmatpush1.msra.mxu0 0.0
        %790 = vmatprep.subr.mxu0 0.0
        %791 = vmatpush1.msra.mxu0 0.0
        %792 = vmatprep.subr.mxu0 0.0
        %793 = vmatpush1.msra.mxu0 0.0
        %794 = vmatprep.subr.mxu0 0.0
        %795 = vmatpush1.msra.mxu0 0.0
        %796 = vmatprep.mubr.f32.mxu0 0.0
        %797 = vmatmul.mubr.f32.gmra.mrb[0].mxu0 %v730
        %v798 = vpop.f32.mrb[0].mxu0
        %v799 = vadd.f32 0.0, %v798
        %v800 = vpop.f32.mrb[0].mxu0
        %801 = vdwg.mxu0
        %v802 = vld [vmem:[#allocation2] sm:$0xff]
        %v803 = vld [vmem:[#allocation3] sm:$0xff]
        %vm804 = vcmask 64512
        %v806 = vsel %vm804, %v799, 0
        %v809 = vsel %vm804, %v802, 0
        %811 = vmatprep.subr.mxu0 0.0
        %812 = vmatpush1.xpose.msra.mxu0 %v809
        %813 = vmatprep.subr.mxu0 0.0
        %814 = vmatpush1.xpose.msra.mxu0 0.0
        %815 = vmatprep.subr.mxu0 0.0
        %816 = vmatpush1.xpose.msra.mxu0 0.0
        %817 = vmatprep.subr.mxu0 0.0
        %818 = vmatpush1.xpose.msra.mxu0 0.0
        %819 = vmatprep.subr.mxu0 0.0
        %820 = vmatpush1.xpose.msra.mxu0 0.0
        %821 = vmatprep.subr.mxu0 0.0
        %822 = vmatpush1.xpose.msra.mxu0 0.0
        %823 = vmatprep.subr.mxu0 0.0
        %824 = vmatpush1.xpose.msra.mxu0 0.0
        %825 = vmatprep.subr.mxu0 0.0
        %826 = vmatpush1.xpose.msra.mxu0 0.0
        %827 = vmatprep.subr.mxu0 0.0
        %828 = vmatpush1.xpose.msra.mxu0 0.0
        %829 = vmatprep.subr.mxu0 0.0
        %830 = vmatpush1.xpose.msra.mxu0 0.0
        %831 = vmatprep.subr.mxu0 0.0
        %832 = vmatpush1.xpose.msra.mxu0 0.0
        %833 = vmatprep.subr.mxu0 0.0
        %834 = vmatpush1.xpose.msra.mxu0 0.0
        %835 = vmatprep.subr.mxu0 0.0
        %836 = vmatpush1.xpose.msra.mxu0 0.0
        %837 = vmatprep.subr.mxu0 0.0
        %838 = vmatpush1.xpose.msra.mxu0 0.0
        %839 = vmatprep.subr.mxu0 0.0
        %840 = vmatpush1.xpose.msra.mxu0 0.0
        %841 = vmatprep.subr.mxu0 0.0
        %842 = vmatpush1.xpose.msra.mxu0 0.0
        %843 = vmatprep.subr.mxu0 0.0
        %844 = vmatpush1.xpose.msra.mxu0 0.0
        %845 = vmatprep.subr.mxu0 0.0
        %846 = vmatpush1.xpose.msra.mxu0 0.0
        %847 = vmatprep.subr.mxu0 0.0
        %848 = vmatpush1.xpose.msra.mxu0 0.0
        %849 = vmatprep.subr.mxu0 0.0
        %850 = vmatpush1.xpose.msra.mxu0 0.0
        %851 = vmatprep.subr.mxu0 0.0
        %852 = vmatpush1.xpose.msra.mxu0 0.0
        %853 = vmatprep.subr.mxu0 0.0
        %854 = vmatpush1.xpose.msra.mxu0 0.0
        %855 = vmatprep.subr.mxu0 0.0
        %856 = vmatpush1.xpose.msra.mxu0 0.0
        %857 = vmatprep.subr.mxu0 0.0
        %858 = vmatpush1.xpose.msra.mxu0 0.0
        %859 = vmatprep.subr.mxu0 0.0
        %860 = vmatpush1.xpose.msra.mxu0 0.0
        %861 = vmatprep.subr.mxu0 0.0
        %862 = vmatpush1.xpose.msra.mxu0 0.0
        %863 = vmatprep.subr.mxu0 0.0
        %864 = vmatpush1.xpose.msra.mxu0 0.0
        %865 = vmatprep.subr.mxu0 0.0
        %866 = vmatpush1.xpose.msra.mxu0 0.0
        %867 = vmatprep.subr.mxu0 0.0
        %868 = vmatpush1.xpose.msra.mxu0 0.0
        %869 = vmatprep.subr.mxu0 0.0
        %870 = vmatpush1.xpose.msra.mxu0 0.0
        %871 = vmatprep.subr.mxu0 0.0
        %872 = vmatpush1.xpose.msra.mxu0 0.0
        %873 = vmatprep.subr.mxu0 0.0
        %874 = vmatpush1.xpose.msra.mxu0 0.0
        %875 = vmatprep.mubr.f32.mxu0 0.0
        %876 = vmatmul.mubr.f32.gmra.mrb[0].mxu0 %v806
        %v877 = vpop.f32.mrb[0].mxu0
        %v878 = vadd.f32 0.0, %v877
        %v879 = vpop.f32.mrb[0].mxu0
        %880 = vdwg.mxu0
        %v881 = vsel %vm804, %v878, -inf
        %882 = vmax.xlane.f32.xlu0 %v881
        %v883 = vpop.xlane.xlu0 %882
        %v884 = vsub.f32 %v878, %v883
        %v885 = vmul.f32 %v884, 1.442695
        %v886 = vpow.pop %v885
        %v887 = vsel %vm804, %v886, 0.0
        %888 = vadd.xlane.f32.xlu0 %v887
        %v889 = vpop.xlane.xlu0 %888
        %v890 = vrcp.pop %v889
        %v891 = vmul.f32 %v886, %v890
        %v893 = vsel %vm804, %v891, 0
        %895 = vmatprep.subr.mxu0 0.0
        %896 = vmatpush1.msra.mxu0 %v803
        %897 = vmatprep.subr.mxu0 0.0
        %898 = vmatpush1.msra.mxu0 0.0
        %899 = vmatprep.subr.mxu0 0.0
        %900 = vmatpush1.msra.mxu0 0.0
        %901 = vmatprep.subr.mxu0 0.0
        %902 = vmatpush1.msra.mxu0 0.0
        %903 = vmatprep.subr.mxu0 0.0
        %904 = vmatpush1.msra.mxu0 0.0
        %905 = vmatprep.subr.mxu0 0.0
        %906 = vmatpush1.msra.mxu0 0.0
        %907 = vmatprep.subr.mxu0 0.0
        %908 = vmatpush1.msra.mxu0 0.0
        %909 = vmatprep.subr.mxu0 0.0
        %910 = vmatpush1.msra.mxu0 0.0
        %911 = vmatprep.subr.mxu0 0.0
        %912 = vmatpush1.msra.mxu0 0.0
        %913 = vmatprep.subr.mxu0 0.0
        %914 = vmatpush1.msra.mxu0 0.0
        %915 = vmatprep.subr.mxu0 0.0
        %916 = vmatpush1.msra.mxu0 0.0
        %917 = vmatprep.subr.mxu0 0.0
        %918 = vmatpush1.msra.mxu0 0.0
        %919 = vmatprep.subr.mxu0 0.0
        %920 = vmatpush1.msra.mxu0 0.0
        %921 = vmatprep.subr.mxu0 0.0
        %922 = vmatpush1.msra.mxu0 0.0
        %923 = vmatprep.subr.mxu0 0.0
        %924 = vmatpush1.msra.mxu0 0.0
        %925 = vmatprep.subr.mxu0 0.0
        %926 = vmatpush1.msra.mxu0 0.0
        %927 = vmatprep.subr.mxu0 0.0
        %928 = vmatpush1.msra.mxu0 0.0
        %929 = vmatprep.subr.mxu0 0.0
        %930 = vmatpush1.msra.mxu0 0.0
        %931 = vmatprep.subr.mxu0 0.0
        %932 = vmatpush1.msra.mxu0 0.0
        %933 = vmatprep.subr.mxu0 0.0
        %934 = vmatpush1.msra.mxu0 0.0
        %935 = vmatprep.subr.mxu0 0.0
        %936 = vmatpush1.msra.mxu0 0.0
        %937 = vmatprep.subr.mxu0 0.0
        %938 = vmatpush1.msra.mxu0 0.0
        %939 = vmatprep.subr.mxu0 0.0
        %940 = vmatpush1.msra.mxu0 0.0
        %941 = vmatprep.subr.mxu0 0.0
        %942 = vmatpush1.msra.mxu0 0.0
        %943 = vmatprep.subr.mxu0 0.0
        %944 = vmatpush1.msra.mxu0 0.0
        %945 = vmatprep.subr.mxu0 0.0
        %946 = vmatpush1.msra.mxu0 0.0
        %947 = vmatprep.subr.mxu0 0.0
        %948 = vmatpush1.msra.mxu0 0.0
        %949 = vmatprep.subr.mxu0 0.0
        %950 = vmatpush1.msra.mxu0 0.0
        %951 = vmatprep.subr.mxu0 0.0
        %952 = vmatpush1.msra.mxu0 0.0
        %953 = vmatprep.subr.mxu0 0.0
        %954 = vmatpush1.msra.mxu0 0.0
        %955 = vmatprep.subr.mxu0 0.0
        %956 = vmatpush1.msra.mxu0 0.0
        %957 = vmatprep.subr.mxu0 0.0
        %958 = vmatpush1.msra.mxu0 0.0
        %959 = vmatprep.mubr.f32.mxu0 0.0
        %960 = vmatmul.mubr.f32.gmra.mrb[0].mxu0 %v893
        %v961 = vpop.f32.mrb[0].mxu0
        %v962 = vadd.f32 0.0, %v961
        %v963 = vpop.f32.mrb[0].mxu0
        %964 = vdwg.mxu0
        %965 = vst.msk [vmem:[#allocation4] sm:$0xff] %vm804, %v962
        %966 = vrot.lane.b32.xlu0 %v799, 120
        %v967 = vpop.permute.xlu0 %966
        %968 = vrot.lane.b32.xlu0 %v802, 120
        %v969 = vpop.permute.xlu0 %968
        %v970 = vsel %vm804, %v967, 0
        %v972 = vsel %vm804, %v969, 0
        %974 = vmatprep.subr.mxu0 0.0
        %975 = vmatpush1.xpose.msra.mxu0 %v972
        %976 = vmatprep.subr.mxu0 0.0
        %977 = vmatpush1.xpose.msra.mxu0 0.0
        %978 = vmatprep.subr.mxu0 0.0
        %979 = vmatpush1.xpose.msra.mxu0 0.0
        %980 = vmatprep.subr.mxu0 0.0
        %981 = vmatpush1.xpose.msra.mxu0 0.0
        %982 = vmatprep.subr.mxu0 0.0
        %983 = vmatpush1.xpose.msra.mxu0 0.0
        %984 = vmatprep.subr.mxu0 0.0
        %985 = vmatpush1.xpose.msra.mxu0 0.0
        %986 = vmatprep.subr.mxu0 0.0
        %987 = vmatpush1.xpose.msra.mxu0 0.0
        %988 = vmatprep.subr.mxu0 0.0
        %989 = vmatpush1.xpose.msra.mxu0 0.0
        %990 = vmatprep.subr.mxu0 0.0
        %991 = vmatpush1.xpose.msra.mxu0 0.0
        %992 = vmatprep.subr.mxu0 0.0
        %993 = vmatpush1.xpose.msra.mxu0 0.0
        %994 = vmatprep.subr.mxu0 0.0
        %995 = vmatpush1.xpose.msra.mxu0 0.0
        %996 = vmatprep.subr.mxu0 0.0
        %997 = vmatpush1.xpose.msra.mxu0 0.0
        %998 = vmatprep.subr.mxu0 0.0
        %999 = vmatpush1.xpose.msra.mxu0 0.0
        %1000 = vmatprep.subr.mxu0 0.0
        %1001 = vmatpush1.xpose.msra.mxu0 0.0
        %1002 = vmatprep.subr.mxu0 0.0
        %1003 = vmatpush1.xpose.msra.mxu0 0.0
        %1004 = vmatprep.subr.mxu0 0.0
        %1005 = vmatpush1.xpose.msra.mxu0 0.0
        %1006 = vmatprep.subr.mxu0 0.0
        %1007 = vmatpush1.xpose.msra.mxu0 0.0
        %1008 = vmatprep.subr.mxu0 0.0
        %1009 = vmatpush1.xpose.msra.mxu0 0.0
        %1010 = vmatprep.subr.mxu0 0.0
        %1011 = vmatpush1.xpose.msra.mxu0 0.0
        %1012 = vmatprep.subr.mxu0 0.0
        %1013 = vmatpush1.xpose.msra.mxu0 0.0
        %1014 = vmatprep.subr.mxu0 0.0
        %1015 = vmatpush1.xpose.msra.mxu0 0.0
        %1016 = vmatprep.subr.mxu0 0.0
        %1017 = vmatpush1.xpose.msra.mxu0 0.0
        %1018 = vmatprep.subr.mxu0 0.0
        %1019 = vmatpush1.xpose.msra.mxu0 0.0
        %1020 = vmatprep.subr.mxu0 0.0
        %1021 = vmatpush1.xpose.msra.mxu0 0.0
        %1022 = vmatprep.subr.mxu0 0.0
        %1023 = vmatpush1.xpose.msra.mxu0 0.0
        %1024 = vmatprep.subr.mxu0 0.0
        %1025 = vmatpush1.xpose.msra.mxu0 0.0
        %1026 = vmatprep.subr.mxu0 0.0
        %1027 = vmatpush1.xpose.msra.mxu0 0.0
        %1028 = vmatprep.subr.mxu0 0.0
        %1029 = vmatpush1.xpose.msra.mxu0 0.0
        %1030 = vmatprep.subr.mxu0 0.0
        %1031 = vmatpush1.xpose.msra.mxu0 0.0
        %1032 = vmatprep.subr.mxu0 0.0
        %1033 = vmatpush1.xpose.msra.mxu0 0.0
        %1034 = vmatprep.subr.mxu0 0.0
        %1035 = vmatpush1.xpose.msra.mxu0 0.0
        %1036 = vmatprep.subr.mxu0 0.0
        %1037 = vmatpush1.xpose.msra.mxu0 0.0
        %1038 = vmatprep.mubr.f32.mxu0 0.0
        %1039 = vmatmul.mubr.f32.gmra.mrb[0].mxu0 %v970
        %v1040 = vpop.f32.mrb[0].mxu0
        %v1041 = vadd.f32 0.0, %v1040
        %v1042 = vpop.f32.mrb[0].mxu0
        %1043 = vdwg.mxu0
        %v1044 = vsel %vm804, %v1041, -inf
        %1045 = vmax.xlane.f32.xlu0 %v1044
        %v1046 = vpop.xlane.xlu0 %1045
        %v1047 = vsub.f32 %v1041, %v1046
        %v1048 = vmul.f32 %v1047, 1.442695
        %v1049 = vpow.pop %v1048
        %v1050 = vsel %vm804, %v1049, 0.0
        %1051 = vadd.xlane.f32.xlu0 %v1050
        %v1052 = vpop.xlane.xlu0 %1051
        %v1053 = vrcp.pop %v1052
        %v1054 = vmul.f32 %v1049, %v1053
        %1056 = vrot.lane.b32.xlu0 %v803, 120
        %v1057 = vpop.permute.xlu0 %1056
        %v1060 = vsel %vm804, %v1054, 0
        %1062 = vmatprep.subr.mxu0 0.0
        %1063 = vmatpush1.msra.mxu0 %v1057
        %1064 = vmatprep.subr.mxu0 0.0
        %1065 = vmatpush1.msra.mxu0 0.0
        %1066 = vmatprep.subr.mxu0 0.0
        %1067 = vmatpush1.msra.mxu0 0.0
        %1068 = vmatprep.subr.mxu0 0.0
        %1069 = vmatpush1.msra.mxu0 0.0
        %1070 = vmatprep.subr.mxu0 0.0
        %1071 = vmatpush1.msra.mxu0 0.0
        %1072 = vmatprep.subr.mxu0 0.0
        %1073 = vmatpush1.msra.mxu0 0.0
        %1074 = vmatprep.subr.mxu0 0.0
        %1075 = vmatpush1.msra.mxu0 0.0
        %1076 = vmatprep.subr.mxu0 0.0
        %1077 = vmatpush1.msra.mxu0 0.0
        %1078 = vmatprep.subr.mxu0 0.0
        %1079 = vmatpush1.msra.mxu0 0.0
        %1080 = vmatprep.subr.mxu0 0.0
        %1081 = vmatpush1.msra.mxu0 0.0
        %1082 = vmatprep.subr.mxu0 0.0
        %1083 = vmatpush1.msra.mxu0 0.0
        %1084 = vmatprep.subr.mxu0 0.0
        %1085 = vmatpush1.msra.mxu0 0.0
        %1086 = vmatprep.subr.mxu0 0.0
        %1087 = vmatpush1.msra.mxu0 0.0
        %1088 = vmatprep.subr.mxu0 0.0
        %1089 = vmatpush1.msra.mxu0 0.0
        %1090 = vmatprep.subr.mxu0 0.0
        %1091 = vmatpush1.msra.mxu0 0.0
        %1092 = vmatprep.subr.mxu0 0.0
        %1093 = vmatpush1.msra.mxu0 0.0
        %1094 = vmatprep.subr.mxu0 0.0
        %1095 = vmatpush1.msra.mxu0 0.0
        %1096 = vmatprep.subr.mxu0 0.0
        %1097 = vmatpush1.msra.mxu0 0.0
        %1098 = vmatprep.subr.mxu0 0.0
        %1099 = vmatpush1.msra.mxu0 0.0
        %1100 = vmatprep.subr.mxu0 0.0
        %1101 = vmatpush1.msra.mxu0 0.0
        %1102 = vmatprep.subr.mxu0 0.0
        %1103 = vmatpush1.msra.mxu0 0.0
        %1104 = vmatprep.subr.mxu0 0.0
        %1105 = vmatpush1.msra.mxu0 0.0
        %1106 = vmatprep.subr.mxu0 0.0
        %1107 = vmatpush1.msra.mxu0 0.0
        %1108 = vmatprep.subr.mxu0 0.0
        %1109 = vmatpush1.msra.mxu0 0.0
        %1110 = vmatprep.subr.mxu0 0.0
        %1111 = vmatpush1.msra.mxu0 0.0
        %1112 = vmatprep.subr.mxu0 0.0
        %1113 = vmatpush1.msra.mxu0 0.0
        %1114 = vmatprep.subr.mxu0 0.0
        %1115 = vmatpush1.msra.mxu0 0.0
        %1116 = vmatprep.subr.mxu0 0.0
        %1117 = vmatpush1.msra.mxu0 0.0
        %1118 = vmatprep.subr.mxu0 0.0
        %1119 = vmatpush1.msra.mxu0 0.0
        %1120 = vmatprep.subr.mxu0 0.0
        %1121 = vmatpush1.msra.mxu0 0.0
        %1122 = vmatprep.subr.mxu0 0.0
        %1123 = vmatpush1.msra.mxu0 0.0
        %1124 = vmatprep.subr.mxu0 0.0
        %1125 = vmatpush1.msra.mxu0 0.0
        %1126 = vmatprep.mubr.f32.mxu0 0.0
        %1127 = vmatmul.mubr.f32.gmra.mrb[0].mxu0 %v1060
        %v1128 = vpop.f32.mrb[0].mxu0
        %v1129 = vadd.f32 0.0, %v1128
        %v1130 = vpop.f32.mrb[0].mxu0
        %1131 = vdwg.mxu0
        %1133 = vrot.lane.b32.xlu0 %v1129, 8
        %v1134 = vpop.permute.xlu0 %1133
        %vm1136 = vcmask 130112
        %1137 = vst.msk [vmem:[#allocation4] sm:$0xff] %vm1136, %v1134
        %1138 = vrot.lane.b32.xlu0 %v799, 112
        %v1139 = vpop.permute.xlu0 %1138
        %1140 = vrot.lane.b32.xlu0 %v802, 112
        %v1141 = vpop.permute.xlu0 %1140
        %v1142 = vsel %vm804, %v1139, 0
        %v1144 = vsel %vm804, %v1141, 0
        %1146 = vmatprep.subr.mxu0 0.0
        %1147 = vmatpush1.xpose.msra.mxu0 %v1144
        %1148 = vmatprep.subr.mxu0 0.0
        %1149 = vmatpush1.xpose.msra.mxu0 0.0
        %1150 = vmatprep.subr.mxu0 0.0
        %1151 = vmatpush1.xpose.msra.mxu0 0.0
        %1152 = vmatprep.subr.mxu0 0.0
        %1153 = vmatpush1.xpose.msra.mxu0 0.0
        %1154 = vmatprep.subr.mxu0 0.0
        %1155 = vmatpush1.xpose.msra.mxu0 0.0
        %1156 = vmatprep.subr.mxu0 0.0
        %1157 = vmatpush1.xpose.msra.mxu0 0.0
        %1158 = vmatprep.subr.mxu0 0.0
        %1159 = vmatpush1.xpose.msra.mxu0 0.0
        %1160 = vmatprep.subr.mxu0 0.0
        %1161 = vmatpush1.xpose.msra.mxu0 0.0
        %1162 = vmatprep.subr.mxu0 0.0
        %1163 = vmatpush1.xpose.msra.mxu0 0.0
        %1164 = vmatprep.subr.mxu0 0.0
        %1165 = vmatpush1.xpose.msra.mxu0 0.0
        %1166 = vmatprep.subr.mxu0 0.0
        %1167 = vmatpush1.xpose.msra.mxu0 0.0
        %1168 = vmatprep.subr.mxu0 0.0
        %1169 = vmatpush1.xpose.msra.mxu0 0.0
        %1170 = vmatprep.subr.mxu0 0.0
        %1171 = vmatpush1.xpose.msra.mxu0 0.0
        %1172 = vmatprep.subr.mxu0 0.0
        %1173 = vmatpush1.xpose.msra.mxu0 0.0
        %1174 = vmatprep.subr.mxu0 0.0
        %1175 = vmatpush1.xpose.msra.mxu0 0.0
        %1176 = vmatprep.subr.mxu0 0.0
        %1177 = vmatpush1.xpose.msra.mxu0 0.0
        %1178 = vmatprep.subr.mxu0 0.0
        %1179 = vmatpush1.xpose.msra.mxu0 0.0
        %1180 = vmatprep.subr.mxu0 0.0
        %1181 = vmatpush1.xpose.msra.mxu0 0.0
        %1182 = vmatprep.subr.mxu0 0.0
        %1183 = vmatpush1.xpose.msra.mxu0 0.0
        %1184 = vmatprep.subr.mxu0 0.0
        %1185 = vmatpush1.xpose.msra.mxu0 0.0
        %1186 = vmatprep.subr.mxu0 0.0
        %1187 = vmatpush1.xpose.msra.mxu0 0.0
        %1188 = vmatprep.subr.mxu0 0.0
        %1189 = vmatpush1.xpose.msra.mxu0 0.0
        %1190 = vmatprep.subr.mxu0 0.0
        %1191 = vmatpush1.xpose.msra.mxu0 0.0
        %1192 = vmatprep.subr.mxu0 0.0
        %1193 = vmatpush1.xpose.msra.mxu0 0.0
        %1194 = vmatprep.subr.mxu0 0.0
        %1195 = vmatpush1.xpose.msra.mxu0 0.0
        %1196 = vmatprep.subr.mxu0 0.0
        %1197 = vmatpush1.xpose.msra.mxu0 0.0
        %1198 = vmatprep.subr.mxu0 0.0
        %1199 = vmatpush1.xpose.msra.mxu0 0.0
        %1200 = vmatprep.subr.mxu0 0.0
        %1201 = vmatpush1.xpose.msra.mxu0 0.0
        %1202 = vmatprep.subr.mxu0 0.0
        %1203 = vmatpush1.xpose.msra.mxu0 0.0
        %1204 = vmatprep.subr.mxu0 0.0
        %1205 = vmatpush1.xpose.msra.mxu0 0.0
        %1206 = vmatprep.subr.mxu0 0.0
        %1207 = vmatpush1.xpose.msra.mxu0 0.0
        %1208 = vmatprep.subr.mxu0 0.0
        %1209 = vmatpush1.xpose.msra.mxu0 0.0
        %1210 = vmatprep.mubr.f32.mxu0 0.0
        %1211 = vmatmul.mubr.f32.gmra.mrb[0].mxu0 %v1142
        %v1212 = vpop.f32.mrb[0].mxu0
        %v1213 = vadd.f32 0.0, %v1212
        %v1214 = vpop.f32.mrb[0].mxu0
        %1215 = vdwg.mxu0
        %v1216 = vsel %vm804, %v1213, -inf
        %1217 = vmax.xlane.f32.xlu0 %v1216
        %v1218 = vpop.xlane.xlu0 %1217
        %v1219 = vsub.f32 %v1213, %v1218
        %v1220 = vmul.f32 %v1219, 1.442695
        %v1221 = vpow.pop %v1220
        %v1222 = vsel %vm804, %v1221, 0.0
        %1223 = vadd.xlane.f32.xlu0 %v1222
        %v1224 = vpop.xlane.xlu0 %1223
        %v1225 = vrcp.pop %v1224
        %v1226 = vmul.f32 %v1221, %v1225
        %1227 = vrot.lane.b32.xlu0 %v803, 112
        %v1228 = vpop.permute.xlu0 %1227
        %v1231 = vsel %vm804, %v1226, 0
        %1233 = vmatprep.subr.mxu0 0.0
        %1234 = vmatpush1.msra.mxu0 %v1228
        %1235 = vmatprep.subr.mxu0 0.0
        %1236 = vmatpush1.msra.mxu0 0.0
        %1237 = vmatprep.subr.mxu0 0.0
        %1238 = vmatpush1.msra.mxu0 0.0
        %1239 = vmatprep.subr.mxu0 0.0
        %1240 = vmatpush1.msra.mxu0 0.0
        %1241 = vmatprep.subr.mxu0 0.0
        %1242 = vmatpush1.msra.mxu0 0.0
        %1243 = vmatprep.subr.mxu0 0.0
        %1244 = vmatpush1.msra.mxu0 0.0
        %1245 = vmatprep.subr.mxu0 0.0
        %1246 = vmatpush1.msra.mxu0 0.0
        %1247 = vmatprep.subr.mxu0 0.0
        %1248 = vmatpush1.msra.mxu0 0.0
        %1249 = vmatprep.subr.mxu0 0.0
        %1250 = vmatpush1.msra.mxu0 0.0
        %1251 = vmatprep.subr.mxu0 0.0
        %1252 = vmatpush1.msra.mxu0 0.0
        %1253 = vmatprep.subr.mxu0 0.0
        %1254 = vmatpush1.msra.mxu0 0.0
        %1255 = vmatprep.subr.mxu0 0.0
        %1256 = vmatpush1.msra.mxu0 0.0
        %1257 = vmatprep.subr.mxu0 0.0
        %1258 = vmatpush1.msra.mxu0 0.0
        %1259 = vmatprep.subr.mxu0 0.0
        %1260 = vmatpush1.msra.mxu0 0.0
        %1261 = vmatprep.subr.mxu0 0.0
        %1262 = vmatpush1.msra.mxu0 0.0
        %1263 = vmatprep.subr.mxu0 0.0
        %1264 = vmatpush1.msra.mxu0 0.0
        %1265 = vmatprep.subr.mxu0 0.0
        %1266 = vmatpush1.msra.mxu0 0.0
        %1267 = vmatprep.subr.mxu0 0.0
        %1268 = vmatpush1.msra.mxu0 0.0
        %1269 = vmatprep.subr.mxu0 0.0
        %1270 = vmatpush1.msra.mxu0 0.0
        %1271 = vmatprep.subr.mxu0 0.0
        %1272 = vmatpush1.msra.mxu0 0.0
        %1273 = vmatprep.subr.mxu0 0.0
        %1274 = vmatpush1.msra.mxu0 0.0
        %1275 = vmatprep.subr.mxu0 0.0
        %1276 = vmatpush1.msra.mxu0 0.0
        %1277 = vmatprep.subr.mxu0 0.0
        %1278 = vmatpush1.msra.mxu0 0.0
        %1279 = vmatprep.subr.mxu0 0.0
        %1280 = vmatpush1.msra.mxu0 0.0
        %1281 = vmatprep.subr.mxu0 0.0
        %1282 = vmatpush1.msra.mxu0 0.0
        %1283 = vmatprep.subr.mxu0 0.0
        %1284 = vmatpush1.msra.mxu0 0.0
        %1285 = vmatprep.subr.mxu0 0.0
        %1286 = vmatpush1.msra.mxu0 0.0
        %1287 = vmatprep.subr.mxu0 0.0
        %1288 = vmatpush1.msra.mxu0 0.0
        %1289 = vmatprep.subr.mxu0 0.0
        %1290 = vmatpush1.msra.mxu0 0.0
        %1291 = vmatprep.subr.mxu0 0.0
        %1292 = vmatpush1.msra.mxu0 0.0
        %1293 = vmatprep.subr.mxu0 0.0
        %1294 = vmatpush1.msra.mxu0 0.0
        %1295 = vmatprep.subr.mxu0 0.0
        %1296 = vmatpush1.msra.mxu0 0.0
        %1297 = vmatprep.mubr.f32.mxu0 0.0
        %1298 = vmatmul.mubr.f32.gmra.mrb[0].mxu0 %v1231
        %v1299 = vpop.f32.mrb[0].mxu0
        %v1300 = vadd.f32 0.0, %v1299
        %v1301 = vpop.f32.mrb[0].mxu0
        %1302 = vdwg.mxu0
        %1304 = vrot.lane.b32.xlu0 %v1300, 16
        %v1305 = vpop.permute.xlu0 %1304
        %vm1307 = vcmask 195712
        %1308 = vst.msk [vmem:[#allocation4] sm:$0xff] %vm1307, %v1305
        %1309 = vrot.lane.b32.xlu0 %v799, 104
        %v1310 = vpop.permute.xlu0 %1309
        %1311 = vrot.lane.b32.xlu0 %v802, 104
        %v1312 = vpop.permute.xlu0 %1311
        %v1313 = vsel %vm804, %v1310, 0
        %v1315 = vsel %vm804, %v1312, 0
        %1317 = vmatprep.subr.mxu0 0.0
        %1318 = vmatpush1.xpose.msra.mxu0 %v1315
        %1319 = vmatprep.subr.mxu0 0.0
        %1320 = vmatpush1.xpose.msra.mxu0 0.0
        %1321 = vmatprep.subr.mxu0 0.0
        %1322 = vmatpush1.xpose.msra.mxu0 0.0
        %1323 = vmatprep.subr.mxu0 0.0
        %1324 = vmatpush1.xpose.msra.mxu0 0.0
        %1325 = vmatprep.subr.mxu0 0.0
        %1326 = vmatpush1.xpose.msra.mxu0 0.0
        %1327 = vmatprep.subr.mxu0 0.0
        %1328 = vmatpush1.xpose.msra.mxu0 0.0
        %1329 = vmatprep.subr.mxu0 0.0
        %1330 = vmatpush1.xpose.msra.mxu0 0.0
        %1331 = vmatprep.subr.mxu0 0.0
        %1332 = vmatpush1.xpose.msra.mxu0 0.0
        %1333 = vmatprep.subr.mxu0 0.0
        %1334 = vmatpush1.xpose.msra.mxu0 0.0
        %1335 = vmatprep.subr.mxu0 0.0
        %1336 = vmatpush1.xpose.msra.mxu0 0.0
        %1337 = vmatprep.subr.mxu0 0.0
        %1338 = vmatpush1.xpose.msra.mxu0 0.0
        %1339 = vmatprep.subr.mxu0 0.0
        %1340 = vmatpush1.xpose.msra.mxu0 0.0
        %1341 = vmatprep.subr.mxu0 0.0
        %1342 = vmatpush1.xpose.msra.mxu0 0.0
        %1343 = vmatprep.subr.mxu0 0.0
        %1344 = vmatpush1.xpose.msra.mxu0 0.0
        %1345 = vmatprep.subr.mxu0 0.0
        %1346 = vmatpush1.xpose.msra.mxu0 0.0
        %1347 = vmatprep.subr.mxu0 0.0
        %1348 = vmatpush1.xpose.msra.mxu0 0.0
        %1349 = vmatprep.subr.mxu0 0.0
        %1350 = vmatpush1.xpose.msra.mxu0 0.0
        %1351 = vmatprep.subr.mxu0 0.0
        %1352 = vmatpush1.xpose.msra.mxu0 0.0
        %1353 = vmatprep.subr.mxu0 0.0
        %1354 = vmatpush1.xpose.msra.mxu0 0.0
        %1355 = vmatprep.subr.mxu0 0.0
        %1356 = vmatpush1.xpose.msra.mxu0 0.0
        %1357 = vmatprep.subr.mxu0 0.0
        %1358 = vmatpush1.xpose.msra.mxu0 0.0
        %1359 = vmatprep.subr.mxu0 0.0
        %1360 = vmatpush1.xpose.msra.mxu0 0.0
        %1361 = vmatprep.subr.mxu0 0.0
        %1362 = vmatpush1.xpose.msra.mxu0 0.0
        %1363 = vmatprep.subr.mxu0 0.0
        %1364 = vmatpush1.xpose.msra.mxu0 0.0
        %1365 = vmatprep.subr.mxu0 0.0
        %1366 = vmatpush1.xpose.msra.mxu0 0.0
        %1367 = vmatprep.subr.mxu0 0.0
        %1368 = vmatpush1.xpose.msra.mxu0 0.0
        %1369 = vmatprep.subr.mxu0 0.0
        %1370 = vmatpush1.xpose.msra.mxu0 0.0
        %1371 = vmatprep.subr.mxu0 0.0
        %1372 = vmatpush1.xpose.msra.mxu0 0.0
        %1373 = vmatprep.subr.mxu0 0.0
        %1374 = vmatpush1.xpose.msra.mxu0 0.0
        %1375 = vmatprep.subr.mxu0 0.0
        %1376 = vmatpush1.xpose.msra.mxu0 0.0
        %1377 = vmatprep.subr.mxu0 0.0
        %1378 = vmatpush1.xpose.msra.mxu0 0.0
        %1379 = vmatprep.subr.mxu0 0.0
        %1380 = vmatpush1.xpose.msra.mxu0 0.0
        %1381 = vmatprep.mubr.f32.mxu0 0.0
        %1382 = vmatmul.mubr.f32.gmra.mrb[0].mxu0 %v1313
        %v1383 = vpop.f32.mrb[0].mxu0
        %v1384 = vadd.f32 0.0, %v1383
        %v1385 = vpop.f32.mrb[0].mxu0
        %1386 = vdwg.mxu0
        %v1387 = vsel %vm804, %v1384, -inf
        %1388 = vmax.xlane.f32.xlu0 %v1387
        %v1389 = vpop.xlane.xlu0 %1388
        %v1390 = vsub.f32 %v1384, %v1389
        %v1391 = vmul.f32 %v1390, 1.442695
        %v1392 = vpow.pop %v1391
        %v1393 = vsel %vm804, %v1392, 0.0
        %1394 = vadd.xlane.f32.xlu0 %v1393
        %v1395 = vpop.xlane.xlu0 %1394
        %v1396 = vrcp.pop %v1395
        %v1397 = vmul.f32 %v1392, %v1396
        %1398 = vrot.lane.b32.xlu0 %v803, 104
        %v1399 = vpop.permute.xlu0 %1398
        %v1402 = vsel %vm804, %v1397, 0
        %1404 = vmatprep.subr.mxu0 0.0
        %1405 = vmatpush1.msra.mxu0 %v1399
        %1406 = vmatprep.subr.mxu0 0.0
        %1407 = vmatpush1.msra.mxu0 0.0
        %1408 = vmatprep.subr.mxu0 0.0
        %1409 = vmatpush1.msra.mxu0 0.0
        %1410 = vmatprep.subr.mxu0 0.0
        %1411 = vmatpush1.msra.mxu0 0.0
        %1412 = vmatprep.subr.mxu0 0.0
        %1413 = vmatpush1.msra.mxu0 0.0
        %1414 = vmatprep.subr.mxu0 0.0
        %1415 = vmatpush1.msra.mxu0 0.0
        %1416 = vmatprep.subr.mxu0 0.0
        %1417 = vmatpush1.msra.mxu0 0.0
        %1418 = vmatprep.subr.mxu0 0.0
        %1419 = vmatpush1.msra.mxu0 0.0
        %1420 = vmatprep.subr.mxu0 0.0
        %1421 = vmatpush1.msra.mxu0 0.0
        %1422 = vmatprep.subr.mxu0 0.0
        %1423 = vmatpush1.msra.mxu0 0.0
        %1424 = vmatprep.subr.mxu0 0.0
        %1425 = vmatpush1.msra.mxu0 0.0
        %1426 = vmatprep.subr.mxu0 0.0
        %1427 = vmatpush1.msra.mxu0 0.0
        %1428 = vmatprep.subr.mxu0 0.0
        %1429 = vmatpush1.msra.mxu0 0.0
        %1430 = vmatprep.subr.mxu0 0.0
        %1431 = vmatpush1.msra.mxu0 0.0
        %1432 = vmatprep.subr.mxu0 0.0
        %1433 = vmatpush1.msra.mxu0 0.0
        %1434 = vmatprep.subr.mxu0 0.0
        %1435 = vmatpush1.msra.mxu0 0.0
        %1436 = vmatprep.subr.mxu0 0.0
        %1437 = vmatpush1.msra.mxu0 0.0
        %1438 = vmatprep.subr.mxu0 0.0
        %1439 = vmatpush1.msra.mxu0 0.0
        %1440 = vmatprep.subr.mxu0 0.0
        %1441 = vmatpush1.msra.mxu0 0.0
        %1442 = vmatprep.subr.mxu0 0.0
        %1443 = vmatpush1.msra.mxu0 0.0
        %1444 = vmatprep.subr.mxu0 0.0
        %1445 = vmatpush1.msra.mxu0 0.0
        %1446 = vmatprep.subr.mxu0 0.0
        %1447 = vmatpush1.msra.mxu0 0.0
        %1448 = vmatprep.subr.mxu0 0.0
        %1449 = vmatpush1.msra.mxu0 0.0
        %1450 = vmatprep.subr.mxu0 0.0
        %1451 = vmatpush1.msra.mxu0 0.0
        %1452 = vmatprep.subr.mxu0 0.0
        %1453 = vmatpush1.msra.mxu0 0.0
        %1454 = vmatprep.subr.mxu0 0.0
        %1455 = vmatpush1.msra.mxu0 0.0
        %1456 = vmatprep.subr.mxu0 0.0
        %1457 = vmatpush1.msra.mxu0 0.0
        %1458 = vmatprep.subr.mxu0 0.0
        %1459 = vmatpush1.msra.mxu0 0.0
        %1460 = vmatprep.subr.mxu0 0.0
        %1461 = vmatpush1.msra.mxu0 0.0
        %1462 = vmatprep.subr.mxu0 0.0
        %1463 = vmatpush1.msra.mxu0 0.0
        %1464 = vmatprep.subr.mxu0 0.0
        %1465 = vmatpush1.msra.mxu0 0.0
        %1466 = vmatprep.subr.mxu0 0.0
        %1467 = vmatpush1.msra.mxu0 0.0
        %1468 = vmatprep.mubr.f32.mxu0 0.0
        %1469 = vmatmul.mubr.f32.gmra.mrb[0].mxu0 %v1402
        %v1470 = vpop.f32.mrb[0].mxu0
        %v1471 = vadd.f32 0.0, %v1470
        %v1472 = vpop.f32.mrb[0].mxu0
        %1473 = vdwg.mxu0
        %1475 = vrot.lane.b32.xlu0 %v1471, 24
        %v1476 = vpop.permute.xlu0 %1475
        %vm1478 = vcmask 261312
        %1479 = vst.msk [vmem:[#allocation4] sm:$0xff] %vm1478, %v1476
        %v1480 = vld [vmem:[#allocation4] sm:$0xff]
        %v1481 = vld [vmem:[%s5] sm:$0xff]
        %v1482 = vld [vmem:[%s5 + $0x8] sm:$0xff]
        %v1483 = vld [vmem:[%s5 + $0x10] sm:$0xff]
        %v1484 = vld [vmem:[%s5 + $0x18] sm:$0xff]
        %v1485 = vld [vmem:[%s6] sm:$0x1]
        %v1487 = vlaneseq
        %v1488 = vshrl.u32 %v1487, 7
        %v1489 = vsub.s32 0, %v1488
        %v1490 = vrot.slane %v1485, %v1489
        %v1493 = vsel %vm728, %v1480, 0
        %1495 = vmatprep.subr.mxu0 0.0
        %1496 = vmatpush1.msra.mxu0 %v1481
        %1497 = vmatprep.subr.mxu0 0.0
        %1498 = vmatpush1.msra.mxu0 %v1482
        %1499 = vmatprep.subr.mxu0 0.0
        %1500 = vmatpush1.msra.mxu0 %v1483
        %1501 = vmatprep.subr.mxu0 0.0
        %1502 = vmatpush1.msra.mxu0 %v1484
        %1503 = vmatprep.subr.mxu0 0.0
        %1504 = vmatpush1.msra.mxu0 0.0
        %1505 = vmatprep.subr.mxu0 0.0
        %1506 = vmatpush1.msra.mxu0 0.0
        %1507 = vmatprep.subr.mxu0 0.0
        %1508 = vmatpush1.msra.mxu0 0.0
        %1509 = vmatprep.subr.mxu0 0.0
        %1510 = vmatpush1.msra.mxu0 0.0
        %1511 = vmatprep.subr.mxu0 0.0
        %1512 = vmatpush1.msra.mxu0 0.0
        %1513 = vmatprep.subr.mxu0 0.0
        %1514 = vmatpush1.msra.mxu0 0.0
        %1515 = vmatprep.subr.mxu0 0.0
        %1516 = vmatpush1.msra.mxu0 0.0
        %1517 = vmatprep.subr.mxu0 0.0
        %1518 = vmatpush1.msra.mxu0 0.0
        %1519 = vmatprep.subr.mxu0 0.0
        %1520 = vmatpush1.msra.mxu0 0.0
        %1521 = vmatprep.subr.mxu0 0.0
        %1522 = vmatpush1.msra.mxu0 0.0
        %1523 = vmatprep.subr.mxu0 0.0
        %1524 = vmatpush1.msra.mxu0 0.0
        %1525 = vmatprep.subr.mxu0 0.0
        %1526 = vmatpush1.msra.mxu0 0.0
        %1527 = vmatprep.subr.mxu0 0.0
        %1528 = vmatpush1.msra.mxu0 0.0
        %1529 = vmatprep.subr.mxu0 0.0
        %1530 = vmatpush1.msra.mxu0 0.0
        %1531 = vmatprep.subr.mxu0 0.0
        %1532 = vmatpush1.msra.mxu0 0.0
        %1533 = vmatprep.subr.mxu0 0.0
        %1534 = vmatpush1.msra.mxu0 0.0
        %1535 = vmatprep.subr.mxu0 0.0
        %1536 = vmatpush1.msra.mxu0 0.0
        %1537 = vmatprep.subr.mxu0 0.0
        %1538 = vmatpush1.msra.mxu0 0.0
        %1539 = vmatprep.subr.mxu0 0.0
        %1540 = vmatpush1.msra.mxu0 0.0
        %1541 = vmatprep.subr.mxu0 0.0
        %1542 = vmatpush1.msra.mxu0 0.0
        %1543 = vmatprep.subr.mxu0 0.0
        %1544 = vmatpush1.msra.mxu0 0.0
        %1545 = vmatprep.subr.mxu0 0.0
        %1546 = vmatpush1.msra.mxu0 0.0
        %1547 = vmatprep.subr.mxu0 0.0
        %1548 = vmatpush1.msra.mxu0 0.0
        %1549 = vmatprep.subr.mxu0 0.0
        %1550 = vmatpush1.msra.mxu0 0.0
        %1551 = vmatprep.subr.mxu0 0.0
        %1552 = vmatpush1.msra.mxu0 0.0
        %1553 = vmatprep.subr.mxu0 0.0
        %1554 = vmatpush1.msra.mxu0 0.0
        %1555 = vmatprep.subr.mxu0 0.0
        %1556 = vmatpush1.msra.mxu0 0.0
        %1557 = vmatprep.subr.mxu0 0.0
        %1558 = vmatpush1.msra.mxu0 0.0
        %1559 = vmatprep.mubr.f32.mxu0 0.0
        %1560 = vmatmul.mubr.f32.gmra.mrb[0].mxu0 %v1493
        %v1561 = vpop.f32.mrb[0].mxu0
        %v1562 = vadd.f32 %v1490, %v1561
        %v1563 = vpop.f32.mrb[0].mxu0
        %1564 = vdwg.mxu0
        %v1565 = vld [vmem:[%s512] sm:$0xff]
        %v1566 = vadd.f32 %v1562, %v1565
        %v1567 = vld [vmem:[%s11] sm:$0x1]
        %v1568 = vld [vmem:[%s12] sm:$0x1]
        %v1569 = vsel %vm728, %v1566, 0.0
        %1570 = vadd.xlane.f32.xlu0 %v1569
        %v1571 = vpop.xlane.xlu0 %1570
        %v1572 = vrcp.pop 32.0
        %v1573 = vmul.f32 %v1571, %v1572
        %v1574 = vsub.f32 %v1566, %v1573
        %v1575 = vmul.f32 %v1574, %v1574
        %v1576 = vsel %vm728, %v1575, 0.0
        %1577 = vadd.xlane.f32.xlu0 %v1576
        %v1578 = vpop.xlane.xlu0 %1577
        %v1579 = vmul.f32 %v1578, %v1572
        %v1580 = vadd.f32 %v1579, 1e-05
        %v1581 = vrsqrt.pop %v1580
        %v1582 = vmul.f32 %v1574, %v1581
        %v1584 = vlaneseq
        %v1585 = vshrl.u32 %v1584, 7
        %v1586 = vsub.s32 0, %v1585
        %v1587 = vrot.slane %v1567, %v1586
        %v1589 = vmul.f32 %v1582, %v1587
        %v1591 = vlaneseq
        %v1592 = vshrl.u32 %v1591, 7
        %v1593 = vsub.s32 0, %v1592
        %v1594 = vrot.slane %v1568, %v1593
        %v1596 = vadd.f32 %v1589, %v1594
        %v1597 = vld [vmem:[%s7] sm:$0xff]
        %v1598 = vld [vmem:[%s7 + $0x8] sm:$0xff]
        %v1599 = vld [vmem:[%s7 + $0x10] sm:$0xff]
        %v1600 = vld [vmem:[%s7 + $0x18] sm:$0xff]
        %v1601 = vld [vmem:[%s8] sm:$0x1]
        %v1603 = vlaneseq
        %v1604 = vshrl.u32 %v1603, 7
        %v1605 = vsub.s32 0, %v1604
        %v1606 = vrot.slane %v1601, %v1605
        %v1609 = vsel %vm728, %v1596, 0
        %1611 = vmatprep.subr.mxu0 0.0
        %1612 = vmatpush1.msra.mxu0 %v1597
        %1613 = vmatprep.subr.mxu0 0.0
        %1614 = vmatpush1.msra.mxu0 %v1598
        %1615 = vmatprep.subr.mxu0 0.0
        %1616 = vmatpush1.msra.mxu0 %v1599
        %1617 = vmatprep.subr.mxu0 0.0
        %1618 = vmatpush1.msra.mxu0 %v1600
        %1619 = vmatprep.subr.mxu0 0.0
        %1620 = vmatpush1.msra.mxu0 0.0
        %1621 = vmatprep.subr.mxu0 0.0
        %1622 = vmatpush1.msra.mxu0 0.0
        %1623 = vmatprep.subr.mxu0 0.0
        %1624 = vmatpush1.msra.mxu0 0.0
        %1625 = vmatprep.subr.mxu0 0.0
        %1626 = vmatpush1.msra.mxu0 0.0
        %1627 = vmatprep.subr.mxu0 0.0
        %1628 = vmatpush1.msra.mxu0 0.0
        %1629 = vmatprep.subr.mxu0 0.0
        %1630 = vmatpush1.msra.mxu0 0.0
        %1631 = vmatprep.subr.mxu0 0.0
        %1632 = vmatpush1.msra.mxu0 0.0
        %1633 = vmatprep.subr.mxu0 0.0
        %1634 = vmatpush1.msra.mxu0 0.0
        %1635 = vmatprep.subr.mxu0 0.0
        %1636 = vmatpush1.msra.mxu0 0.0
        %1637 = vmatprep.subr.mxu0 0.0
        %1638 = vmatpush1.msra.mxu0 0.0
        %1639 = vmatprep.subr.mxu0 0.0
        %1640 = vmatpush1.msra.mxu0 0.0
        %1641 = vmatprep.subr.mxu0 0.0
        %1642 = vmatpush1.msra.mxu0 0.0
        %1643 = vmatprep.subr.mxu0 0.0
        %1644 = vmatpush1.msra.mxu0 0.0
        %1645 = vmatprep.subr.mxu0 0.0
        %1646 = vmatpush1.msra.mxu0 0.0
        %1647 = vmatprep.subr.mxu0 0.0
        %1648 = vmatpush1.msra.mxu0 0.0
        %1649 = vmatprep.subr.mxu0 0.0
        %1650 = vmatpush1.msra.mxu0 0.0
        %1651 = vmatprep.subr.mxu0 0.0
        %1652 = vmatpush1.msra.mxu0 0.0
        %1653 = vmatprep.subr.mxu0 0.0
        %1654 = vmatpush1.msra.mxu0 0.0
        %1655 = vmatprep.subr.mxu0 0.0
        %1656 = vmatpush1.msra.mxu0 0.0
        %1657 = vmatprep.subr.mxu0 0.0
        %1658 = vmatpush1.msra.mxu0 0.0
        %1659 = vmatprep.subr.mxu0 0.0
        %1660 = vmatpush1.msra.mxu0 0.0
        %1661 = vmatprep.subr.mxu0 0.0
        %1662 = vmatpush1.msra.mxu0 0.0
        %1663 = vmatprep.subr.mxu0 0.0
        %1664 = vmatpush1.msra.mxu0 0.0
        %1665 = vmatprep.subr.mxu0 0.0
        %1666 = vmatpush1.msra.mxu0 0.0
        %1667 = vmatprep.subr.mxu0 0.0
        %1668 = vmatpush1.msra.mxu0 0.0
        %1669 = vmatprep.subr.mxu0 0.0
        %1670 = vmatpush1.msra.mxu0 0.0
        %1671 = vmatprep.subr.mxu0 0.0
        %1672 = vmatpush1.msra.mxu0 0.0
        %1673 = vmatprep.subr.mxu0 0.0
        %1674 = vmatpush1.msra.mxu0 0.0
        %1675 = vmatprep.mubr.f32.mxu0 0.0
        %1676 = vmatmul.mubr.f32.gmra.mrb[0].mxu0 %v1609
        %v1677 = vpop.f32.mrb[0].mxu0
        %v1678 = vadd.f32 %v1606, %v1677
        %v1679 = vpop.f32.mrb[0].mxu0
        %1680 = vdwg.mxu0
        %v1681 = vmul.f32 %v1678, 0.5
        %v1682 = vmul.f32 %v1678, 0.70710677
        %v1683 = vmax.f32 %v1682, -4.0
        %v1684 = vmin.f32 %v1683, 4.0
        %v1685 = vmul.f32 %v1684, %v1684
        %v1686 = vmul.f32 %v1685, -2.7261424e-10
        %v1687 = vadd.f32 %v1686, 2.7706815e-08
        %v1688 = vmul.f32 %v1687, %v1685
        %v1689 = vadd.f32 %v1688, -2.101024e-06
        %v1690 = vmul.f32 %v1689, %v1685
        %v1691 = vadd.f32 %v1690, -5.6925062e-05
        %v1692 = vmul.f32 %v1691, %v1685
        %v1693 = vadd.f32 %v1692, -0.00073499064
        %v1694 = vmul.f32 %v1693, %v1685
        %v1695 = vadd.f32 %v1694, -0.0029546
        %v1696 = vmul.f32 %v1695, %v1685
        %v1697 = vadd.f32 %v1696, -0.016096033
        %v1698 = vmul.f32 %v1697, %v1684
        %v1699 = vmul.f32 %v1685, -1.45660715e-05
        %v1700 = vadd.f32 %v1699, -0.00021337405
        %v1701 = vmul.f32 %v1700, %v1685
        %v1702 = vadd.f32 %v1701, -0.001682827
        %v1703 = vmul.f32 %v1702, %v1685
        %v1704 = vadd.f32 %v1703, -0.0073733293
        %v1705 = vmul.f32 %v1704, %v1685
        %v1706 = vadd.f32 %v1705, -0.014264739
        %v1707 = vrcp.pop %v1706
        %v1708 = vmul.f32 %v1698, %v1707
        %v1709 = vadd.f32 %v1708, 1.0
        %v1710 = vmul.f32 %v1681, %v1709
        %v1711 = vld [vmem:[%s9] sm:$0xff]
        %v1712 = vld [vmem:[%s9 + $0x8] sm:$0xff]
        %v1713 = vld [vmem:[%s9 + $0x10] sm:$0xff]
        %v1714 = vld [vmem:[%s9 + $0x18] sm:$0xff]
        %v1715 = vld [vmem:[%s9 + $0x20] sm:$0xff]
        %v1716 = vld [vmem:[%s9 + $0x28] sm:$0xff]
        %v1717 = vld [vmem:[%s9 + $0x30] sm:$0xff]
        %v1718 = vld [vmem:[%s9 + $0x38] sm:$0xff]
        %v1719 = vld [vmem:[%s9 + $0x40] sm:$0xff]
        %v1720 = vld [vmem:[%s9 + $0x48] sm:$0xff]
        %v1721 = vld [vmem:[%s9 + $0x50] sm:$0xff]
        %v1722 = vld [vmem:[%s9 + $0x58] sm:$0xff]
        %v1723 = vld [vmem:[%s9 + $0x60] sm:$0xff]
        %v1724 = vld [vmem:[%s9 + $0x68] sm:$0xff]
        %v1725 = vld [vmem:[%s9 + $0x70] sm:$0xff]
        %v1726 = vld [vmem:[%s9 + $0x78] sm:$0xff]
        %v1727 = vld [vmem:[%s10] sm:$0x1]
        %v1729 = vlaneseq
        %v1730 = vshrl.u32 %v1729, 7
        %v1731 = vsub.s32 0, %v1730
        %v1732 = vrot.slane %v1727, %v1731
        %1734 = vmatprep.subr.mxu0 0.0
        %1735 = vmatpush1.msra.mxu0 %v1711
        %1736 = vmatprep.subr.mxu0 0.0
        %1737 = vmatpush1.msra.mxu0 %v1712
        %1738 = vmatprep.subr.mxu0 0.0
        %1739 = vmatpush1.msra.mxu0 %v1713
        %1740 = vmatprep.subr.mxu0 0.0
        %1741 = vmatpush1.msra.mxu0 %v1714
        %1742 = vmatprep.subr.mxu0 0.0
        %1743 = vmatpush1.msra.mxu0 %v1715
        %1744 = vmatprep.subr.mxu0 0.0
        %1745 = vmatpush1.msra.mxu0 %v1716
        %1746 = vmatprep.subr.mxu0 0.0
        %1747 = vmatpush1.msra.mxu0 %v1717
        %1748 = vmatprep.subr.mxu0 0.0
        %1749 = vmatpush1.msra.mxu0 %v1718
        %1750 = vmatprep.subr.mxu0 0.0
        %1751 = vmatpush1.msra.mxu0 %v1719
        %1752 = vmatprep.subr.mxu0 0.0
        %1753 = vmatpush1.msra.mxu0 %v1720
        %1754 = vmatprep.subr.mxu0 0.0
        %1755 = vmatpush1.msra.mxu0 %v1721
        %1756 = vmatprep.subr.mxu0 0.0
        %1757 = vmatpush1.msra.mxu0 %v1722
        %1758 = vmatprep.subr.mxu0 0.0
        %1759 = vmatpush1.msra.mxu0 %v1723
        %1760 = vmatprep.subr.mxu0 0.0
        %1761 = vmatpush1.msra.mxu0 %v1724
        %1762 = vmatprep.subr.mxu0 0.0
        %1763 = vmatpush1.msra.mxu0 %v1725
        %1764 = vmatprep.subr.mxu0 0.0
        %1765 = vmatpush1.msra.mxu0 %v1726
        %1766 = vmatprep.subr.mxu0 0.0
        %1767 = vmatpush1.msra.mxu0 0.0
        %1768 = vmatprep.subr.mxu0 0.0
        %1769 = vmatpush1.msra.mxu0 0.0
        %1770 = vmatprep.subr.mxu0 0.0
        %1771 = vmatpush1.msra.mxu0 0.0
        %1772 = vmatprep.subr.mxu0 0.0
        %1773 = vmatpush1.msra.mxu0 0.0
        %1774 = vmatprep.subr.mxu0 0.0
        %1775 = vmatpush1.msra.mxu0 0.0
        %1776 = vmatprep.subr.mxu0 0.0
        %1777 = vmatpush1.msra.mxu0 0.0
        %1778 = vmatprep.subr.mxu0 0.0
        %1779 = vmatpush1.msra.mxu0 0.0
        %1780 = vmatprep.subr.mxu0 0.0
        %1781 = vmatpush1.msra.mxu0 0.0
        %1782 = vmatprep.subr.mxu0 0.0
        %1783 = vmatpush1.msra.mxu0 0.0
        %1784 = vmatprep.subr.mxu0 0.0
        %1785 = vmatpush1.msra.mxu0 0.0
        %1786 = vmatprep.subr.mxu0 0.0
        %1787 = vmatpush1.msra.mxu0 0.0
        %1788 = vmatprep.subr.mxu0 0.0
        %1789 = vmatpush1.msra.mxu0 0.0
        %1790 = vmatprep.subr.mxu0 0.0
        %1791 = vmatpush1.msra.mxu0 0.0
        %1792 = vmatprep.subr.mxu0 0.0
        %1793 = vmatpush1.msra.mxu0 0.0
        %1794 = vmatprep.subr.mxu0 0.0
        %1795 = vmatpush1.msra.mxu0 0.0
        %1796 = vmatprep.subr.mxu0 0.0
        %1797 = vmatpush1.msra.mxu0 0.0
        %1798 = vmatprep.mubr.f32.mxu0 0.0
        %1799 = vmatmul.mubr.f32.gmra.mrb[0].mxu0 %v1710
        %v1800 = vpop.f32.mrb[0].mxu0
        %v1801 = vadd.f32 %v1732, %v1800
        %v1802 = vpop.f32.mrb[0].mxu0
        %1803 = vdwg.mxu0
        %v1804 = vadd.f32 %v1801, %v1596
        %v1805 = vld [vmem:[%s13] sm:$0x1]
        %v1806 = vld [vmem:[%s14] sm:$0x1]
        %v1807 = vsel %vm728, %v1804, 0.0
        %1808 = vadd.xlane.f32.xlu0 %v1807
        %v1809 = vpop.xlane.xlu0 %1808
        %v1810 = vmul.f32 %v1809, %v1572
        %v1811 = vsub.f32 %v1804, %v1810
        %v1812 = vmul.f32 %v1811, %v1811
        %v1813 = vsel %vm728, %v1812, 0.0
        %1814 = vadd.xlane.f32.xlu0 %v1813
        %v1815 = vpop.xlane.xlu0 %1814
        %v1816 = vmul.f32 %v1815, %v1572
        %v1817 = vadd.f32 %v1816, 1e-05
        %v1818 = vrsqrt.pop %v1817
        %v1819 = vmul.f32 %v1811, %v1818
        %v1821 = vlaneseq
        %v1822 = vshrl.u32 %v1821, 7
        %v1823 = vsub.s32 0, %v1822
        %v1824 = vrot.slane %v1805, %v1823
        %v1826 = vmul.f32 %v1819, %v1824
        %v1828 = vlaneseq
        %v1829 = vshrl.u32 %v1828, 7
        %v1830 = vsub.s32 0, %v1829
        %v1831 = vrot.slane %v1806, %v1830
        %v1833 = vadd.f32 %v1826, %v1831
        %1834 = vst.msk [vmem:[%s563] sm:$0xff] %vm728, %v1833
        %s1835 = sand.u32 %s384, 1
        %s1836 = scalar_lea.sflag [#allocation7], %s1835
        %s1837 = sand.u32 %s384, 1
        %s1838 = smul.addr %s1837, 8
        %s1839 = scalar_lea.vmem [#allocation10], %s1838
        // Predicated region
        $region93: #{tpu_custom_call.1} parent=79 // pred_check
          %p1840 = pneg %p394
        $region94: #{tpu_custom_call.1} parent=79 // pred_check_branch
          %1842 = sbr.rel (%p1840) target = $region96
        $region95: #{tpu_custom_call.1} parent=79 // pred_region
          %s1844 = ssub.s32 128, 128
          %1845 = vsyncadd %s1836, %s1844
          %s1846 = sadd.s32 %s40, %s39
          %s1847 = smul.addr %s1846, 128
          %s1848 = scalar_lea.hbm %s15, %s1847
          %s1850 = sshll.u32 %s1839, 4
          %s1851 = int_to_ptr.vmem [resolvable:$true] %s1850
          %1853 = dma.vmem_to_hbm [thread:$0]  %s1851, 128, %s1848, %s1836
        $region96: #{tpu_custom_call.1} parent=79 // pred_fallthru
          _
      $region80: #{tpu_custom_call.1} parent=5 // pred_fallthru
        _
      %p1854 = scmp.le.s32.totalorder 2, %s30
      // Predicated region
      $region97: #{tpu_custom_call.1} parent=5 // pred_check
        %p1855 = pneg %p1854
      $region98: #{tpu_custom_call.1} parent=5 // pred_check_branch
        %1857 = sbr.rel (%p1855) target = $region100
      $region99: #{tpu_custom_call.1} parent=5 // pred_region
        %s1858 = ssub.s32 %s30, 2
        // Predicated region
        $region101: #{tpu_custom_call.1} parent=99 // pred_check
          %p1859 = pneg %p400
        $region102: #{tpu_custom_call.1} parent=99 // pred_check_branch
          %1861 = sbr.rel (%p1859) target = $region104
        $region103: #{tpu_custom_call.1} parent=99 // pred_region
          %s1862 = sand.u32 %s385, 1
          %s1863 = scalar_lea.sflag [#allocation7], %s1862
          %s1864 = sand.u32 %s385, 1
          %s1865 = smul.addr %s1864, 8
          %s1866 = scalar_lea.vmem [#allocation10], %s1865
          %1867 = dma.done %s1863, 128
        $region104: #{tpu_custom_call.1} parent=99 // pred_fallthru
          _
      $region100: #{tpu_custom_call.1} parent=5 // pred_fallthru
        _
    $region6: #{tpu_custom_call.1} parent=1 // loop_footer
      %s34 = sadd.s32 1, %s30
    $region7: #{tpu_custom_call.1} parent=1 // loop_footer_branch
      %29 = sbr.rel target = $region3
    $region8: #{tpu_custom_call.1} parent=1 // loop_exit
      _
    %1868 = vsyncpa [#allocation6], 1
    %s1869 = scalar_lea.sflag [#allocation6], 1
    %1870 = vsyncpa %s1869, 1
    %1871 = vsyncpa [#allocation9], 1
    %s1872 = scalar_lea.sflag [#allocation9], 1
    %1873 = vsyncpa %s1872, 1
    %1874 = vsyncpa [#allocation7], 1
    %s1875 = scalar_lea.sflag [#allocation7], 1
    %1876 = vsyncpa %s1875, 1

</llo_original>
